<compile_context>
chip_gen: v5e
topology: v5e:2x2
jax: 0.10.0
libtpu: 0.0.40
codegen_flags: <defaults>
</compile_context>

<pallas_src>
import functools
import numpy as np
import jax
import jax.numpy as jnp
from jax.experimental import pallas as pl
from jax.experimental.pallas import tpu as pltpu


# ------------------------------ fused Pallas kernel ------------------------------

def _estimate_adj_kernel(a_ref, x_ref, w1_ref, b1_ref, w2_ref, b2_ref,
                         i0_ref, i1_ref, m_ref,
                         rep_ref, w_out_ref, loss_ref,
                         gram_sc, *, t_small):
    i = pl.program_id(0)
    n_nodes = a_ref.shape[0]
    te = i0_ref.shape[1]

    @pl.when(i == 0)
    def _():
        # --- GCN estimator, fully VMEM resident (bf16 MXU inputs, f32 accum) ---
        xw1 = jnp.dot(x_ref[...], w1_ref[...],
                      preferred_element_type=jnp.float32)
        h = jnp.dot(a_ref[...], xw1.astype(jnp.bfloat16),
                    preferred_element_type=jnp.float32) + b1_ref[...]
        h = jnp.maximum(h, 0.0)
        hw2 = jnp.dot(h.astype(jnp.bfloat16), w2_ref[...],
                      preferred_element_type=jnp.float32)
        rep = jnp.dot(a_ref[...], hw2.astype(jnp.bfloat16),
                      preferred_element_type=jnp.float32) + b2_ref[...]
        rep_ref[...] = rep
        # Gram matrix G[n, m] = rep[n] . rep[m] (f32, NT matmul) — used for exact
        # in-kernel row gathers of edge scores via one-hot matmuls.
        gram_sc[...] = jax.lax.dot_general(
            rep, rep, (((1,), (1,)), ((), ())),
            preferred_element_type=jnp.float32)
        loss_ref[...] = jnp.zeros_like(loss_ref)

    # --- per-edge scores for this 256-edge tile, lane-dense (1, te) ---
    idx0 = i0_ref[...]                                         # (1, te) int32
    idx1 = i1_ref[...]                                         # (1, te) int32
    node_ids = jax.lax.broadcasted_iota(jnp.int32, (n_nodes, te), 0)
    oh1 = (node_ids == idx1).astype(jnp.float32)               # (N, te) one-hot cols
    # t[n, e] = G[n, i1[e]] = rep[n] . rep[i1[e]]
    t = jnp.dot(gram_sc[...], oh1, preferred_element_type=jnp.float32)   # (N, te)
    # s[e] = rep[i0[e]] . rep[i1[e]]  (select row i0[e], reduce over sublanes)
    s = jnp.sum(jnp.where(node_ids == idx0, t, 0.0),
                axis=0, keepdims=True)                         # (1, te)

    # estimated weights: relu then small-threshold (poten rows sliced in wrapper;
    # padded / pos / neg rows are written too but never read — documented contract)
    w = jnp.maximum(s, 0.0)
    w_out_ref[...] = jnp.where(w < t_small, 0.0, w)

    # reconstruction-loss partial sums (masks zero out padding and non-members):
    #   row 0: sum m_neg * s^2,  row 1: sum m_pos * (s - 1)^2, accumulated in the
    #   resident (2, te) output block across grid steps.
    loss_ref[0:1, :] = loss_ref[0:1, :] + m_ref[0:1, :] * (s * s)
    loss_ref[1:2, :] = loss_ref[1:2, :] + m_ref[1:2, :] * ((s - 1.0) ** 2)


@functools.partial(jax.jit,
                   static_argnames=("poten_count", "denom", "t_small", "te"))
def estimate_adj_forward(A_norm, features, params, i0, i1, masks,
                         *, poten_count, denom, t_small, te):
    W1, b1, W2, b2 = params
    N, F = features.shape
    H = W1.shape[1]
    E_all = i0.shape[1]
    assert E_all % te == 0
    n_tiles = E_all // te

    a_bf = A_norm.astype(jnp.bfloat16)
    x_bf = features.astype(jnp.bfloat16)
    w1_bf = W1.astype(jnp.bfloat16)
    w2_bf = W2.astype(jnp.bfloat16)
    b1r = b1.reshape(1, H).astype(jnp.float32)
    b2r = b2.reshape(1, H).astype(jnp.float32)

    kernel = functools.partial(_estimate_adj_kernel, t_small=float(t_small))

    rep, w_all, loss_parts = pl.pallas_call(
        kernel,
        out_shape=(jax.ShapeDtypeStruct((N, H), jnp.float32),     # representations
                   jax.ShapeDtypeStruct((1, E_all), jnp.float32), # per-edge weights
                   jax.ShapeDtypeStruct((2, te), jnp.float32)),   # loss partials
        grid_spec=pltpu.PrefetchScalarGridSpec(
            num_scalar_prefetch=0,
            grid=(n_tiles,),
            in_specs=[
                pl.BlockSpec((N, N), lambda i: (0, 0)),   # A_norm (resident)
                pl.BlockSpec((N, F), lambda i: (0, 0)),   # features
                pl.BlockSpec((F, H), lambda i: (0, 0)),   # W1
                pl.BlockSpec((1, H), lambda i: (0, 0)),   # b1
                pl.BlockSpec((H, H), lambda i: (0, 0)),   # W2
                pl.BlockSpec((1, H), lambda i: (0, 0)),   # b2
                pl.BlockSpec((1, te), lambda i: (0, i)),  # edge src ids (lane-dense)
                pl.BlockSpec((1, te), lambda i: (0, i)),  # edge dst ids
                pl.BlockSpec((2, te), lambda i: (0, i)),  # [m_neg; m_pos]
            ],
            out_specs=[
                pl.BlockSpec((N, H), lambda i: (0, 0)),   # rep (written at step 0)
                pl.BlockSpec((1, te), lambda i: (0, i)),  # weights (lane-dense)
                pl.BlockSpec((2, te), lambda i: (0, 0)),  # loss accumulator
            ],
            scratch_shapes=[pltpu.VMEM((N, N), jnp.float32)],     # Gram matrix
        ),
        # Single sequential axis: scratch + resident accumulator carry across it.
        # (v7x second TensorCore idles; at this size the kernel is launch-bound.)
        compiler_params=pltpu.CompilerParams(
            dimension_semantics=("arbitrary",)),
    )(a_bf, x_bf, w1_bf, b1r, w2_bf, b2r, i0, i1, masks)

    sum_neg = jnp.sum(loss_parts[0])
    sum_pos = jnp.sum(loss_parts[1])
    rec_loss = (sum_neg + sum_pos) * N / denom
    estimated_weights = w_all[0, :poten_count]
    return rep, rec_loss, estimated_weights


# ------------------------------ plain-JAX / numpy glue ------------------------------

def gcn_norm_dense(edge_index, edge_weight, num_nodes):
    """Dense symmetric-normalized adjacency with self loops (GCNConv semantics)."""
    A = jnp.zeros((num_nodes, num_nodes), jnp.float32)
    A = A.at[edge_index[1], edge_index[0]].add(edge_weight)   # A[dst, src]
    A = A + jnp.eye(num_nodes, dtype=jnp.float32)              # self loops, weight 1
    deg = A.sum(axis=1)
    dinv = jnp.where(deg > 0, 1.0 / jnp.sqrt(deg), 0.0)
    return A * dinv[:, None] * dinv[None, :]


def get_poten_edge(edge_index, features, n_p):
    """Init-time potential-edge construction (python loops / top-k / sets)."""
    # TODO(synk): data-dependent python loop + set logic has no clean Pallas form;
    # kept as deterministic numpy init-time glue (matches torch semantics).
    n = features.shape[0]
    if n_p == 0:
        return edge_index
    fnorm = np.linalg.norm(features, axis=1)
    poten_edges = []
    for i in range(n):
        sim = features @ features[i] / (fnorm[i] * fnorm)
        topk = np.argsort(-sim)[:n_p]
        poten_edges.append([i, i])
        idx = set(int(t) for t in topk)
        idx.update(int(j) for j in edge_index[1, edge_index[0] == i])
        for j in sorted(idx):
            if j > i:
                poten_edges.append([i, j])
    arr = np.array(poten_edges, dtype=np.int64).T
    und = np.concatenate([arr, arr[::-1, :]], axis=1)   # to_undirected + coalesce
    und = np.unique(und, axis=1)
    return und.astype(np.int32)


# ----------------------------------- main -----------------------------------

if __name__ == "__main__":
    N, nfea, edge_hidden = 256, 64, 64
    n_p, n_n, t_small = 5, 4, 0.1
    TE = 256                                      # edges per lane-dense tile

    key = jax.random.PRNGKey(0)
    kf, kw1, kb1, kw2, kb2, kn0, kn1 = jax.random.split(key, 7)

    features = jax.random.normal(kf, (N, nfea), jnp.float32)
    features_np = np.asarray(features)

    # deterministic random undirected graph (no self loops)
    rng = np.random.default_rng(0)
    src = rng.integers(0, N, size=600)
    dst = rng.integers(0, N, size=600)
    keep = src != dst
    pairs = np.stack([src[keep], dst[keep]])
    und = np.concatenate([pairs, pairs[::-1]], axis=1)
    edge_index = np.unique(und, axis=1).astype(np.int32)      # (2, E), symmetric
    E = edge_index.shape[1]

    # deterministic GCN parameters
    W1 = jax.random.normal(kw1, (nfea, edge_hidden), jnp.float32) / np.sqrt(nfea)
    b1 = 0.1 * jax.random.normal(kb1, (edge_hidden,), jnp.float32)
    W2 = jax.random.normal(kw2, (edge_hidden, edge_hidden), jnp.float32) / np.sqrt(edge_hidden)
    b2 = 0.1 * jax.random.normal(kb2, (edge_hidden,), jnp.float32)
    params = (W1, b1, W2, b2)

    # __init__-time potential edges
    poten_edge_index = get_poten_edge(edge_index, features_np, n_p)   # (2, P)
    P = poten_edge_index.shape[1]

    # positive edges (src < dst), as in reconstruct_loss
    pos_sel = edge_index[:, edge_index[0] < edge_index[1]]
    n_pos = pos_sel.shape[1]

    # deterministic negative sampling: keep src < dst and non-edges
    num_neg = n_n * N
    adj_bool = np.zeros((N, N), dtype=bool)
    adj_bool[edge_index[0], edge_index[1]] = True
    r0 = np.asarray(jax.random.randint(kn0, (num_neg,), 0, N), np.int32)
    r1 = np.asarray(jax.random.randint(kn1, (num_neg,), 0, N), np.int32)
    keep_neg = (r0 < r1) & (~adj_bool[r0, r1])
    neg_sel = np.stack([r0[keep_neg], r1[keep_neg]])
    n_neg = neg_sel.shape[1]

    # concatenate [poten | pos | neg] edge lists; pad to a multiple of TE.
    # Padded rows gather node 0 — safe because their loss masks are zero and the
    # [:P] slice drops them from estimated_weights.
    i0 = np.concatenate([poten_edge_index[0], pos_sel[0], neg_sel[0]]).astype(np.int32)
    i1 = np.concatenate([poten_edge_index[1], pos_sel[1], neg_sel[1]]).astype(np.int32)
    total = i0.shape[0]
    E_all = max(TE, ((total + TE - 1) // TE) * TE)
    pad = E_all - total
    i0 = np.concatenate([i0, np.zeros(pad, np.int32)])
    i1 = np.concatenate([i1, np.zeros(pad, np.int32)])
    m_neg = np.zeros(E_all, np.float32)
    m_pos = np.zeros(E_all, np.float32)
    m_pos[P:P + n_pos] = 1.0
    m_neg[P + n_pos:P + n_pos + n_neg] = 1.0
    masks = np.stack([m_neg, m_pos]).astype(np.float32)        # (2, E_all)

    denom = float(n_neg + n_pos)

    # dense normalized adjacency with edge_weight = ones
    A_norm = gcn_norm_dense(jnp.asarray(edge_index), jnp.ones((E,), jnp.float32), N)

    rep, rec_loss, est_w = estimate_adj_forward(
        A_norm, features, params,
        jnp.asarray(i0).reshape(1, E_all),
        jnp.asarray(i1).reshape(1, E_all),
        jnp.asarray(masks),
        poten_count=P, denom=denom, t_small=t_small, te=TE)
    jax.block_until_ready((rep, rec_loss, est_w))

    # ---- sanity check 1: GCN chain vs pure-f32 reference (bf16 MXU inputs) ----
    h_ref = jnp.maximum(A_norm @ (features @ W1) + b1, 0.0)
    rep_ref = A_norm @ (h_ref @ W2) + b2
    np.testing.assert_allclose(np.asarray(rep), np.asarray(rep_ref),
                               rtol=5e-2, atol=5e-2)

    # ---- sanity check 2: estimated weights vs plain-JAX gather on kernel's rep ----
    rep_j = jnp.asarray(rep)
    sc = jnp.sum(rep_j[poten_edge_index[0]] * rep_j[poten_edge_index[1]], axis=1)
    w_ref = jnp.maximum(sc, 0.0)
    w_ref = jnp.where(w_ref < t_small, 0.0, w_ref)
    sc_np = np.asarray(jnp.maximum(sc, 0.0))
    band = np.abs(sc_np - t_small) > 5e-3         # exclude near-threshold ties
    np.testing.assert_allclose(np.asarray(est_w)[band], np.asarray(w_ref)[band],
                               rtol=5e-2, atol=5e-3)

    # ---- sanity check 3: reconstruction loss vs plain-JAX on kernel's rep ----
    neg_s = jnp.sum(rep_j[neg_sel[0]] * rep_j[neg_sel[1]], axis=1)
    pos_s = jnp.sum(rep_j[pos_sel[0]] * rep_j[pos_sel[1]], axis=1)
    rec_ref = (jnp.sum(neg_s ** 2) + jnp.sum((pos_s - 1.0) ** 2)) * N / denom
    np.testing.assert_allclose(float(rec_loss), float(rec_ref), rtol=2e-2)

    print("KERNEL_OK")
</pallas_src>

<mosaic_0001>
module attributes {stable_mosaic.version = 11 : i64} {
  func.func @_estimate_adj_kernel(%arg0: i32, %arg1: memref<256x256xbf16, #tpu.memory_space<vmem>>, %arg2: memref<256x64xbf16, #tpu.memory_space<vmem>>, %arg3: memref<64x64xbf16, #tpu.memory_space<vmem>>, %arg4: memref<1x64xf32, #tpu.memory_space<vmem>>, %arg5: memref<64x64xbf16, #tpu.memory_space<vmem>>, %arg6: memref<1x64xf32, #tpu.memory_space<vmem>>, %arg7: memref<1x256xi32, #tpu.memory_space<vmem>>, %arg8: memref<1x256xi32, #tpu.memory_space<vmem>>, %arg9: memref<2x256xf32, #tpu.memory_space<vmem>>, %arg10: memref<256x64xf32, #tpu.memory_space<vmem>>, %arg11: memref<1x256xf32, #tpu.memory_space<vmem>>, %arg12: memref<2x256xf32, #tpu.memory_space<vmem>>, %arg13: memref<256x256xf32, #tpu.memory_space<vmem>>) attributes {dimension_semantics = [#tpu.dimension_semantics<arbitrary>], iteration_bounds = array<i64: 14>, scalar_prefetch = 0 : i64, scratch_operands = 1 : i64, tpu.core_type = #tpu.core_type<tc>, window_params = [{pipeline_mode = #tpu.pipeline_mode<synchronous>, transform_indices = @transform_0, window_bounds = array<i64: 256, 256>}, {pipeline_mode = #tpu.pipeline_mode<synchronous>, transform_indices = @transform_1, window_bounds = array<i64: 256, 64>}, {pipeline_mode = #tpu.pipeline_mode<synchronous>, transform_indices = @transform_2, window_bounds = array<i64: 64, 64>}, {pipeline_mode = #tpu.pipeline_mode<synchronous>, transform_indices = @transform_3, window_bounds = array<i64: 1, 64>}, {pipeline_mode = #tpu.pipeline_mode<synchronous>, transform_indices = @transform_4, window_bounds = array<i64: 64, 64>}, {pipeline_mode = #tpu.pipeline_mode<synchronous>, transform_indices = @transform_5, window_bounds = array<i64: 1, 64>}, {transform_indices = @transform_6, window_bounds = array<i64: 1, 256>}, {transform_indices = @transform_7, window_bounds = array<i64: 1, 256>}, {transform_indices = @transform_8, window_bounds = array<i64: 2, 256>}, {pipeline_mode = #tpu.pipeline_mode<synchronous>, transform_indices = @transform_9, window_bounds = array<i64: 256, 64>}, {transform_indices = @transform_10, window_bounds = array<i64: 1, 256>}, {pipeline_mode = #tpu.pipeline_mode<synchronous>, transform_indices = @transform_11, window_bounds = array<i64: 2, 256>}]} {
    %c0_i32 = arith.constant 0 : i32
    %0 = arith.cmpi eq, %arg0, %c0_i32 : i32
    %1 = arith.extui %0 : i1 to i32
    %c0_i32_0 = arith.constant 0 : i32
    %2 = arith.cmpi ne, %1, %c0_i32_0 : i32
    scf.if %2 {
      %c0_25 = arith.constant 0 : index
      %c0_26 = arith.constant 0 : index
      %39 = vector.load %arg2[%c0_25, %c0_26] : memref<256x64xbf16, #tpu.memory_space<vmem>>, vector<256x64xbf16>
      %c0_27 = arith.constant 0 : index
      %c0_28 = arith.constant 0 : index
      %40 = vector.load %arg3[%c0_27, %c0_28] : memref<64x64xbf16, #tpu.memory_space<vmem>>, vector<64x64xbf16>
      %cst_29 = arith.constant dense<0.000000e+00> : vector<256x64xf32>
      %41 = tpu.matmul %39, %40, %cst_29 {dimension_numbers = #tpu.dot_dimension_numbers<[1], [0], [0], [1], [0, 0, 1, 1], [], []>} : vector<256x64xbf16>, vector<64x64xbf16>, vector<256x64xf32> -> vector<256x64xf32>
      %c0_30 = arith.constant 0 : index
      %c0_31 = arith.constant 0 : index
      %42 = vector.load %arg1[%c0_30, %c0_31] : memref<256x256xbf16, #tpu.memory_space<vmem>>, vector<256x256xbf16>
      %43 = arith.truncf %41 : vector<256x64xf32> to vector<256x64xbf16>
      %cst_32 = arith.constant dense<0.000000e+00> : vector<256x64xf32>
      %44 = tpu.matmul %42, %43, %cst_32 {dimension_numbers = #tpu.dot_dimension_numbers<[1], [0], [0], [1], [0, 0, 1, 1], [], []>} : vector<256x256xbf16>, vector<256x64xbf16>, vector<256x64xf32> -> vector<256x64xf32>
      %c0_33 = arith.constant 0 : index
      %c0_34 = arith.constant 0 : index
      %45 = vector.load %arg4[%c0_33, %c0_34] : memref<1x64xf32, #tpu.memory_space<vmem>>, vector<1x64xf32>
      %46 = vector.broadcast %45 : vector<1x64xf32> to vector<256x64xf32>
      %47 = arith.addf %44, %46 : vector<256x64xf32>
      %cst_35 = arith.constant 0.000000e+00 : f32
      %48 = vector.broadcast %cst_35 : f32 to vector<256x64xf32>
      %49 = arith.maximumf %47, %48 : vector<256x64xf32>
      %50 = arith.truncf %49 : vector<256x64xf32> to vector<256x64xbf16>
      %c0_36 = arith.constant 0 : index
      %c0_37 = arith.constant 0 : index
      %51 = vector.load %arg5[%c0_36, %c0_37] : memref<64x64xbf16, #tpu.memory_space<vmem>>, vector<64x64xbf16>
      %cst_38 = arith.constant dense<0.000000e+00> : vector<256x64xf32>
      %52 = tpu.matmul %50, %51, %cst_38 {dimension_numbers = #tpu.dot_dimension_numbers<[1], [0], [0], [1], [0, 0, 1, 1], [], []>} : vector<256x64xbf16>, vector<64x64xbf16>, vector<256x64xf32> -> vector<256x64xf32>
      %c0_39 = arith.constant 0 : index
      %c0_40 = arith.constant 0 : index
      %53 = vector.load %arg1[%c0_39, %c0_40] : memref<256x256xbf16, #tpu.memory_space<vmem>>, vector<256x256xbf16>
      %54 = arith.truncf %52 : vector<256x64xf32> to vector<256x64xbf16>
      %cst_41 = arith.constant dense<0.000000e+00> : vector<256x64xf32>
      %55 = tpu.matmul %53, %54, %cst_41 {dimension_numbers = #tpu.dot_dimension_numbers<[1], [0], [0], [1], [0, 0, 1, 1], [], []>} : vector<256x256xbf16>, vector<256x64xbf16>, vector<256x64xf32> -> vector<256x64xf32>
      %c0_42 = arith.constant 0 : index
      %c0_43 = arith.constant 0 : index
      %56 = vector.load %arg6[%c0_42, %c0_43] : memref<1x64xf32, #tpu.memory_space<vmem>>, vector<1x64xf32>
      %57 = vector.broadcast %56 : vector<1x64xf32> to vector<256x64xf32>
      %58 = arith.addf %55, %57 : vector<256x64xf32>
      %c0_44 = arith.constant 0 : index
      %c0_45 = arith.constant 0 : index
      %59 = vector.load %arg10[%c0_44, %c0_45] : memref<256x64xf32, #tpu.memory_space<vmem>>, vector<256x64xf32>
      tpu.vector_store %arg10[%c0_44, %c0_45], %58 {strides = array<i32>} : memref<256x64xf32, #tpu.memory_space<vmem>>, vector<256x64xf32>,
      %cst_46 = arith.constant dense<0.000000e+00> : vector<256x256xf32>
      %60 = tpu.matmul %58, %58, %cst_46 {dimension_numbers = #tpu.dot_dimension_numbers<[1], [1], [0], [0], [0, 0, 1, 0], [], []>} : vector<256x64xf32>, vector<256x64xf32>, vector<256x256xf32> -> vector<256x256xf32>
      %c0_47 = arith.constant 0 : index
      %c0_48 = arith.constant 0 : index
      %61 = vector.load %arg13[%c0_47, %c0_48] : memref<256x256xf32, #tpu.memory_space<vmem>>, vector<256x256xf32>
      tpu.vector_store %arg13[%c0_47, %c0_48], %60 {strides = array<i32>} : memref<256x256xf32, #tpu.memory_space<vmem>>, vector<256x256xf32>,
      %cst_49 = arith.constant 0.000000e+00 : f32
      %62 = vector.broadcast %cst_49 : f32 to vector<2x256xf32>
      %c0_50 = arith.constant 0 : index
      %c0_51 = arith.constant 0 : index
      %63 = vector.load %arg12[%c0_50, %c0_51] : memref<2x256xf32, #tpu.memory_space<vmem>>, vector<2x256xf32>
      tpu.vector_store %arg12[%c0_50, %c0_51], %62 {strides = array<i32>} : memref<2x256xf32, #tpu.memory_space<vmem>>, vector<2x256xf32>,
    } else {
    }
    %c0 = arith.constant 0 : index
    %c0_1 = arith.constant 0 : index
    %3 = vector.load %arg7[%c0, %c0_1] : memref<1x256xi32, #tpu.memory_space<vmem>>, vector<1x256xi32>
    %c0_2 = arith.constant 0 : index
    %c0_3 = arith.constant 0 : index
    %4 = vector.load %arg8[%c0_2, %c0_3] : memref<1x256xi32, #tpu.memory_space<vmem>>, vector<1x256xi32>
    %5 = tpu.iota {dimensions = array<i32: 0>} : vector<256x256xi32>
    %6 = vector.broadcast %4 : vector<1x256xi32> to vector<256x256xi32>
    %7 = arith.cmpi eq, %5, %6 : vector<256x256xi32>
    %8 = arith.extui %7 : vector<256x256xi1> to vector<256x256xi32>
    %9 = arith.sitofp %8 : vector<256x256xi32> to vector<256x256xf32>
    %c0_4 = arith.constant 0 : index
    %c0_5 = arith.constant 0 : index
    %10 = vector.load %arg13[%c0_4, %c0_5] : memref<256x256xf32, #tpu.memory_space<vmem>>, vector<256x256xf32>
    %cst = arith.constant dense<0.000000e+00> : vector<256x256xf32>
    %11 = tpu.matmul %10, %9, %cst {dimension_numbers = #tpu.dot_dimension_numbers<[1], [0], [0], [1], [0, 0, 1, 1], [], []>} : vector<256x256xf32>, vector<256x256xf32>, vector<256x256xf32> -> vector<256x256xf32>
    %12 = vector.broadcast %3 : vector<1x256xi32> to vector<256x256xi32>
    %13 = arith.cmpi eq, %5, %12 : vector<256x256xi32>
    %cst_6 = arith.constant 0.000000e+00 : f32
    %14 = vector.broadcast %cst_6 : f32 to vector<256x256xf32>
    %15 = arith.select %13, %11, %14 : vector<256x256xi1>, vector<256x256xf32>
    %cst_7 = arith.constant dense<0.000000e+00> : vector<256xf32>
    %16 = vector.multi_reduction <add>, %15, %cst_7 [0] : vector<256x256xf32> to vector<256xf32>
    %17 = vector.shape_cast %16 : vector<256xf32> to vector<1x256xf32>
    %cst_8 = arith.constant 0.000000e+00 : f32
    %18 = vector.broadcast %cst_8 : f32 to vector<1x256xf32>
    %19 = arith.maximumf %17, %18 : vector<1x256xf32>
    %cst_9 = arith.constant 1.000000e-01 : f32
    %20 = vector.broadcast %cst_9 : f32 to vector<1x256xf32>
    %21 = arith.cmpf olt, %19, %20 : vector<1x256xf32>
    %cst_10 = arith.constant 0.000000e+00 : f32
    %22 = vector.broadcast %cst_10 : f32 to vector<1x256xf32>
    %23 = arith.select %21, %22, %19 : vector<1x256xi1>, vector<1x256xf32>
    %c0_11 = arith.constant 0 : index
    %c0_12 = arith.constant 0 : index
    %24 = vector.load %arg11[%c0_11, %c0_12] : memref<1x256xf32, #tpu.memory_space<vmem>>, vector<1x256xf32>
    tpu.vector_store %arg11[%c0_11, %c0_12], %23 {strides = array<i32>} : memref<1x256xf32, #tpu.memory_space<vmem>>, vector<1x256xf32>,
    %c0_13 = arith.constant 0 : index
    %c0_14 = arith.constant 0 : index
    %25 = vector.load %arg12[%c0_13, %c0_14] : memref<2x256xf32, #tpu.memory_space<vmem>>, vector<1x256xf32>
    %c0_15 = arith.constant 0 : index
    %c0_16 = arith.constant 0 : index
    %26 = vector.load %arg9[%c0_15, %c0_16] : memref<2x256xf32, #tpu.memory_space<vmem>>, vector<1x256xf32>
    %27 = arith.mulf %17, %17 : vector<1x256xf32>
    %28 = arith.mulf %26, %27 : vector<1x256xf32>
    %29 = arith.addf %25, %28 : vector<1x256xf32>
    %c0_17 = arith.constant 0 : index
    %c0_18 = arith.constant 0 : index
    %30 = vector.load %arg12[%c0_17, %c0_18] : memref<2x256xf32, #tpu.memory_space<vmem>>, vector<1x256xf32>
    tpu.vector_store %arg12[%c0_17, %c0_18], %29 {strides = array<i32>} : memref<2x256xf32, #tpu.memory_space<vmem>>, vector<1x256xf32>,
    %c1 = arith.constant 1 : index
    %c0_19 = arith.constant 0 : index
    %31 = vector.load %arg12[%c1, %c0_19] : memref<2x256xf32, #tpu.memory_space<vmem>>, vector<1x256xf32>
    %c1_20 = arith.constant 1 : index
    %c0_21 = arith.constant 0 : index
    %32 = vector.load %arg9[%c1_20, %c0_21] : memref<2x256xf32, #tpu.memory_space<vmem>>, vector<1x256xf32>
    %cst_22 = arith.constant 1.000000e+00 : f32
    %33 = vector.broadcast %cst_22 : f32 to vector<1x256xf32>
    %34 = arith.subf %17, %33 : vector<1x256xf32>
    %35 = arith.mulf %34, %34 : vector<1x256xf32>
    %36 = arith.mulf %32, %35 : vector<1x256xf32>
    %37 = arith.addf %31, %36 : vector<1x256xf32>
    %c1_23 = arith.constant 1 : index
    %c0_24 = arith.constant 0 : index
    %38 = vector.load %arg12[%c1_23, %c0_24] : memref<2x256xf32, #tpu.memory_space<vmem>>, vector<1x256xf32>
    tpu.vector_store %arg12[%c1_23, %c0_24], %37 {strides = array<i32>} : memref<2x256xf32, #tpu.memory_space<vmem>>, vector<1x256xf32>,
    return
  }
  func.func @transform_0(%arg0: i32) -> (i32, i32) {
    %c0_i32 = arith.constant 0 : i32
    %c0_i32_0 = arith.constant 0 : i32
    %c0_i32_1 = arith.constant 0 : i32
    return %c0_i32, %c0_i32_0 : i32, i32
  }
  func.func @transform_1(%arg0: i32) -> (i32, i32) {
    %c0_i32 = arith.constant 0 : i32
    %c0_i32_0 = arith.constant 0 : i32
    %c0_i32_1 = arith.constant 0 : i32
    return %c0_i32, %c0_i32_0 : i32, i32
  }
  func.func @transform_2(%arg0: i32) -> (i32, i32) {
    %c0_i32 = arith.constant 0 : i32
    %c0_i32_0 = arith.constant 0 : i32
    %c0_i32_1 = arith.constant 0 : i32
    return %c0_i32, %c0_i32_0 : i32, i32
  }
  func.func @transform_3(%arg0: i32) -> (i32, i32) {
    %c0_i32 = arith.constant 0 : i32
    %c0_i32_0 = arith.constant 0 : i32
    %c0_i32_1 = arith.constant 0 : i32
    return %c0_i32, %c0_i32_0 : i32, i32
  }
  func.func @transform_4(%arg0: i32) -> (i32, i32) {
    %c0_i32 = arith.constant 0 : i32
    %c0_i32_0 = arith.constant 0 : i32
    %c0_i32_1 = arith.constant 0 : i32
    return %c0_i32, %c0_i32_0 : i32, i32
  }
  func.func @transform_5(%arg0: i32) -> (i32, i32) {
    %c0_i32 = arith.constant 0 : i32
    %c0_i32_0 = arith.constant 0 : i32
    %c0_i32_1 = arith.constant 0 : i32
    return %c0_i32, %c0_i32_0 : i32, i32
  }
  func.func @transform_6(%arg0: i32) -> (i32, i32) {
    %c0_i32 = arith.constant 0 : i32
    %c0_i32_0 = arith.constant 0 : i32
    return %c0_i32, %arg0 : i32, i32
  }
  func.func @transform_7(%arg0: i32) -> (i32, i32) {
    %c0_i32 = arith.constant 0 : i32
    %c0_i32_0 = arith.constant 0 : i32
    return %c0_i32, %arg0 : i32, i32
  }
  func.func @transform_8(%arg0: i32) -> (i32, i32) {
    %c0_i32 = arith.constant 0 : i32
    %c0_i32_0 = arith.constant 0 : i32
    return %c0_i32, %arg0 : i32, i32
  }
  func.func @transform_9(%arg0: i32) -> (i32, i32) {
    %c0_i32 = arith.constant 0 : i32
    %c0_i32_0 = arith.constant 0 : i32
    %c0_i32_1 = arith.constant 0 : i32
    return %c0_i32, %c0_i32_0 : i32, i32
  }
  func.func @transform_10(%arg0: i32) -> (i32, i32) {
    %c0_i32 = arith.constant 0 : i32
    %c0_i32_0 = arith.constant 0 : i32
    return %c0_i32, %arg0 : i32, i32
  }
  func.func @transform_11(%arg0: i32) -> (i32, i32) {
    %c0_i32 = arith.constant 0 : i32
    %c0_i32_0 = arith.constant 0 : i32
    %c0_i32_1 = arith.constant 0 : i32
    return %c0_i32, %c0_i32_0 : i32, i32
  }
}

</mosaic_0001>

<llo_original>
// kernel: estimate_adj_forward.1
$region0: #{estimate_adj_forward.1}
  #allocation0 [shape = 'u32[]', space=smem, size = 0x4, offset = 0x4, fixed_abs, tag = 'smem constant byte address 0x4 - core index']
  #allocation1 [shape = 'u32[72,128]{1,0:T(1,128)}', space=vmem, size = 0x9000, scoped, tag = 'internal scratch']
  #allocation2 [shape = 'f32[256,256]{1,0:T(8,128)}', space=vmem, size = 0x40000, scoped, tag = 'scratch operand']
  %s0 = inlined_call_operand.vmem [shape: bf16[256,256], index: 0, kind: input, shape index: {}]
  %s1 = inlined_call_operand.vmem [shape: bf16[256,64], index: 1, kind: input, shape index: {}]
  %s2 = inlined_call_operand.vmem [shape: bf16[64,64], index: 2, kind: input, shape index: {}]
  %s3 = inlined_call_operand.vmem [shape: f32[1,64], index: 3, kind: input, shape index: {}]
  %s4 = inlined_call_operand.vmem [shape: bf16[64,64], index: 4, kind: input, shape index: {}]
  %s5 = inlined_call_operand.vmem [shape: f32[1,64], index: 5, kind: input, shape index: {}]
  %s6 = inlined_call_operand.vmem [shape: s32[1,3584], index: 6, kind: input, shape index: {}]
  %s7 = inlined_call_operand.vmem [shape: s32[1,3584], index: 7, kind: input, shape index: {}]
  %s8 = inlined_call_operand.vmem [shape: f32[2,3584], index: 8, kind: input, shape index: {}]
  %s9 = inlined_call_operand.vmem [shape: f32[256,64], index: 9, kind: output, shape index: {0}]
  %s10 = inlined_call_operand.vmem [shape: f32[1,3584], index: 10, kind: output, shape index: {1}]
  %s11 = inlined_call_operand.vmem [shape: f32[2,256], index: 11, kind: output, shape index: {2}]
  %12 = xla_tuple %s9, %s10, %s11
  %s13 = sld [smem:[#allocation0]]
  $region89: #{estimate_adj_forward.1} parent=0
    _
  %s15 = ssub.s32 1, %s13
  %s16 = scalar_select 0, %s15, %s13
  loop: start=0, step=1, limit=16
  $region2: #{estimate_adj_forward.1} parent=0 // loop_pre_header
    _
  $region3: #{estimate_adj_forward.1} parent=0 // loop_header
    %s18 = sphi 0, %s22
    %p19 = scmp.ge.s32.totalorder %s18, 16
    %s26 = sphi 0, %s26
    %s28 = sphi 0, %s26
    %s29 = sphi 0, %s28
    %s43 = sphi 0, %s29
    %s47 = sphi 0, %s47
    %s49 = sphi 0, %s47
    %s50 = sphi 0, %s49
    %s64 = sphi 0, %s50
    %s68 = sphi 0, %s68
    %s70 = sphi 0, %s68
    %s71 = sphi 0, %s70
    %s85 = sphi 0, %s71
    %s89 = sphi 0, %s89
    %s91 = sphi 0, %s89
    %s92 = sphi 0, %s91
    %s106 = sphi 0, %s92
    %s110 = sphi 0, %s110
    %s112 = sphi 0, %s110
    %s113 = sphi 0, %s112
    %s127 = sphi 0, %s113
    %s131 = sphi 0, %s131
    %s133 = sphi 0, %s131
    %s134 = sphi 0, %s133
    %s148 = sphi 0, %s134
    %s154 = sphi 0, %s156
    %s157 = sphi 0, %s154
    %s158 = sphi 0, %s157
    %s174 = sphi 0, %s158
    %s180 = sphi 0, %s182
    %s183 = sphi 0, %s180
    %s184 = sphi 0, %s183
    %s200 = sphi 0, %s184
    %s206 = sphi 0, %s208
    %s209 = sphi 0, %s206
    %s210 = sphi 0, %s209
    %s226 = sphi 0, %s210
    %s230 = sphi 0, %s230
    %s232 = sphi 0, %s230
    %s233 = sphi 0, %s232
    %s247 = sphi 0, %s233
    %s253 = sphi 0, %s255
    %s256 = sphi 0, %s253
    %s257 = sphi 0, %s256
    %s273 = sphi 0, %s257
    %s277 = sphi 0, %s277
    %s279 = sphi 0, %s277
    %s280 = sphi 0, %s279
    %s294 = sphi 0, %s280
  $region4: #{estimate_adj_forward.1} parent=0 // loop_header_branch
    %21 = sbr.rel (%p19) target = $region8
  $region5: #{estimate_adj_forward.1} parent=0 // loop_body
    %s23 = ssub.s32 %s18, 1
    %s24 = ssub.s32 %s18, 2
    %s25 = sadd.s32 %s18, 1
    %s27 = sadd.s32 %s26, 1
    %p30 = scmp.eq.s32.totalorder %s18, 13
    %p31 = scmp.ne.s32.totalorder %s26, %s28
    %p32 = scmp.eq.s32.totalorder %s18, 0
    %p33 = por %p31, %p32
    %p34 = scmp.ne.s32.totalorder %s26, %s28
    %p35 = scmp.eq.s32.totalorder %s23, 13
    %p36 = por %p34, %p35
    %p37 = scmp.ne.s32.totalorder %s28, %s29
    %p38 = scmp.eq.s32.totalorder %s23, 0
    %p39 = por %p37, %p38
    %p40 = scmp.ne.s32.totalorder %s28, %s29
    %p41 = scmp.eq.s32.totalorder %s24, 13
    %p42 = por %p40, %p41
    %p44 = scmp.ne.s32.totalorder %s29, %s43
    %p45 = scmp.eq.s32.totalorder %s24, 0
    %p46 = por %p44, %p45
    %s48 = sadd.s32 %s47, 1
    %p51 = scmp.eq.s32.totalorder %s18, 13
    %p52 = scmp.ne.s32.totalorder %s47, %s49
    %p53 = scmp.eq.s32.totalorder %s18, 0
    %p54 = por %p52, %p53
    %p55 = scmp.ne.s32.totalorder %s47, %s49
    %p56 = scmp.eq.s32.totalorder %s23, 13
    %p57 = por %p55, %p56
    %p58 = scmp.ne.s32.totalorder %s49, %s50
    %p59 = scmp.eq.s32.totalorder %s23, 0
    %p60 = por %p58, %p59
    %p61 = scmp.ne.s32.totalorder %s49, %s50
    %p62 = scmp.eq.s32.totalorder %s24, 13
    %p63 = por %p61, %p62
    %p65 = scmp.ne.s32.totalorder %s50, %s64
    %p66 = scmp.eq.s32.totalorder %s24, 0
    %p67 = por %p65, %p66
    %s69 = sadd.s32 %s68, 1
    %p72 = scmp.eq.s32.totalorder %s18, 13
    %p73 = scmp.ne.s32.totalorder %s68, %s70
    %p74 = scmp.eq.s32.totalorder %s18, 0
    %p75 = por %p73, %p74
    %p76 = scmp.ne.s32.totalorder %s68, %s70
    %p77 = scmp.eq.s32.totalorder %s23, 13
    %p78 = por %p76, %p77
    %p79 = scmp.ne.s32.totalorder %s70, %s71
    %p80 = scmp.eq.s32.totalorder %s23, 0
    %p81 = por %p79, %p80
    %p82 = scmp.ne.s32.totalorder %s70, %s71
    %p83 = scmp.eq.s32.totalorder %s24, 13
    %p84 = por %p82, %p83
    %p86 = scmp.ne.s32.totalorder %s71, %s85
    %p87 = scmp.eq.s32.totalorder %s24, 0
    %p88 = por %p86, %p87
    %s90 = sadd.s32 %s89, 1
    %p93 = scmp.eq.s32.totalorder %s18, 13
    %p94 = scmp.ne.s32.totalorder %s89, %s91
    %p95 = scmp.eq.s32.totalorder %s18, 0
    %p96 = por %p94, %p95
    %p97 = scmp.ne.s32.totalorder %s89, %s91
    %p98 = scmp.eq.s32.totalorder %s23, 13
    %p99 = por %p97, %p98
    %p100 = scmp.ne.s32.totalorder %s91, %s92
    %p101 = scmp.eq.s32.totalorder %s23, 0
    %p102 = por %p100, %p101
    %p103 = scmp.ne.s32.totalorder %s91, %s92
    %p104 = scmp.eq.s32.totalorder %s24, 13
    %p105 = por %p103, %p104
    %p107 = scmp.ne.s32.totalorder %s92, %s106
    %p108 = scmp.eq.s32.totalorder %s24, 0
    %p109 = por %p107, %p108
    %s111 = sadd.s32 %s110, 1
    %p114 = scmp.eq.s32.totalorder %s18, 13
    %p115 = scmp.ne.s32.totalorder %s110, %s112
    %p116 = scmp.eq.s32.totalorder %s18, 0
    %p117 = por %p115, %p116
    %p118 = scmp.ne.s32.totalorder %s110, %s112
    %p119 = scmp.eq.s32.totalorder %s23, 13
    %p120 = por %p118, %p119
    %p121 = scmp.ne.s32.totalorder %s112, %s113
    %p122 = scmp.eq.s32.totalorder %s23, 0
    %p123 = por %p121, %p122
    %p124 = scmp.ne.s32.totalorder %s112, %s113
    %p125 = scmp.eq.s32.totalorder %s24, 13
    %p126 = por %p124, %p125
    %p128 = scmp.ne.s32.totalorder %s113, %s127
    %p129 = scmp.eq.s32.totalorder %s24, 0
    %p130 = por %p128, %p129
    %s132 = sadd.s32 %s131, 1
    %p135 = scmp.eq.s32.totalorder %s18, 13
    %p136 = scmp.ne.s32.totalorder %s131, %s133
    %p137 = scmp.eq.s32.totalorder %s18, 0
    %p138 = por %p136, %p137
    %p139 = scmp.ne.s32.totalorder %s131, %s133
    %p140 = scmp.eq.s32.totalorder %s23, 13
    %p141 = por %p139, %p140
    %p142 = scmp.ne.s32.totalorder %s133, %s134
    %p143 = scmp.eq.s32.totalorder %s23, 0
    %p144 = por %p142, %p143
    %p145 = scmp.ne.s32.totalorder %s133, %s134
    %p146 = scmp.eq.s32.totalorder %s24, 13
    %p147 = por %p145, %p146
    %p149 = scmp.ne.s32.totalorder %s134, %s148
    %p150 = scmp.eq.s32.totalorder %s24, 0
    %p151 = por %p149, %p150
    %s152 = ssub.s32 %s18, %s25
    %p153 = scmp.eq.s32.totalorder %s152, 0
    %s155 = sadd.s32 %s154, 1
    %s156 = scalar_select %p153, %s154, %s155
    %p159 = pneg %p153
    %p160 = scmp.eq.s32.totalorder %s18, 13
    %p161 = por %p159, %p160
    %p162 = scmp.ne.s32.totalorder %s154, %s157
    %p163 = scmp.eq.s32.totalorder %s18, 0
    %p164 = por %p162, %p163
    %p165 = scmp.ne.s32.totalorder %s154, %s157
    %p166 = scmp.eq.s32.totalorder %s23, 13
    %p167 = por %p165, %p166
    %p168 = scmp.ne.s32.totalorder %s157, %s158
    %p169 = scmp.eq.s32.totalorder %s23, 0
    %p170 = por %p168, %p169
    %p171 = scmp.ne.s32.totalorder %s157, %s158
    %p172 = scmp.eq.s32.totalorder %s24, 13
    %p173 = por %p171, %p172
    %p175 = scmp.ne.s32.totalorder %s158, %s174
    %p176 = scmp.eq.s32.totalorder %s24, 0
    %p177 = por %p175, %p176
    %s178 = ssub.s32 %s18, %s25
    %p179 = scmp.eq.s32.totalorder %s178, 0
    %s181 = sadd.s32 %s180, 1
    %s182 = scalar_select %p179, %s180, %s181
    %p185 = pneg %p179
    %p186 = scmp.eq.s32.totalorder %s18, 13
    %p187 = por %p185, %p186
    %p188 = scmp.ne.s32.totalorder %s180, %s183
    %p189 = scmp.eq.s32.totalorder %s18, 0
    %p190 = por %p188, %p189
    %p191 = scmp.ne.s32.totalorder %s180, %s183
    %p192 = scmp.eq.s32.totalorder %s23, 13
    %p193 = por %p191, %p192
    %p194 = scmp.ne.s32.totalorder %s183, %s184
    %p195 = scmp.eq.s32.totalorder %s23, 0
    %p196 = por %p194, %p195
    %p197 = scmp.ne.s32.totalorder %s183, %s184
    %p198 = scmp.eq.s32.totalorder %s24, 13
    %p199 = por %p197, %p198
    %p201 = scmp.ne.s32.totalorder %s184, %s200
    %p202 = scmp.eq.s32.totalorder %s24, 0
    %p203 = por %p201, %p202
    %s204 = ssub.s32 %s18, %s25
    %p205 = scmp.eq.s32.totalorder %s204, 0
    %s207 = sadd.s32 %s206, 1
    %s208 = scalar_select %p205, %s206, %s207
    %p211 = pneg %p205
    %p212 = scmp.eq.s32.totalorder %s18, 13
    %p213 = por %p211, %p212
    %p214 = scmp.ne.s32.totalorder %s206, %s209
    %p215 = scmp.eq.s32.totalorder %s18, 0
    %p216 = por %p214, %p215
    %p217 = scmp.ne.s32.totalorder %s206, %s209
    %p218 = scmp.eq.s32.totalorder %s23, 13
    %p219 = por %p217, %p218
    %p220 = scmp.ne.s32.totalorder %s209, %s210
    %p221 = scmp.eq.s32.totalorder %s23, 0
    %p222 = por %p220, %p221
    %p223 = scmp.ne.s32.totalorder %s209, %s210
    %p224 = scmp.eq.s32.totalorder %s24, 13
    %p225 = por %p223, %p224
    %p227 = scmp.ne.s32.totalorder %s210, %s226
    %p228 = scmp.eq.s32.totalorder %s24, 0
    %p229 = por %p227, %p228
    %s231 = sadd.s32 %s230, 1
    %p234 = scmp.eq.s32.totalorder %s18, 13
    %p235 = scmp.ne.s32.totalorder %s230, %s232
    %p236 = scmp.eq.s32.totalorder %s18, 0
    %p237 = por %p235, %p236
    %p238 = scmp.ne.s32.totalorder %s230, %s232
    %p239 = scmp.eq.s32.totalorder %s23, 13
    %p240 = por %p238, %p239
    %p241 = scmp.ne.s32.totalorder %s232, %s233
    %p242 = scmp.eq.s32.totalorder %s23, 0
    %p243 = por %p241, %p242
    %p244 = scmp.ne.s32.totalorder %s232, %s233
    %p245 = scmp.eq.s32.totalorder %s24, 13
    %p246 = por %p244, %p245
    %p248 = scmp.ne.s32.totalorder %s233, %s247
    %p249 = scmp.eq.s32.totalorder %s24, 0
    %p250 = por %p248, %p249
    %s251 = ssub.s32 %s18, %s25
    %p252 = scmp.eq.s32.totalorder %s251, 0
    %s254 = sadd.s32 %s253, 1
    %s255 = scalar_select %p252, %s253, %s254
    %p258 = pneg %p252
    %p259 = scmp.eq.s32.totalorder %s18, 13
    %p260 = por %p258, %p259
    %p261 = scmp.ne.s32.totalorder %s253, %s256
    %p262 = scmp.eq.s32.totalorder %s18, 0
    %p263 = por %p261, %p262
    %p264 = scmp.ne.s32.totalorder %s253, %s256
    %p265 = scmp.eq.s32.totalorder %s23, 13
    %p266 = por %p264, %p265
    %p267 = scmp.ne.s32.totalorder %s256, %s257
    %p268 = scmp.eq.s32.totalorder %s23, 0
    %p269 = por %p267, %p268
    %p270 = scmp.ne.s32.totalorder %s256, %s257
    %p271 = scmp.eq.s32.totalorder %s24, 13
    %p272 = por %p270, %p271
    %p274 = scmp.ne.s32.totalorder %s257, %s273
    %p275 = scmp.eq.s32.totalorder %s24, 0
    %p276 = por %p274, %p275
    %s278 = sadd.s32 %s277, 1
    %p281 = scmp.eq.s32.totalorder %s18, 13
    %p282 = scmp.ne.s32.totalorder %s277, %s279
    %p283 = scmp.eq.s32.totalorder %s18, 0
    %p284 = por %p282, %p283
    %p285 = scmp.ne.s32.totalorder %s277, %s279
    %p286 = scmp.eq.s32.totalorder %s23, 13
    %p287 = por %p285, %p286
    %p288 = scmp.ne.s32.totalorder %s279, %s280
    %p289 = scmp.eq.s32.totalorder %s23, 0
    %p290 = por %p288, %p289
    %p291 = scmp.ne.s32.totalorder %s279, %s280
    %p292 = scmp.eq.s32.totalorder %s24, 13
    %p293 = por %p291, %p292
    %p295 = scmp.ne.s32.totalorder %s280, %s294
    %p296 = scmp.eq.s32.totalorder %s24, 0
    %p297 = por %p295, %p296
    %p298 = scmp.le.s32.totalorder 1, %s18
    %p299 = scmp.lt.s32.totalorder %s18, 15
    %p300 = pnand %p298, %p299
    %p301 = pneg %p300
    // Predicated region
    $region9: #{estimate_adj_forward.1} parent=5 // pred_check
      _
    $region10: #{estimate_adj_forward.1} parent=5 // pred_check_branch
      %303 = sbr.rel (%p300) target = $region12
    $region11: #{estimate_adj_forward.1} parent=5 // pred_region
      %s304 = ssub.s32 %s18, 1
      // Predicated region
      $region13: #{estimate_adj_forward.1} parent=11 // pred_check
        %p305 = pneg %p39
      $region14: #{estimate_adj_forward.1} parent=11 // pred_check_branch
        %307 = sbr.rel (%p305) target = $region16
      $region15: #{estimate_adj_forward.1} parent=11 // pred_region
        _
      $region16: #{estimate_adj_forward.1} parent=11 // pred_fallthru
        _
      // Predicated region
      $region17: #{estimate_adj_forward.1} parent=11 // pred_check
        %p308 = pneg %p60
      $region18: #{estimate_adj_forward.1} parent=11 // pred_check_branch
        %310 = sbr.rel (%p308) target = $region20
      $region19: #{estimate_adj_forward.1} parent=11 // pred_region
        _
      $region20: #{estimate_adj_forward.1} parent=11 // pred_fallthru
        _
      // Predicated region
      $region21: #{estimate_adj_forward.1} parent=11 // pred_check
        %p311 = pneg %p81
      $region22: #{estimate_adj_forward.1} parent=11 // pred_check_branch
        %313 = sbr.rel (%p311) target = $region24
      $region23: #{estimate_adj_forward.1} parent=11 // pred_region
        _
      $region24: #{estimate_adj_forward.1} parent=11 // pred_fallthru
        _
      // Predicated region
      $region25: #{estimate_adj_forward.1} parent=11 // pred_check
        %p314 = pneg %p102
      $region26: #{estimate_adj_forward.1} parent=11 // pred_check_branch
        %316 = sbr.rel (%p314) target = $region28
      $region27: #{estimate_adj_forward.1} parent=11 // pred_region
        _
      $region28: #{estimate_adj_forward.1} parent=11 // pred_fallthru
        _
      // Predicated region
      $region29: #{estimate_adj_forward.1} parent=11 // pred_check
        %p317 = pneg %p123
      $region30: #{estimate_adj_forward.1} parent=11 // pred_check_branch
        %319 = sbr.rel (%p317) target = $region32
      $region31: #{estimate_adj_forward.1} parent=11 // pred_region
        _
      $region32: #{estimate_adj_forward.1} parent=11 // pred_fallthru
        _
      // Predicated region
      $region33: #{estimate_adj_forward.1} parent=11 // pred_check
        %p320 = pneg %p144
      $region34: #{estimate_adj_forward.1} parent=11 // pred_check_branch
        %322 = sbr.rel (%p320) target = $region36
      $region35: #{estimate_adj_forward.1} parent=11 // pred_region
        _
      $region36: #{estimate_adj_forward.1} parent=11 // pred_fallthru
        _
    $region12: #{estimate_adj_forward.1} parent=5 // pred_fallthru
      _
    %p323 = scmp.lt.s32.totalorder %s18, 14
    // Predicated region
    $region37: #{estimate_adj_forward.1} parent=5 // pred_check
      %p324 = pneg %p323
    $region38: #{estimate_adj_forward.1} parent=5 // pred_check_branch
      %326 = sbr.rel (%p324) target = $region40
    $region39: #{estimate_adj_forward.1} parent=5 // pred_region
      // Predicated region
      $region41: #{estimate_adj_forward.1} parent=39 // pred_check
        %p327 = pneg %p164
      $region42: #{estimate_adj_forward.1} parent=39 // pred_check_branch
        %329 = sbr.rel (%p327) target = $region44
      $region43: #{estimate_adj_forward.1} parent=39 // pred_region
        %s330 = smul.u32 2, %s18
        %p331 = scmp.lt.s32.totalorder %s330, 27
        %s332 = scalar_select %p331, %s330, 27
        %s333 = scalar_lea.vmem %s6, %s332
        %s334 = smul.u32 2, %s18
      $region44: #{estimate_adj_forward.1} parent=39 // pred_fallthru
        _
      // Predicated region
      $region45: #{estimate_adj_forward.1} parent=39 // pred_check
        %p335 = pneg %p190
      $region46: #{estimate_adj_forward.1} parent=39 // pred_check_branch
        %337 = sbr.rel (%p335) target = $region48
      $region47: #{estimate_adj_forward.1} parent=39 // pred_region
        %s338 = smul.u32 2, %s18
        %p339 = scmp.lt.s32.totalorder %s338, 27
        %s340 = scalar_select %p339, %s338, 27
        %s341 = scalar_lea.vmem %s7, %s340
        %s342 = smul.u32 2, %s18
      $region48: #{estimate_adj_forward.1} parent=39 // pred_fallthru
        _
      // Predicated region
      $region49: #{estimate_adj_forward.1} parent=39 // pred_check
        %p343 = pneg %p216
      $region50: #{estimate_adj_forward.1} parent=39 // pred_check_branch
        %345 = sbr.rel (%p343) target = $region52
      $region51: #{estimate_adj_forward.1} parent=39 // pred_region
        %s346 = smul.u32 2, %s18
        %p347 = scmp.lt.s32.totalorder %s346, 27
        %s348 = scalar_select %p347, %s346, 27
        %s349 = smul.addr %s348, 2
        %s350 = scalar_lea.vmem %s8, %s349
        %s351 = smul.u32 2, %s18
      $region52: #{estimate_adj_forward.1} parent=39 // pred_fallthru
        _
    $region40: #{estimate_adj_forward.1} parent=5 // pred_fallthru
      _
    %p352 = scmp.le.s32.totalorder 1, %s18
    %p353 = scmp.lt.s32.totalorder %s18, 15
    %p354 = pnand %p352, %p353
    %p355 = pneg %p354
    // Predicated region
    $region53: #{estimate_adj_forward.1} parent=5 // pred_check
      _
    $region54: #{estimate_adj_forward.1} parent=5 // pred_check_branch
      %357 = sbr.rel (%p354) target = $region56
    $region55: #{estimate_adj_forward.1} parent=5 // pred_region
      %s358 = ssub.s32 %s18, 1
      %p359 = pneg %p39
      %p360 = pneg %p36
      %p361 = pneg %p60
      %p362 = pneg %p57
      %p363 = pneg %p81
      %p364 = pneg %p78
      %p365 = pneg %p102
      %p366 = pneg %p99
      %p367 = pneg %p123
      %p368 = pneg %p120
      %p369 = pneg %p144
      %p370 = pneg %p141
      %s371 = smul.u32 2, %s23
      %p372 = scmp.lt.s32.totalorder %s371, 27
      %s373 = scalar_select %p372, %s371, 27
      %s374 = scalar_lea.vmem %s6, %s373
      %p375 = pneg %p170
      %p376 = pneg %p167
      %s377 = smul.u32 2, %s23
      %p378 = scmp.lt.s32.totalorder %s377, 27
      %s379 = scalar_select %p378, %s377, 27
      %s380 = scalar_lea.vmem %s7, %s379
      %p381 = pneg %p196
      %p382 = pneg %p193
      %s383 = smul.u32 2, %s23
      %p384 = scmp.lt.s32.totalorder %s383, 27
      %s385 = scalar_select %p384, %s383, 27
      %s386 = smul.addr %s385, 2
      %s387 = scalar_lea.vmem %s8, %s386
      %p388 = pneg %p222
      %p389 = pneg %p219
      %p390 = pneg %p243
      %p391 = pneg %p240
      %p392 = pneg %p269
      %p393 = pneg %p266
      %s394 = smul.u32 2, %s23
      %p395 = scmp.lt.s32.totalorder %s394, 27
      %s396 = scalar_select %p395, %s394, 27
      %s397 = scalar_lea.vmem %s10, %s396
      %p398 = pneg %p290
      %p399 = pneg %p287
      %s400 = smul.u32 2, %s23
      %p401 = scmp.lt.s32.totalorder %s400, 27
      %s402 = scalar_select %p401, %s400, 27
      %s403 = scalar_lea.vmem %s6, %s402
      %s404 = smul.u32 2, %s23
      %s405 = smul.u32 2, %s23
      %p406 = scmp.lt.s32.totalorder %s405, 27
      %s407 = scalar_select %p406, %s405, 27
      %s408 = scalar_lea.vmem %s7, %s407
      %s409 = smul.u32 2, %s23
      %s410 = smul.u32 2, %s23
      %p411 = scmp.lt.s32.totalorder %s410, 27
      %s412 = scalar_select %p411, %s410, 27
      %s413 = smul.addr %s412, 2
      %s414 = scalar_lea.vmem %s8, %s413
      %s415 = smul.u32 2, %s23
      %s416 = smul.u32 2, %s23
      %p417 = scmp.lt.s32.totalorder %s416, 27
      %s418 = scalar_select %p417, %s416, 27
      %s419 = scalar_lea.vmem %s10, %s418
      %s420 = smul.u32 2, %s23
      %p422 = scmp.eq.s32.totalorder %s23, 0
      // Predicated region
      $region57: #{estimate_adj_forward.1} parent=55 // pred_check
        %p423 = pneg %p422
      $region58: #{estimate_adj_forward.1} parent=55 // pred_check_branch
        %425 = sbr.rel (%p423) target = $region60
      $region59: #{estimate_adj_forward.1} parent=55 // pred_region
        %v426 = vld [vmem:[%s1] sm:$0xf]
        %v427 = vld [vmem:[%s1 + $0x4] sm:$0xf]
        %v428 = vld [vmem:[%s1 + $0x8] sm:$0xf]
        %v429 = vld [vmem:[%s1 + $0xc] sm:$0xf]
        %v430 = vld [vmem:[%s1 + $0x10] sm:$0xf]
        %v431 = vld [vmem:[%s1 + $0x14] sm:$0xf]
        %v432 = vld [vmem:[%s1 + $0x18] sm:$0xf]
        %v433 = vld [vmem:[%s1 + $0x1c] sm:$0xf]
        %v434 = vld [vmem:[%s1 + $0x20] sm:$0xf]
        %v435 = vld [vmem:[%s1 + $0x24] sm:$0xf]
        %v436 = vld [vmem:[%s1 + $0x28] sm:$0xf]
        %v437 = vld [vmem:[%s1 + $0x2c] sm:$0xf]
        %v438 = vld [vmem:[%s1 + $0x30] sm:$0xf]
        %v439 = vld [vmem:[%s1 + $0x34] sm:$0xf]
        %v440 = vld [vmem:[%s1 + $0x38] sm:$0xf]
        %v441 = vld [vmem:[%s1 + $0x3c] sm:$0xf]
        %v442 = vld [vmem:[%s1 + $0x40] sm:$0xf]
        %v443 = vld [vmem:[%s1 + $0x44] sm:$0xf]
        %v444 = vld [vmem:[%s1 + $0x48] sm:$0xf]
        %v445 = vld [vmem:[%s1 + $0x4c] sm:$0xf]
        %v446 = vld [vmem:[%s1 + $0x50] sm:$0xf]
        %v447 = vld [vmem:[%s1 + $0x54] sm:$0xf]
        %v448 = vld [vmem:[%s1 + $0x58] sm:$0xf]
        %v449 = vld [vmem:[%s1 + $0x5c] sm:$0xf]
        %v450 = vld [vmem:[%s1 + $0x60] sm:$0xf]
        %v451 = vld [vmem:[%s1 + $0x64] sm:$0xf]
        %v452 = vld [vmem:[%s1 + $0x68] sm:$0xf]
        %v453 = vld [vmem:[%s1 + $0x6c] sm:$0xf]
        %v454 = vld [vmem:[%s1 + $0x70] sm:$0xf]
        %v455 = vld [vmem:[%s1 + $0x74] sm:$0xf]
        %v456 = vld [vmem:[%s1 + $0x78] sm:$0xf]
        %v457 = vld [vmem:[%s1 + $0x7c] sm:$0xf]
        %v458 = vld [vmem:[%s2] sm:$0xf]
        %v459 = vld [vmem:[%s2 + $0x4] sm:$0xf]
        %v460 = vld [vmem:[%s2 + $0x8] sm:$0xf]
        %v461 = vld [vmem:[%s2 + $0xc] sm:$0xf]
        %v462 = vld [vmem:[%s2 + $0x10] sm:$0xf]
        %v463 = vld [vmem:[%s2 + $0x14] sm:$0xf]
        %v464 = vld [vmem:[%s2 + $0x18] sm:$0xf]
        %v465 = vld [vmem:[%s2 + $0x1c] sm:$0xf]
        %v498 = vunpack.c.l.b16 %v426
        %v499 = vunpack.c.l.b16 %v427
        %v500 = vunpack.c.l.b16 %v428
        %v501 = vunpack.c.l.b16 %v429
        %v502 = vunpack.c.l.b16 %v430
        %v503 = vunpack.c.l.b16 %v431
        %v504 = vunpack.c.l.b16 %v432
        %v505 = vunpack.c.l.b16 %v433
        %v506 = vunpack.c.l.b16 %v434
        %v507 = vunpack.c.l.b16 %v435
        %v508 = vunpack.c.l.b16 %v436
        %v509 = vunpack.c.l.b16 %v437
        %v510 = vunpack.c.l.b16 %v438
        %v511 = vunpack.c.l.b16 %v439
        %v512 = vunpack.c.l.b16 %v440
        %v513 = vunpack.c.l.b16 %v441
        %v514 = vunpack.c.l.b16 %v442
        %v515 = vunpack.c.l.b16 %v443
        %v516 = vunpack.c.l.b16 %v444
        %v517 = vunpack.c.l.b16 %v445
        %v518 = vunpack.c.l.b16 %v446
        %v519 = vunpack.c.l.b16 %v447
        %v520 = vunpack.c.l.b16 %v448
        %v521 = vunpack.c.l.b16 %v449
        %v522 = vunpack.c.l.b16 %v450
        %v523 = vunpack.c.l.b16 %v451
        %v524 = vunpack.c.l.b16 %v452
        %v525 = vunpack.c.l.b16 %v453
        %v526 = vunpack.c.l.b16 %v454
        %v527 = vunpack.c.l.b16 %v455
        %v528 = vunpack.c.l.b16 %v456
        %v529 = vunpack.c.l.b16 %v457
        %v530 = vpack.c.b16 %v499, %v498
        %v531 = vpack.c.b16 %v501, %v500
        %v532 = vpack.c.b16 %v503, %v502
        %v533 = vpack.c.b16 %v505, %v504
        %v534 = vpack.c.b16 %v507, %v506
        %v535 = vpack.c.b16 %v509, %v508
        %v536 = vpack.c.b16 %v511, %v510
        %v537 = vpack.c.b16 %v513, %v512
        %v538 = vpack.c.b16 %v515, %v514
        %v539 = vpack.c.b16 %v517, %v516
        %v540 = vpack.c.b16 %v519, %v518
        %v541 = vpack.c.b16 %v521, %v520
        %v542 = vpack.c.b16 %v523, %v522
        %v543 = vpack.c.b16 %v525, %v524
        %v544 = vpack.c.b16 %v527, %v526
        %v545 = vpack.c.b16 %v529, %v528
        %v554 = vunpack.c.l.b16 %v458
        %v555 = vunpack.c.l.b16 %v459
        %v556 = vunpack.c.l.b16 %v460
        %v557 = vunpack.c.l.b16 %v461
        %v558 = vunpack.c.l.b16 %v462
        %v559 = vunpack.c.l.b16 %v463
        %v560 = vunpack.c.l.b16 %v464
        %v561 = vunpack.c.l.b16 %v465
        %v562 = vpack.c.b16 %v555, %v554
        %v563 = vpack.c.b16 %v557, %v556
        %v564 = vpack.c.b16 %v559, %v558
        %v565 = vpack.c.b16 %v561, %v560
        %vm570 = vcmask 523264
        %v572 = vsel %vm570, %v530, 0
        %v575 = vsel %vm570, %v531, 0
        %v578 = vsel %vm570, %v532, 0
        %v581 = vsel %vm570, %v533, 0
        %v584 = vsel %vm570, %v534, 0
        %v587 = vsel %vm570, %v535, 0
        %v590 = vsel %vm570, %v536, 0
        %v593 = vsel %vm570, %v537, 0
        %v596 = vsel %vm570, %v538, 0
        %v599 = vsel %vm570, %v539, 0
        %v602 = vsel %vm570, %v540, 0
        %v605 = vsel %vm570, %v541, 0
        %v608 = vsel %vm570, %v542, 0
        %v611 = vsel %vm570, %v543, 0
        %v614 = vsel %vm570, %v544, 0
        %v617 = vsel %vm570, %v545, 0
        %619 = vmatpush.bf16.msra.mxu0 0
        %620 = vmatpush.bf16.msra.mxu0 0
        %621 = vmatpush.bf16.msra.mxu0 0
        %622 = vmatpush.bf16.msra.mxu0 0
        %623 = vmatpush.bf16.msra.mxu0 %v565
        %624 = vmatpush.bf16.msra.mxu0 %v564
        %625 = vmatpush.bf16.msra.mxu0 %v563
        %626 = vmatpush.bf16.msra.mxu0 %v562
        %627 = vmatmul.bf16.gmra.mxu0 %v572
        %v628 = vpop.f32.mrf.mxu0
        %v629 = vadd.f32 0.0, %v628
        %v630 = vpop.f32.mrf.mxu0
        %v631 = vadd.f32 0.0, %v630
        %632 = vmatmul.bf16.gmra.mxu0 %v575
        %v633 = vpop.f32.mrf.mxu0
        %v634 = vadd.f32 0.0, %v633
        %v635 = vpop.f32.mrf.mxu0
        %v636 = vadd.f32 0.0, %v635
        %637 = vmatmul.bf16.gmra.mxu0 %v578
        %v638 = vpop.f32.mrf.mxu0
        %v639 = vadd.f32 0.0, %v638
        %v640 = vpop.f32.mrf.mxu0
        %v641 = vadd.f32 0.0, %v640
        %642 = vmatmul.bf16.gmra.mxu0 %v581
        %v643 = vpop.f32.mrf.mxu0
        %v644 = vadd.f32 0.0, %v643
        %v645 = vpop.f32.mrf.mxu0
        %v646 = vadd.f32 0.0, %v645
        %647 = vmatmul.bf16.gmra.mxu0 %v584
        %v648 = vpop.f32.mrf.mxu0
        %v649 = vadd.f32 0.0, %v648
        %v650 = vpop.f32.mrf.mxu0
        %v651 = vadd.f32 0.0, %v650
        %652 = vmatmul.bf16.gmra.mxu0 %v587
        %v653 = vpop.f32.mrf.mxu0
        %v654 = vadd.f32 0.0, %v653
        %v655 = vpop.f32.mrf.mxu0
        %v656 = vadd.f32 0.0, %v655
        %657 = vmatmul.bf16.gmra.mxu0 %v590
        %v658 = vpop.f32.mrf.mxu0
        %v659 = vadd.f32 0.0, %v658
        %v660 = vpop.f32.mrf.mxu0
        %v661 = vadd.f32 0.0, %v660
        %662 = vmatmul.bf16.gmra.mxu0 %v593
        %v663 = vpop.f32.mrf.mxu0
        %v664 = vadd.f32 0.0, %v663
        %v665 = vpop.f32.mrf.mxu0
        %v666 = vadd.f32 0.0, %v665
        %667 = vmatmul.bf16.gmra.mxu0 %v596
        %v668 = vpop.f32.mrf.mxu0
        %v669 = vadd.f32 0.0, %v668
        %v670 = vpop.f32.mrf.mxu0
        %v671 = vadd.f32 0.0, %v670
        %672 = vmatmul.bf16.gmra.mxu0 %v599
        %v673 = vpop.f32.mrf.mxu0
        %v674 = vadd.f32 0.0, %v673
        %v675 = vpop.f32.mrf.mxu0
        %v676 = vadd.f32 0.0, %v675
        %677 = vmatmul.bf16.gmra.mxu0 %v602
        %v678 = vpop.f32.mrf.mxu0
        %v679 = vadd.f32 0.0, %v678
        %v680 = vpop.f32.mrf.mxu0
        %v681 = vadd.f32 0.0, %v680
        %682 = vmatmul.bf16.gmra.mxu0 %v605
        %v683 = vpop.f32.mrf.mxu0
        %v684 = vadd.f32 0.0, %v683
        %v685 = vpop.f32.mrf.mxu0
        %v686 = vadd.f32 0.0, %v685
        %687 = vmatmul.bf16.gmra.mxu0 %v608
        %v688 = vpop.f32.mrf.mxu0
        %v689 = vadd.f32 0.0, %v688
        %v690 = vpop.f32.mrf.mxu0
        %v691 = vadd.f32 0.0, %v690
        %692 = vmatmul.bf16.gmra.mxu0 %v611
        %v693 = vpop.f32.mrf.mxu0
        %v694 = vadd.f32 0.0, %v693
        %v695 = vpop.f32.mrf.mxu0
        %v696 = vadd.f32 0.0, %v695
        %697 = vmatmul.bf16.gmra.mxu0 %v614
        %v698 = vpop.f32.mrf.mxu0
        %v699 = vadd.f32 0.0, %v698
        %v700 = vpop.f32.mrf.mxu0
        %v701 = vadd.f32 0.0, %v700
        %702 = vmatmul.bf16.gmra.mxu0 %v617
        %v703 = vpop.f32.mrf.mxu0
        %v704 = vadd.f32 0.0, %v703
        %v705 = vpop.f32.mrf.mxu0
        %v706 = vadd.f32 0.0, %v705
        %707 = vdwg.mxu0
        %v708 = vld [vmem:[%s0] sm:$0xff]
        %v709 = vld [vmem:[%s0 + $0x8] sm:$0xff]
        %v710 = vld [vmem:[%s0 + $0x10] sm:$0xff]
        %v711 = vld [vmem:[%s0 + $0x18] sm:$0xff]
        %v712 = vld [vmem:[%s0 + $0x20] sm:$0xff]
        %v713 = vld [vmem:[%s0 + $0x28] sm:$0xff]
        %v714 = vld [vmem:[%s0 + $0x30] sm:$0xff]
        %v715 = vld [vmem:[%s0 + $0x38] sm:$0xff]
        %v716 = vld [vmem:[%s0 + $0x40] sm:$0xff]
        %v717 = vld [vmem:[%s0 + $0x48] sm:$0xff]
        %v718 = vld [vmem:[%s0 + $0x50] sm:$0xff]
        %v719 = vld [vmem:[%s0 + $0x58] sm:$0xff]
        %v720 = vld [vmem:[%s0 + $0x60] sm:$0xff]
        %v721 = vld [vmem:[%s0 + $0x68] sm:$0xff]
        %v722 = vld [vmem:[%s0 + $0x70] sm:$0xff]
        %v723 = vld [vmem:[%s0 + $0x78] sm:$0xff]
        %v724 = vld [vmem:[%s0 + $0x80] sm:$0xff]
        %v725 = vld [vmem:[%s0 + $0x88] sm:$0xff]
        %v726 = vld [vmem:[%s0 + $0x90] sm:$0xff]
        %v727 = vld [vmem:[%s0 + $0x98] sm:$0xff]
        %v728 = vld [vmem:[%s0 + $0xa0] sm:$0xff]
        %v729 = vld [vmem:[%s0 + $0xa8] sm:$0xff]
        %v730 = vld [vmem:[%s0 + $0xb0] sm:$0xff]
        %v731 = vld [vmem:[%s0 + $0xb8] sm:$0xff]
        %v732 = vld [vmem:[%s0 + $0xc0] sm:$0xff]
        %v733 = vld [vmem:[%s0 + $0xc8] sm:$0xff]
        %v734 = vld [vmem:[%s0 + $0xd0] sm:$0xff]
        %v735 = vld [vmem:[%s0 + $0xd8] sm:$0xff]
        %v736 = vld [vmem:[%s0 + $0xe0] sm:$0xff]
        %v737 = vld [vmem:[%s0 + $0xe8] sm:$0xff]
        %v738 = vld [vmem:[%s0 + $0xf0] sm:$0xff]
        %v739 = vld [vmem:[%s0 + $0xf8] sm:$0xff]
        %v740 = vpack.c.bf16 %v631, %v629
        %v741 = vpack.c.bf16 %v636, %v634
        %v742 = vpack.c.bf16 %v641, %v639
        %v743 = vpack.c.bf16 %v646, %v644
        %v744 = vpack.c.bf16 %v651, %v649
        %v745 = vpack.c.bf16 %v656, %v654
        %v746 = vpack.c.bf16 %v661, %v659
        %v747 = vpack.c.bf16 %v666, %v664
        %v748 = vpack.c.bf16 %v671, %v669
        %v749 = vpack.c.bf16 %v676, %v674
        %v750 = vpack.c.bf16 %v681, %v679
        %v751 = vpack.c.bf16 %v686, %v684
        %v752 = vpack.c.bf16 %v691, %v689
        %v753 = vpack.c.bf16 %v696, %v694
        %v754 = vpack.c.bf16 %v701, %v699
        %v755 = vpack.c.bf16 %v706, %v704
        %v756 = vld [vmem:[%s3] sm:$0x1]
        %v758 = vperm.slane %v756, 0
        %v792 = vunpack.c.l.b16 %v708
        %v793 = vunpack.c.h.b16 %v708
        %v794 = vunpack.c.l.b16 %v709
        %v795 = vunpack.c.h.b16 %v709
        %v796 = vunpack.c.l.b16 %v710
        %v797 = vunpack.c.h.b16 %v710
        %v798 = vunpack.c.l.b16 %v711
        %v799 = vunpack.c.h.b16 %v711
        %v800 = vunpack.c.l.b16 %v712
        %v801 = vunpack.c.h.b16 %v712
        %v802 = vunpack.c.l.b16 %v713
        %v803 = vunpack.c.h.b16 %v713
        %v804 = vunpack.c.l.b16 %v714
        %v805 = vunpack.c.h.b16 %v714
        %v806 = vunpack.c.l.b16 %v715
        %v807 = vunpack.c.h.b16 %v715
        %v808 = vunpack.c.l.b16 %v716
        %v809 = vunpack.c.h.b16 %v716
        %v810 = vunpack.c.l.b16 %v717
        %v811 = vunpack.c.h.b16 %v717
        %v812 = vunpack.c.l.b16 %v718
        %v813 = vunpack.c.h.b16 %v718
        %v814 = vunpack.c.l.b16 %v719
        %v815 = vunpack.c.h.b16 %v719
        %v816 = vunpack.c.l.b16 %v720
        %v817 = vunpack.c.h.b16 %v720
        %v818 = vunpack.c.l.b16 %v721
        %v819 = vunpack.c.h.b16 %v721
        %v820 = vunpack.c.l.b16 %v722
        %v821 = vunpack.c.h.b16 %v722
        %v822 = vunpack.c.l.b16 %v723
        %v823 = vunpack.c.h.b16 %v723
        %v824 = vunpack.c.l.b16 %v724
        %v825 = vunpack.c.h.b16 %v724
        %v826 = vunpack.c.l.b16 %v725
        %v827 = vunpack.c.h.b16 %v725
        %v828 = vunpack.c.l.b16 %v726
        %v829 = vunpack.c.h.b16 %v726
        %v830 = vunpack.c.l.b16 %v727
        %v831 = vunpack.c.h.b16 %v727
        %v832 = vunpack.c.l.b16 %v728
        %v833 = vunpack.c.h.b16 %v728
        %v834 = vunpack.c.l.b16 %v729
        %v835 = vunpack.c.h.b16 %v729
        %v836 = vunpack.c.l.b16 %v730
        %v837 = vunpack.c.h.b16 %v730
        %v838 = vunpack.c.l.b16 %v731
        %v839 = vunpack.c.h.b16 %v731
        %v840 = vunpack.c.l.b16 %v732
        %v841 = vunpack.c.h.b16 %v732
        %v842 = vunpack.c.l.b16 %v733
        %v843 = vunpack.c.h.b16 %v733
        %v844 = vunpack.c.l.b16 %v734
        %v845 = vunpack.c.h.b16 %v734
        %v846 = vunpack.c.l.b16 %v735
        %v847 = vunpack.c.h.b16 %v735
        %v848 = vunpack.c.l.b16 %v736
        %v849 = vunpack.c.h.b16 %v736
        %v850 = vunpack.c.l.b16 %v737
        %v851 = vunpack.c.h.b16 %v737
        %v852 = vunpack.c.l.b16 %v738
        %v853 = vunpack.c.h.b16 %v738
        %v854 = vunpack.c.l.b16 %v739
        %v855 = vunpack.c.h.b16 %v739
        %v856 = vpack.c.b16 %v794, %v792
        %v857 = vpack.c.b16 %v795, %v793
        %v858 = vpack.c.b16 %v798, %v796
        %v859 = vpack.c.b16 %v799, %v797
        %v860 = vpack.c.b16 %v802, %v800
        %v861 = vpack.c.b16 %v803, %v801
        %v862 = vpack.c.b16 %v806, %v804
        %v863 = vpack.c.b16 %v807, %v805
        %v864 = vpack.c.b16 %v810, %v808
        %v865 = vpack.c.b16 %v811, %v809
        %v866 = vpack.c.b16 %v814, %v812
        %v867 = vpack.c.b16 %v815, %v813
        %v868 = vpack.c.b16 %v818, %v816
        %v869 = vpack.c.b16 %v819, %v817
        %v870 = vpack.c.b16 %v822, %v820
        %v871 = vpack.c.b16 %v823, %v821
        %v872 = vpack.c.b16 %v826, %v824
        %v873 = vpack.c.b16 %v827, %v825
        %v874 = vpack.c.b16 %v830, %v828
        %v875 = vpack.c.b16 %v831, %v829
        %v876 = vpack.c.b16 %v834, %v832
        %v877 = vpack.c.b16 %v835, %v833
        %v878 = vpack.c.b16 %v838, %v836
        %v879 = vpack.c.b16 %v839, %v837
        %v880 = vpack.c.b16 %v842, %v840
        %v881 = vpack.c.b16 %v843, %v841
        %v882 = vpack.c.b16 %v846, %v844
        %v883 = vpack.c.b16 %v847, %v845
        %v884 = vpack.c.b16 %v850, %v848
        %v885 = vpack.c.b16 %v851, %v849
        %v886 = vpack.c.b16 %v854, %v852
        %v887 = vpack.c.b16 %v855, %v853
        %920 = vmatpush.bf16.msra.mxu0 %v747
        %921 = vmatpush.bf16.msra.mxu0 %v746
        %922 = vmatpush.bf16.msra.mxu0 %v745
        %923 = vmatpush.bf16.msra.mxu0 %v744
        %924 = vmatpush.bf16.msra.mxu0 %v743
        %925 = vmatpush.bf16.msra.mxu0 %v742
        %926 = vmatpush.bf16.msra.mxu0 %v741
        %927 = vmatpush.bf16.msra.mxu0 %v740
        %928 = vmatmul.bf16.gmra.mxu0 %v856
        %v929 = vpop.f32.mrf.mxu0
        %v930 = vadd.f32 %v758, %v929
        %v931 = vpop.f32.mrf.mxu0
        %v932 = vadd.f32 %v758, %v931
        %933 = vmatmul.bf16.gmra.mxu0 %v858
        %v934 = vpop.f32.mrf.mxu0
        %v935 = vadd.f32 %v758, %v934
        %v936 = vpop.f32.mrf.mxu0
        %v937 = vadd.f32 %v758, %v936
        %938 = vmatmul.bf16.gmra.mxu0 %v860
        %v939 = vpop.f32.mrf.mxu0
        %v940 = vadd.f32 %v758, %v939
        %v941 = vpop.f32.mrf.mxu0
        %v942 = vadd.f32 %v758, %v941
        %943 = vmatmul.bf16.gmra.mxu0 %v862
        %v944 = vpop.f32.mrf.mxu0
        %v945 = vadd.f32 %v758, %v944
        %v946 = vpop.f32.mrf.mxu0
        %v947 = vadd.f32 %v758, %v946
        %948 = vmatmul.bf16.gmra.mxu0 %v864
        %v949 = vpop.f32.mrf.mxu0
        %v950 = vadd.f32 %v758, %v949
        %v951 = vpop.f32.mrf.mxu0
        %v952 = vadd.f32 %v758, %v951
        %953 = vmatmul.bf16.gmra.mxu0 %v866
        %v954 = vpop.f32.mrf.mxu0
        %v955 = vadd.f32 %v758, %v954
        %v956 = vpop.f32.mrf.mxu0
        %v957 = vadd.f32 %v758, %v956
        %958 = vmatmul.bf16.gmra.mxu0 %v868
        %v959 = vpop.f32.mrf.mxu0
        %v960 = vadd.f32 %v758, %v959
        %v961 = vpop.f32.mrf.mxu0
        %v962 = vadd.f32 %v758, %v961
        %963 = vmatmul.bf16.gmra.mxu0 %v870
        %v964 = vpop.f32.mrf.mxu0
        %v965 = vadd.f32 %v758, %v964
        %v966 = vpop.f32.mrf.mxu0
        %v967 = vadd.f32 %v758, %v966
        %968 = vmatmul.bf16.gmra.mxu0 %v872
        %v969 = vpop.f32.mrf.mxu0
        %v970 = vadd.f32 %v758, %v969
        %v971 = vpop.f32.mrf.mxu0
        %v972 = vadd.f32 %v758, %v971
        %973 = vmatmul.bf16.gmra.mxu0 %v874
        %v974 = vpop.f32.mrf.mxu0
        %v975 = vadd.f32 %v758, %v974
        %v976 = vpop.f32.mrf.mxu0
        %v977 = vadd.f32 %v758, %v976
        %978 = vmatmul.bf16.gmra.mxu0 %v876
        %v979 = vpop.f32.mrf.mxu0
        %v980 = vadd.f32 %v758, %v979
        %v981 = vpop.f32.mrf.mxu0
        %v982 = vadd.f32 %v758, %v981
        %983 = vmatmul.bf16.gmra.mxu0 %v878
        %v984 = vpop.f32.mrf.mxu0
        %v985 = vadd.f32 %v758, %v984
        %v986 = vpop.f32.mrf.mxu0
        %v987 = vadd.f32 %v758, %v986
        %988 = vmatmul.bf16.gmra.mxu0 %v880
        %v989 = vpop.f32.mrf.mxu0
        %v990 = vadd.f32 %v758, %v989
        %v991 = vpop.f32.mrf.mxu0
        %v992 = vadd.f32 %v758, %v991
        %993 = vmatmul.bf16.gmra.mxu0 %v882
        %v994 = vpop.f32.mrf.mxu0
        %v995 = vadd.f32 %v758, %v994
        %v996 = vpop.f32.mrf.mxu0
        %v997 = vadd.f32 %v758, %v996
        %998 = vmatmul.bf16.gmra.mxu0 %v884
        %v999 = vpop.f32.mrf.mxu0
        %v1000 = vadd.f32 %v758, %v999
        %v1001 = vpop.f32.mrf.mxu0
        %v1002 = vadd.f32 %v758, %v1001
        %1003 = vmatmul.bf16.gmra.mxu0 %v886
        %v1004 = vpop.f32.mrf.mxu0
        %v1005 = vadd.f32 %v758, %v1004
        %v1006 = vpop.f32.mrf.mxu0
        %v1007 = vadd.f32 %v758, %v1006
        %1008 = vdwg.mxu0
        %1009 = vmatpush.bf16.msra.mxu0 %v755
        %1010 = vmatpush.bf16.msra.mxu0 %v754
        %1011 = vmatpush.bf16.msra.mxu0 %v753
        %1012 = vmatpush.bf16.msra.mxu0 %v752
        %1013 = vmatpush.bf16.msra.mxu0 %v751
        %1014 = vmatpush.bf16.msra.mxu0 %v750
        %1015 = vmatpush.bf16.msra.mxu0 %v749
        %1016 = vmatpush.bf16.msra.mxu0 %v748
        %1017 = vmatmul.bf16.gmra.mxu0 %v857
        %v1018 = vpop.f32.mrf.mxu0
        %v1019 = vadd.f32 %v930, %v1018
        %v1020 = vpop.f32.mrf.mxu0
        %v1021 = vadd.f32 %v932, %v1020
        %1022 = vmatmul.bf16.gmra.mxu0 %v859
        %v1023 = vpop.f32.mrf.mxu0
        %v1024 = vadd.f32 %v935, %v1023
        %v1025 = vpop.f32.mrf.mxu0
        %v1026 = vadd.f32 %v937, %v1025
        %1027 = vmatmul.bf16.gmra.mxu0 %v861
        %v1028 = vpop.f32.mrf.mxu0
        %v1029 = vadd.f32 %v940, %v1028
        %v1030 = vpop.f32.mrf.mxu0
        %v1031 = vadd.f32 %v942, %v1030
        %1032 = vmatmul.bf16.gmra.mxu0 %v863
        %v1033 = vpop.f32.mrf.mxu0
        %v1034 = vadd.f32 %v945, %v1033
        %v1035 = vpop.f32.mrf.mxu0
        %v1036 = vadd.f32 %v947, %v1035
        %1037 = vmatmul.bf16.gmra.mxu0 %v865
        %v1038 = vpop.f32.mrf.mxu0
        %v1039 = vadd.f32 %v950, %v1038
        %v1040 = vpop.f32.mrf.mxu0
        %v1041 = vadd.f32 %v952, %v1040
        %1042 = vmatmul.bf16.gmra.mxu0 %v867
        %v1043 = vpop.f32.mrf.mxu0
        %v1044 = vadd.f32 %v955, %v1043
        %v1045 = vpop.f32.mrf.mxu0
        %v1046 = vadd.f32 %v957, %v1045
        %1047 = vmatmul.bf16.gmra.mxu0 %v869
        %v1048 = vpop.f32.mrf.mxu0
        %v1049 = vadd.f32 %v960, %v1048
        %v1050 = vpop.f32.mrf.mxu0
        %v1051 = vadd.f32 %v962, %v1050
        %1052 = vmatmul.bf16.gmra.mxu0 %v871
        %v1053 = vpop.f32.mrf.mxu0
        %v1054 = vadd.f32 %v965, %v1053
        %v1055 = vpop.f32.mrf.mxu0
        %v1056 = vadd.f32 %v967, %v1055
        %1057 = vmatmul.bf16.gmra.mxu0 %v873
        %v1058 = vpop.f32.mrf.mxu0
        %v1059 = vadd.f32 %v970, %v1058
        %v1060 = vpop.f32.mrf.mxu0
        %v1061 = vadd.f32 %v972, %v1060
        %1062 = vmatmul.bf16.gmra.mxu0 %v875
        %v1063 = vpop.f32.mrf.mxu0
        %v1064 = vadd.f32 %v975, %v1063
        %v1065 = vpop.f32.mrf.mxu0
        %v1066 = vadd.f32 %v977, %v1065
        %1067 = vmatmul.bf16.gmra.mxu0 %v877
        %v1068 = vpop.f32.mrf.mxu0
        %v1069 = vadd.f32 %v980, %v1068
        %v1070 = vpop.f32.mrf.mxu0
        %v1071 = vadd.f32 %v982, %v1070
        %1072 = vmatmul.bf16.gmra.mxu0 %v879
        %v1073 = vpop.f32.mrf.mxu0
        %v1074 = vadd.f32 %v985, %v1073
        %v1075 = vpop.f32.mrf.mxu0
        %v1076 = vadd.f32 %v987, %v1075
        %1077 = vmatmul.bf16.gmra.mxu0 %v881
        %v1078 = vpop.f32.mrf.mxu0
        %v1079 = vadd.f32 %v990, %v1078
        %v1080 = vpop.f32.mrf.mxu0
        %v1081 = vadd.f32 %v992, %v1080
        %1082 = vmatmul.bf16.gmra.mxu0 %v883
        %v1083 = vpop.f32.mrf.mxu0
        %v1084 = vadd.f32 %v995, %v1083
        %v1085 = vpop.f32.mrf.mxu0
        %v1086 = vadd.f32 %v997, %v1085
        %1087 = vmatmul.bf16.gmra.mxu0 %v885
        %v1088 = vpop.f32.mrf.mxu0
        %v1089 = vadd.f32 %v1000, %v1088
        %v1090 = vpop.f32.mrf.mxu0
        %v1091 = vadd.f32 %v1002, %v1090
        %1092 = vmatmul.bf16.gmra.mxu0 %v887
        %v1093 = vpop.f32.mrf.mxu0
        %v1094 = vadd.f32 %v1005, %v1093
        %v1095 = vpop.f32.mrf.mxu0
        %v1096 = vadd.f32 %v1007, %v1095
        %1097 = vdwg.mxu0
        %v1098 = vmax.f32 %v1019, 0.0
        %v1099 = vmax.f32 %v1021, 0.0
        %v1100 = vmax.f32 %v1024, 0.0
        %v1101 = vmax.f32 %v1026, 0.0
        %v1102 = vmax.f32 %v1029, 0.0
        %v1103 = vmax.f32 %v1031, 0.0
        %v1104 = vmax.f32 %v1034, 0.0
        %v1105 = vmax.f32 %v1036, 0.0
        %v1106 = vmax.f32 %v1039, 0.0
        %v1107 = vmax.f32 %v1041, 0.0
        %v1108 = vmax.f32 %v1044, 0.0
        %v1109 = vmax.f32 %v1046, 0.0
        %v1110 = vmax.f32 %v1049, 0.0
        %v1111 = vmax.f32 %v1051, 0.0
        %v1112 = vmax.f32 %v1054, 0.0
        %v1113 = vmax.f32 %v1056, 0.0
        %v1114 = vmax.f32 %v1059, 0.0
        %v1115 = vmax.f32 %v1061, 0.0
        %v1116 = vmax.f32 %v1064, 0.0
        %v1117 = vmax.f32 %v1066, 0.0
        %v1118 = vmax.f32 %v1069, 0.0
        %v1119 = vmax.f32 %v1071, 0.0
        %v1120 = vmax.f32 %v1074, 0.0
        %v1121 = vmax.f32 %v1076, 0.0
        %v1122 = vmax.f32 %v1079, 0.0
        %v1123 = vmax.f32 %v1081, 0.0
        %v1124 = vmax.f32 %v1084, 0.0
        %v1125 = vmax.f32 %v1086, 0.0
        %v1126 = vmax.f32 %v1089, 0.0
        %v1127 = vmax.f32 %v1091, 0.0
        %v1128 = vmax.f32 %v1094, 0.0
        %v1129 = vmax.f32 %v1096, 0.0
        %v1130 = vpack.c.bf16 %v1099, %v1098
        %v1131 = vpack.c.bf16 %v1101, %v1100
        %v1132 = vpack.c.bf16 %v1103, %v1102
        %v1133 = vpack.c.bf16 %v1105, %v1104
        %v1134 = vpack.c.bf16 %v1107, %v1106
        %v1135 = vpack.c.bf16 %v1109, %v1108
        %v1136 = vpack.c.bf16 %v1111, %v1110
        %v1137 = vpack.c.bf16 %v1113, %v1112
        %v1138 = vpack.c.bf16 %v1115, %v1114
        %v1139 = vpack.c.bf16 %v1117, %v1116
        %v1140 = vpack.c.bf16 %v1119, %v1118
        %v1141 = vpack.c.bf16 %v1121, %v1120
        %v1142 = vpack.c.bf16 %v1123, %v1122
        %v1143 = vpack.c.bf16 %v1125, %v1124
        %v1144 = vpack.c.bf16 %v1127, %v1126
        %v1145 = vpack.c.bf16 %v1129, %v1128
        %v1146 = vld [vmem:[%s4] sm:$0xf]
        %v1147 = vld [vmem:[%s4 + $0x4] sm:$0xf]
        %v1148 = vld [vmem:[%s4 + $0x8] sm:$0xf]
        %v1149 = vld [vmem:[%s4 + $0xc] sm:$0xf]
        %v1150 = vld [vmem:[%s4 + $0x10] sm:$0xf]
        %v1151 = vld [vmem:[%s4 + $0x14] sm:$0xf]
        %v1152 = vld [vmem:[%s4 + $0x18] sm:$0xf]
        %v1153 = vld [vmem:[%s4 + $0x1c] sm:$0xf]
        %v1162 = vunpack.c.l.b16 %v1146
        %v1163 = vunpack.c.l.b16 %v1147
        %v1164 = vunpack.c.l.b16 %v1148
        %v1165 = vunpack.c.l.b16 %v1149
        %v1166 = vunpack.c.l.b16 %v1150
        %v1167 = vunpack.c.l.b16 %v1151
        %v1168 = vunpack.c.l.b16 %v1152
        %v1169 = vunpack.c.l.b16 %v1153
        %v1170 = vpack.c.b16 %v1163, %v1162
        %v1171 = vpack.c.b16 %v1165, %v1164
        %v1172 = vpack.c.b16 %v1167, %v1166
        %v1173 = vpack.c.b16 %v1169, %v1168
        %v1179 = vsel %vm570, %v1130, 0
        %v1182 = vsel %vm570, %v1131, 0
        %v1185 = vsel %vm570, %v1132, 0
        %v1188 = vsel %vm570, %v1133, 0
        %v1191 = vsel %vm570, %v1134, 0
        %v1194 = vsel %vm570, %v1135, 0
        %v1197 = vsel %vm570, %v1136, 0
        %v1200 = vsel %vm570, %v1137, 0
        %v1203 = vsel %vm570, %v1138, 0
        %v1206 = vsel %vm570, %v1139, 0
        %v1209 = vsel %vm570, %v1140, 0
        %v1212 = vsel %vm570, %v1141, 0
        %v1215 = vsel %vm570, %v1142, 0
        %v1218 = vsel %vm570, %v1143, 0
        %v1221 = vsel %vm570, %v1144, 0
        %v1224 = vsel %vm570, %v1145, 0
        %1226 = vmatpush.bf16.msra.mxu0 0
        %1227 = vmatpush.bf16.msra.mxu0 0
        %1228 = vmatpush.bf16.msra.mxu0 0
        %1229 = vmatpush.bf16.msra.mxu0 0
        %1230 = vmatpush.bf16.msra.mxu0 %v1173
        %1231 = vmatpush.bf16.msra.mxu0 %v1172
        %1232 = vmatpush.bf16.msra.mxu0 %v1171
        %1233 = vmatpush.bf16.msra.mxu0 %v1170
        %1234 = vmatmul.bf16.gmra.mxu0 %v1179
        %v1235 = vpop.f32.mrf.mxu0
        %v1236 = vadd.f32 0.0, %v1235
        %v1237 = vpop.f32.mrf.mxu0
        %v1238 = vadd.f32 0.0, %v1237
        %1239 = vmatmul.bf16.gmra.mxu0 %v1182
        %v1240 = vpop.f32.mrf.mxu0
        %v1241 = vadd.f32 0.0, %v1240
        %v1242 = vpop.f32.mrf.mxu0
        %v1243 = vadd.f32 0.0, %v1242
        %1244 = vmatmul.bf16.gmra.mxu0 %v1185
        %v1245 = vpop.f32.mrf.mxu0
        %v1246 = vadd.f32 0.0, %v1245
        %v1247 = vpop.f32.mrf.mxu0
        %v1248 = vadd.f32 0.0, %v1247
        %1249 = vmatmul.bf16.gmra.mxu0 %v1188
        %v1250 = vpop.f32.mrf.mxu0
        %v1251 = vadd.f32 0.0, %v1250
        %v1252 = vpop.f32.mrf.mxu0
        %v1253 = vadd.f32 0.0, %v1252
        %1254 = vmatmul.bf16.gmra.mxu0 %v1191
        %v1255 = vpop.f32.mrf.mxu0
        %v1256 = vadd.f32 0.0, %v1255
        %v1257 = vpop.f32.mrf.mxu0
        %v1258 = vadd.f32 0.0, %v1257
        %1259 = vmatmul.bf16.gmra.mxu0 %v1194
        %v1260 = vpop.f32.mrf.mxu0
        %v1261 = vadd.f32 0.0, %v1260
        %v1262 = vpop.f32.mrf.mxu0
        %v1263 = vadd.f32 0.0, %v1262
        %1264 = vmatmul.bf16.gmra.mxu0 %v1197
        %v1265 = vpop.f32.mrf.mxu0
        %v1266 = vadd.f32 0.0, %v1265
        %v1267 = vpop.f32.mrf.mxu0
        %v1268 = vadd.f32 0.0, %v1267
        %1269 = vmatmul.bf16.gmra.mxu0 %v1200
        %v1270 = vpop.f32.mrf.mxu0
        %v1271 = vadd.f32 0.0, %v1270
        %v1272 = vpop.f32.mrf.mxu0
        %v1273 = vadd.f32 0.0, %v1272
        %1274 = vmatmul.bf16.gmra.mxu0 %v1203
        %v1275 = vpop.f32.mrf.mxu0
        %v1276 = vadd.f32 0.0, %v1275
        %v1277 = vpop.f32.mrf.mxu0
        %v1278 = vadd.f32 0.0, %v1277
        %1279 = vmatmul.bf16.gmra.mxu0 %v1206
        %v1280 = vpop.f32.mrf.mxu0
        %v1281 = vadd.f32 0.0, %v1280
        %v1282 = vpop.f32.mrf.mxu0
        %v1283 = vadd.f32 0.0, %v1282
        %1284 = vmatmul.bf16.gmra.mxu0 %v1209
        %v1285 = vpop.f32.mrf.mxu0
        %v1286 = vadd.f32 0.0, %v1285
        %v1287 = vpop.f32.mrf.mxu0
        %v1288 = vadd.f32 0.0, %v1287
        %1289 = vmatmul.bf16.gmra.mxu0 %v1212
        %v1290 = vpop.f32.mrf.mxu0
        %v1291 = vadd.f32 0.0, %v1290
        %v1292 = vpop.f32.mrf.mxu0
        %v1293 = vadd.f32 0.0, %v1292
        %1294 = vmatmul.bf16.gmra.mxu0 %v1215
        %v1295 = vpop.f32.mrf.mxu0
        %v1296 = vadd.f32 0.0, %v1295
        %v1297 = vpop.f32.mrf.mxu0
        %v1298 = vadd.f32 0.0, %v1297
        %1299 = vmatmul.bf16.gmra.mxu0 %v1218
        %v1300 = vpop.f32.mrf.mxu0
        %v1301 = vadd.f32 0.0, %v1300
        %v1302 = vpop.f32.mrf.mxu0
        %v1303 = vadd.f32 0.0, %v1302
        %1304 = vmatmul.bf16.gmra.mxu0 %v1221
        %v1305 = vpop.f32.mrf.mxu0
        %v1306 = vadd.f32 0.0, %v1305
        %v1307 = vpop.f32.mrf.mxu0
        %v1308 = vadd.f32 0.0, %v1307
        %1309 = vmatmul.bf16.gmra.mxu0 %v1224
        %v1310 = vpop.f32.mrf.mxu0
        %v1311 = vadd.f32 0.0, %v1310
        %v1312 = vpop.f32.mrf.mxu0
        %v1313 = vadd.f32 0.0, %v1312
        %1314 = vdwg.mxu0
        %v1315 = vpack.c.bf16 %v1238, %v1236
        %v1316 = vpack.c.bf16 %v1243, %v1241
        %v1317 = vpack.c.bf16 %v1248, %v1246
        %v1318 = vpack.c.bf16 %v1253, %v1251
        %v1319 = vpack.c.bf16 %v1258, %v1256
        %v1320 = vpack.c.bf16 %v1263, %v1261
        %v1321 = vpack.c.bf16 %v1268, %v1266
        %v1322 = vpack.c.bf16 %v1273, %v1271
        %v1323 = vpack.c.bf16 %v1278, %v1276
        %v1324 = vpack.c.bf16 %v1283, %v1281
        %v1325 = vpack.c.bf16 %v1288, %v1286
        %v1326 = vpack.c.bf16 %v1293, %v1291
        %v1327 = vpack.c.bf16 %v1298, %v1296
        %v1328 = vpack.c.bf16 %v1303, %v1301
        %v1329 = vpack.c.bf16 %v1308, %v1306
        %v1330 = vpack.c.bf16 %v1313, %v1311
        %v1331 = vld [vmem:[%s5] sm:$0x1]
        %v1333 = vperm.slane %v1331, 0
        %1335 = vmatpush.bf16.msra.mxu0 %v1322
        %1336 = vmatpush.bf16.msra.mxu0 %v1321
        %1337 = vmatpush.bf16.msra.mxu0 %v1320
        %1338 = vmatpush.bf16.msra.mxu0 %v1319
        %1339 = vmatpush.bf16.msra.mxu0 %v1318
        %1340 = vmatpush.bf16.msra.mxu0 %v1317
        %1341 = vmatpush.bf16.msra.mxu0 %v1316
        %1342 = vmatpush.bf16.msra.mxu0 %v1315
        %1343 = vmatmul.bf16.gmra.mxu0 %v856
        %v1344 = vpop.f32.mrf.mxu0
        %v1345 = vadd.f32 %v1333, %v1344
        %v1346 = vpop.f32.mrf.mxu0
        %v1347 = vadd.f32 %v1333, %v1346
        %1348 = vmatmul.bf16.gmra.mxu0 %v858
        %v1349 = vpop.f32.mrf.mxu0
        %v1350 = vadd.f32 %v1333, %v1349
        %v1351 = vpop.f32.mrf.mxu0
        %v1352 = vadd.f32 %v1333, %v1351
        %1353 = vmatmul.bf16.gmra.mxu0 %v860
        %v1354 = vpop.f32.mrf.mxu0
        %v1355 = vadd.f32 %v1333, %v1354
        %v1356 = vpop.f32.mrf.mxu0
        %v1357 = vadd.f32 %v1333, %v1356
        %1358 = vmatmul.bf16.gmra.mxu0 %v862
        %v1359 = vpop.f32.mrf.mxu0
        %v1360 = vadd.f32 %v1333, %v1359
        %v1361 = vpop.f32.mrf.mxu0
        %v1362 = vadd.f32 %v1333, %v1361
        %1363 = vmatmul.bf16.gmra.mxu0 %v864
        %v1364 = vpop.f32.mrf.mxu0
        %v1365 = vadd.f32 %v1333, %v1364
        %v1366 = vpop.f32.mrf.mxu0
        %v1367 = vadd.f32 %v1333, %v1366
        %1368 = vmatmul.bf16.gmra.mxu0 %v866
        %v1369 = vpop.f32.mrf.mxu0
        %v1370 = vadd.f32 %v1333, %v1369
        %v1371 = vpop.f32.mrf.mxu0
        %v1372 = vadd.f32 %v1333, %v1371
        %1373 = vmatmul.bf16.gmra.mxu0 %v868
        %v1374 = vpop.f32.mrf.mxu0
        %v1375 = vadd.f32 %v1333, %v1374
        %v1376 = vpop.f32.mrf.mxu0
        %v1377 = vadd.f32 %v1333, %v1376
        %1378 = vmatmul.bf16.gmra.mxu0 %v870
        %v1379 = vpop.f32.mrf.mxu0
        %v1380 = vadd.f32 %v1333, %v1379
        %v1381 = vpop.f32.mrf.mxu0
        %v1382 = vadd.f32 %v1333, %v1381
        %1383 = vmatmul.bf16.gmra.mxu0 %v872
        %v1384 = vpop.f32.mrf.mxu0
        %v1385 = vadd.f32 %v1333, %v1384
        %v1386 = vpop.f32.mrf.mxu0
        %v1387 = vadd.f32 %v1333, %v1386
        %1388 = vmatmul.bf16.gmra.mxu0 %v874
        %v1389 = vpop.f32.mrf.mxu0
        %v1390 = vadd.f32 %v1333, %v1389
        %v1391 = vpop.f32.mrf.mxu0
        %v1392 = vadd.f32 %v1333, %v1391
        %1393 = vmatmul.bf16.gmra.mxu0 %v876
        %v1394 = vpop.f32.mrf.mxu0
        %v1395 = vadd.f32 %v1333, %v1394
        %v1396 = vpop.f32.mrf.mxu0
        %v1397 = vadd.f32 %v1333, %v1396
        %1398 = vmatmul.bf16.gmra.mxu0 %v878
        %v1399 = vpop.f32.mrf.mxu0
        %v1400 = vadd.f32 %v1333, %v1399
        %v1401 = vpop.f32.mrf.mxu0
        %v1402 = vadd.f32 %v1333, %v1401
        %1403 = vmatmul.bf16.gmra.mxu0 %v880
        %v1404 = vpop.f32.mrf.mxu0
        %v1405 = vadd.f32 %v1333, %v1404
        %v1406 = vpop.f32.mrf.mxu0
        %v1407 = vadd.f32 %v1333, %v1406
        %1408 = vmatmul.bf16.gmra.mxu0 %v882
        %v1409 = vpop.f32.mrf.mxu0
        %v1410 = vadd.f32 %v1333, %v1409
        %v1411 = vpop.f32.mrf.mxu0
        %v1412 = vadd.f32 %v1333, %v1411
        %1413 = vmatmul.bf16.gmra.mxu0 %v884
        %v1414 = vpop.f32.mrf.mxu0
        %v1415 = vadd.f32 %v1333, %v1414
        %v1416 = vpop.f32.mrf.mxu0
        %v1417 = vadd.f32 %v1333, %v1416
        %1418 = vmatmul.bf16.gmra.mxu0 %v886
        %v1419 = vpop.f32.mrf.mxu0
        %v1420 = vadd.f32 %v1333, %v1419
        %v1421 = vpop.f32.mrf.mxu0
        %v1422 = vadd.f32 %v1333, %v1421
        %1423 = vdwg.mxu0
        %1424 = vmatpush.bf16.msra.mxu0 %v1330
        %1425 = vmatpush.bf16.msra.mxu0 %v1329
        %1426 = vmatpush.bf16.msra.mxu0 %v1328
        %1427 = vmatpush.bf16.msra.mxu0 %v1327
        %1428 = vmatpush.bf16.msra.mxu0 %v1326
        %1429 = vmatpush.bf16.msra.mxu0 %v1325
        %1430 = vmatpush.bf16.msra.mxu0 %v1324
        %1431 = vmatpush.bf16.msra.mxu0 %v1323
        %1432 = vmatmul.bf16.gmra.mxu0 %v857
        %v1433 = vpop.f32.mrf.mxu0
        %v1434 = vadd.f32 %v1345, %v1433
        %v1435 = vpop.f32.mrf.mxu0
        %v1436 = vadd.f32 %v1347, %v1435
        %1437 = vmatmul.bf16.gmra.mxu0 %v859
        %v1438 = vpop.f32.mrf.mxu0
        %v1439 = vadd.f32 %v1350, %v1438
        %v1440 = vpop.f32.mrf.mxu0
        %v1441 = vadd.f32 %v1352, %v1440
        %1442 = vmatmul.bf16.gmra.mxu0 %v861
        %v1443 = vpop.f32.mrf.mxu0
        %v1444 = vadd.f32 %v1355, %v1443
        %v1445 = vpop.f32.mrf.mxu0
        %v1446 = vadd.f32 %v1357, %v1445
        %1447 = vmatmul.bf16.gmra.mxu0 %v863
        %v1448 = vpop.f32.mrf.mxu0
        %v1449 = vadd.f32 %v1360, %v1448
        %v1450 = vpop.f32.mrf.mxu0
        %v1451 = vadd.f32 %v1362, %v1450
        %1452 = vmatmul.bf16.gmra.mxu0 %v865
        %v1453 = vpop.f32.mrf.mxu0
        %v1454 = vadd.f32 %v1365, %v1453
        %v1455 = vpop.f32.mrf.mxu0
        %v1456 = vadd.f32 %v1367, %v1455
        %1457 = vmatmul.bf16.gmra.mxu0 %v867
        %v1458 = vpop.f32.mrf.mxu0
        %v1459 = vadd.f32 %v1370, %v1458
        %v1460 = vpop.f32.mrf.mxu0
        %v1461 = vadd.f32 %v1372, %v1460
        %1462 = vmatmul.bf16.gmra.mxu0 %v869
        %v1463 = vpop.f32.mrf.mxu0
        %v1464 = vadd.f32 %v1375, %v1463
        %v1465 = vpop.f32.mrf.mxu0
        %v1466 = vadd.f32 %v1377, %v1465
        %1467 = vmatmul.bf16.gmra.mxu0 %v871
        %v1468 = vpop.f32.mrf.mxu0
        %v1469 = vadd.f32 %v1380, %v1468
        %v1470 = vpop.f32.mrf.mxu0
        %v1471 = vadd.f32 %v1382, %v1470
        %1472 = vmatmul.bf16.gmra.mxu0 %v873
        %v1473 = vpop.f32.mrf.mxu0
        %v1474 = vadd.f32 %v1385, %v1473
        %v1475 = vpop.f32.mrf.mxu0
        %v1476 = vadd.f32 %v1387, %v1475
        %1477 = vmatmul.bf16.gmra.mxu0 %v875
        %v1478 = vpop.f32.mrf.mxu0
        %v1479 = vadd.f32 %v1390, %v1478
        %v1480 = vpop.f32.mrf.mxu0
        %v1481 = vadd.f32 %v1392, %v1480
        %1482 = vmatmul.bf16.gmra.mxu0 %v877
        %v1483 = vpop.f32.mrf.mxu0
        %v1484 = vadd.f32 %v1395, %v1483
        %v1485 = vpop.f32.mrf.mxu0
        %v1486 = vadd.f32 %v1397, %v1485
        %1487 = vmatmul.bf16.gmra.mxu0 %v879
        %v1488 = vpop.f32.mrf.mxu0
        %v1489 = vadd.f32 %v1400, %v1488
        %v1490 = vpop.f32.mrf.mxu0
        %v1491 = vadd.f32 %v1402, %v1490
        %1492 = vmatmul.bf16.gmra.mxu0 %v881
        %v1493 = vpop.f32.mrf.mxu0
        %v1494 = vadd.f32 %v1405, %v1493
        %v1495 = vpop.f32.mrf.mxu0
        %v1496 = vadd.f32 %v1407, %v1495
        %1497 = vmatmul.bf16.gmra.mxu0 %v883
        %v1498 = vpop.f32.mrf.mxu0
        %v1499 = vadd.f32 %v1410, %v1498
        %v1500 = vpop.f32.mrf.mxu0
        %v1501 = vadd.f32 %v1412, %v1500
        %1502 = vmatmul.bf16.gmra.mxu0 %v885
        %v1503 = vpop.f32.mrf.mxu0
        %v1504 = vadd.f32 %v1415, %v1503
        %v1505 = vpop.f32.mrf.mxu0
        %v1506 = vadd.f32 %v1417, %v1505
        %1507 = vmatmul.bf16.gmra.mxu0 %v887
        %v1508 = vpop.f32.mrf.mxu0
        %v1509 = vadd.f32 %v1420, %v1508
        %v1510 = vpop.f32.mrf.mxu0
        %v1511 = vadd.f32 %v1422, %v1510
        %1512 = vdwg.mxu0
        %1513 = vst.msk [vmem:[%s9] sm:$0xff] %vm570, %v1434
        %1514 = vst.msk [vmem:[%s9 + $0x8] sm:$0xff] %vm570, %v1436
        %1515 = vst.msk [vmem:[%s9 + $0x10] sm:$0xff] %vm570, %v1439
        %1516 = vst.msk [vmem:[%s9 + $0x18] sm:$0xff] %vm570, %v1441
        %1517 = vst.msk [vmem:[%s9 + $0x20] sm:$0xff] %vm570, %v1444
        %1518 = vst.msk [vmem:[%s9 + $0x28] sm:$0xff] %vm570, %v1446
        %1519 = vst.msk [vmem:[%s9 + $0x30] sm:$0xff] %vm570, %v1449
        %1520 = vst.msk [vmem:[%s9 + $0x38] sm:$0xff] %vm570, %v1451
        %1521 = vst.msk [vmem:[%s9 + $0x40] sm:$0xff] %vm570, %v1454
        %1522 = vst.msk [vmem:[%s9 + $0x48] sm:$0xff] %vm570, %v1456
        %1523 = vst.msk [vmem:[%s9 + $0x50] sm:$0xff] %vm570, %v1459
        %1524 = vst.msk [vmem:[%s9 + $0x58] sm:$0xff] %vm570, %v1461
        %1525 = vst.msk [vmem:[%s9 + $0x60] sm:$0xff] %vm570, %v1464
        %1526 = vst.msk [vmem:[%s9 + $0x68] sm:$0xff] %vm570, %v1466
        %1527 = vst.msk [vmem:[%s9 + $0x70] sm:$0xff] %vm570, %v1469
        %1528 = vst.msk [vmem:[%s9 + $0x78] sm:$0xff] %vm570, %v1471
        %1529 = vst.msk [vmem:[%s9 + $0x80] sm:$0xff] %vm570, %v1474
        %1530 = vst.msk [vmem:[%s9 + $0x88] sm:$0xff] %vm570, %v1476
        %1531 = vst.msk [vmem:[%s9 + $0x90] sm:$0xff] %vm570, %v1479
        %1532 = vst.msk [vmem:[%s9 + $0x98] sm:$0xff] %vm570, %v1481
        %1533 = vst.msk [vmem:[%s9 + $0xa0] sm:$0xff] %vm570, %v1484
        %1534 = vst.msk [vmem:[%s9 + $0xa8] sm:$0xff] %vm570, %v1486
        %1535 = vst.msk [vmem:[%s9 + $0xb0] sm:$0xff] %vm570, %v1489
        %1536 = vst.msk [vmem:[%s9 + $0xb8] sm:$0xff] %vm570, %v1491
        %1537 = vst.msk [vmem:[%s9 + $0xc0] sm:$0xff] %vm570, %v1494
        %1538 = vst.msk [vmem:[%s9 + $0xc8] sm:$0xff] %vm570, %v1496
        %1539 = vst.msk [vmem:[%s9 + $0xd0] sm:$0xff] %vm570, %v1499
        %1540 = vst.msk [vmem:[%s9 + $0xd8] sm:$0xff] %vm570, %v1501
        %1541 = vst.msk [vmem:[%s9 + $0xe0] sm:$0xff] %vm570, %v1504
        %1542 = vst.msk [vmem:[%s9 + $0xe8] sm:$0xff] %vm570, %v1506
        %1543 = vst.msk [vmem:[%s9 + $0xf0] sm:$0xff] %vm570, %v1509
        %1544 = vst.msk [vmem:[%s9 + $0xf8] sm:$0xff] %vm570, %v1511
        %v1546 = vsel %vm570, %v1434, 0
        %v1549 = vsel %vm570, %v1436, 0
        %v1552 = vsel %vm570, %v1439, 0
        %v1555 = vsel %vm570, %v1441, 0
        %v1558 = vsel %vm570, %v1444, 0
        %v1561 = vsel %vm570, %v1446, 0
        %v1564 = vsel %vm570, %v1449, 0
        %v1567 = vsel %vm570, %v1451, 0
        %v1570 = vsel %vm570, %v1454, 0
        %v1573 = vsel %vm570, %v1456, 0
        %v1576 = vsel %vm570, %v1459, 0
        %v1579 = vsel %vm570, %v1461, 0
        %v1582 = vsel %vm570, %v1464, 0
        %v1585 = vsel %vm570, %v1466, 0
        %v1588 = vsel %vm570, %v1469, 0
        %v1591 = vsel %vm570, %v1471, 0
        %v1594 = vsel %vm570, %v1474, 0
        %v1597 = vsel %vm570, %v1476, 0
        %v1600 = vsel %vm570, %v1479, 0
        %v1603 = vsel %vm570, %v1481, 0
        %v1606 = vsel %vm570, %v1484, 0
        %v1609 = vsel %vm570, %v1486, 0
        %v1612 = vsel %vm570, %v1489, 0
        %v1615 = vsel %vm570, %v1491, 0
        %v1618 = vsel %vm570, %v1494, 0
        %v1621 = vsel %vm570, %v1496, 0
        %v1624 = vsel %vm570, %v1499, 0
        %v1627 = vsel %vm570, %v1501, 0
        %v1630 = vsel %vm570, %v1504, 0
        %v1633 = vsel %vm570, %v1506, 0
        %v1636 = vsel %vm570, %v1509, 0
        %v1639 = vsel %vm570, %v1511, 0
        %1641 = vmatpush.xpose.msra.mxu0 %v1591
        %1642 = vmatpush.xpose.msra.mxu0 %v1588
        %1643 = vmatpush.xpose.msra.mxu0 %v1585
        %1644 = vmatpush.xpose.msra.mxu0 %v1582
        %1645 = vmatpush.xpose.msra.mxu0 %v1579
        %1646 = vmatpush.xpose.msra.mxu0 %v1576
        %1647 = vmatpush.xpose.msra.mxu0 %v1573
        %1648 = vmatpush.xpose.msra.mxu0 %v1570
        %1649 = vmatpush.xpose.msra.mxu0 %v1567
        %1650 = vmatpush.xpose.msra.mxu0 %v1564
        %1651 = vmatpush.xpose.msra.mxu0 %v1561
        %1652 = vmatpush.xpose.msra.mxu0 %v1558
        %1653 = vmatpush.xpose.msra.mxu0 %v1555
        %1654 = vmatpush.xpose.msra.mxu0 %v1552
        %1655 = vmatpush.xpose.msra.mxu0 %v1549
        %1656 = vmatpush.xpose.msra.mxu0 %v1546
        %1657 = vmatmul.f32.gmra.mxu0 %v1546
        %v1658 = vpop.f32.mrf.mxu0
        %v1659 = vadd.f32 0.0, %v1658
        %1660 = vmatmul.f32.gmra.mxu0 %v1549
        %v1661 = vpop.f32.mrf.mxu0
        %v1662 = vadd.f32 0.0, %v1661
        %1663 = vmatmul.f32.gmra.mxu0 %v1552
        %v1664 = vpop.f32.mrf.mxu0
        %v1665 = vadd.f32 0.0, %v1664
        %1666 = vmatmul.f32.gmra.mxu0 %v1555
        %v1667 = vpop.f32.mrf.mxu0
        %v1668 = vadd.f32 0.0, %v1667
        %1669 = vmatmul.f32.gmra.mxu0 %v1558
        %v1670 = vpop.f32.mrf.mxu0
        %v1671 = vadd.f32 0.0, %v1670
        %1672 = vmatmul.f32.gmra.mxu0 %v1561
        %v1673 = vpop.f32.mrf.mxu0
        %v1674 = vadd.f32 0.0, %v1673
        %1675 = vmatmul.f32.gmra.mxu0 %v1564
        %v1676 = vpop.f32.mrf.mxu0
        %v1677 = vadd.f32 0.0, %v1676
        %1678 = vmatmul.f32.gmra.mxu0 %v1567
        %v1679 = vpop.f32.mrf.mxu0
        %v1680 = vadd.f32 0.0, %v1679
        %1681 = vmatmul.f32.gmra.mxu0 %v1570
        %v1682 = vpop.f32.mrf.mxu0
        %v1683 = vadd.f32 0.0, %v1682
        %1684 = vmatmul.f32.gmra.mxu0 %v1573
        %v1685 = vpop.f32.mrf.mxu0
        %v1686 = vadd.f32 0.0, %v1685
        %1687 = vmatmul.f32.gmra.mxu0 %v1576
        %v1688 = vpop.f32.mrf.mxu0
        %v1689 = vadd.f32 0.0, %v1688
        %1690 = vmatmul.f32.gmra.mxu0 %v1579
        %v1691 = vpop.f32.mrf.mxu0
        %v1692 = vadd.f32 0.0, %v1691
        %1693 = vmatmul.f32.gmra.mxu0 %v1582
        %v1694 = vpop.f32.mrf.mxu0
        %v1695 = vadd.f32 0.0, %v1694
        %1696 = vmatmul.f32.gmra.mxu0 %v1585
        %v1697 = vpop.f32.mrf.mxu0
        %v1698 = vadd.f32 0.0, %v1697
        %1699 = vmatmul.f32.gmra.mxu0 %v1588
        %v1700 = vpop.f32.mrf.mxu0
        %v1701 = vadd.f32 0.0, %v1700
        %1702 = vmatmul.f32.gmra.mxu0 %v1591
        %v1703 = vpop.f32.mrf.mxu0
        %v1704 = vadd.f32 0.0, %v1703
        %1705 = vmatmul.f32.gmra.mxu0 %v1594
        %v1706 = vpop.f32.mrf.mxu0
        %v1707 = vadd.f32 0.0, %v1706
        %1708 = vmatmul.f32.gmra.mxu0 %v1597
        %v1709 = vpop.f32.mrf.mxu0
        %v1710 = vadd.f32 0.0, %v1709
        %1711 = vmatmul.f32.gmra.mxu0 %v1600
        %v1712 = vpop.f32.mrf.mxu0
        %v1713 = vadd.f32 0.0, %v1712
        %1714 = vmatmul.f32.gmra.mxu0 %v1603
        %v1715 = vpop.f32.mrf.mxu0
        %v1716 = vadd.f32 0.0, %v1715
        %1717 = vmatmul.f32.gmra.mxu0 %v1606
        %v1718 = vpop.f32.mrf.mxu0
        %v1719 = vadd.f32 0.0, %v1718
        %1720 = vmatmul.f32.gmra.mxu0 %v1609
        %v1721 = vpop.f32.mrf.mxu0
        %v1722 = vadd.f32 0.0, %v1721
        %1723 = vmatmul.f32.gmra.mxu0 %v1612
        %v1724 = vpop.f32.mrf.mxu0
        %v1725 = vadd.f32 0.0, %v1724
        %1726 = vmatmul.f32.gmra.mxu0 %v1615
        %v1727 = vpop.f32.mrf.mxu0
        %v1728 = vadd.f32 0.0, %v1727
        %1729 = vmatmul.f32.gmra.mxu0 %v1618
        %v1730 = vpop.f32.mrf.mxu0
        %v1731 = vadd.f32 0.0, %v1730
        %1732 = vmatmul.f32.gmra.mxu0 %v1621
        %v1733 = vpop.f32.mrf.mxu0
        %v1734 = vadd.f32 0.0, %v1733
        %1735 = vmatmul.f32.gmra.mxu0 %v1624
        %v1736 = vpop.f32.mrf.mxu0
        %v1737 = vadd.f32 0.0, %v1736
        %1738 = vmatmul.f32.gmra.mxu0 %v1627
        %v1739 = vpop.f32.mrf.mxu0
        %v1740 = vadd.f32 0.0, %v1739
        %1741 = vmatmul.f32.gmra.mxu0 %v1630
        %v1742 = vpop.f32.mrf.mxu0
        %v1743 = vadd.f32 0.0, %v1742
        %1744 = vmatmul.f32.gmra.mxu0 %v1633
        %v1745 = vpop.f32.mrf.mxu0
        %v1746 = vadd.f32 0.0, %v1745
        %1747 = vmatmul.f32.gmra.mxu0 %v1636
        %v1748 = vpop.f32.mrf.mxu0
        %v1749 = vadd.f32 0.0, %v1748
        %1750 = vmatmul.f32.gmra.mxu0 %v1639
        %v1751 = vpop.f32.mrf.mxu0
        %v1752 = vadd.f32 0.0, %v1751
        %1753 = vdwg.mxu0
        %1754 = vmatpush.xpose.msra.mxu0 %v1639
        %1755 = vmatpush.xpose.msra.mxu0 %v1636
        %1756 = vmatpush.xpose.msra.mxu0 %v1633
        %1757 = vmatpush.xpose.msra.mxu0 %v1630
        %1758 = vmatpush.xpose.msra.mxu0 %v1627
        %1759 = vmatpush.xpose.msra.mxu0 %v1624
        %1760 = vmatpush.xpose.msra.mxu0 %v1621
        %1761 = vmatpush.xpose.msra.mxu0 %v1618
        %1762 = vmatpush.xpose.msra.mxu0 %v1615
        %1763 = vmatpush.xpose.msra.mxu0 %v1612
        %1764 = vmatpush.xpose.msra.mxu0 %v1609
        %1765 = vmatpush.xpose.msra.mxu0 %v1606
        %1766 = vmatpush.xpose.msra.mxu0 %v1603
        %1767 = vmatpush.xpose.msra.mxu0 %v1600
        %1768 = vmatpush.xpose.msra.mxu0 %v1597
        %1769 = vmatpush.xpose.msra.mxu0 %v1594
        %1770 = vmatmul.f32.gmra.mxu0 %v1546
        %v1771 = vpop.f32.mrf.mxu0
        %v1772 = vadd.f32 0.0, %v1771
        %1773 = vmatmul.f32.gmra.mxu0 %v1549
        %v1774 = vpop.f32.mrf.mxu0
        %v1775 = vadd.f32 0.0, %v1774
        %1776 = vmatmul.f32.gmra.mxu0 %v1552
        %v1777 = vpop.f32.mrf.mxu0
        %v1778 = vadd.f32 0.0, %v1777
        %1779 = vmatmul.f32.gmra.mxu0 %v1555
        %v1780 = vpop.f32.mrf.mxu0
        %v1781 = vadd.f32 0.0, %v1780
        %1782 = vmatmul.f32.gmra.mxu0 %v1558
        %v1783 = vpop.f32.mrf.mxu0
        %v1784 = vadd.f32 0.0, %v1783
        %1785 = vmatmul.f32.gmra.mxu0 %v1561
        %v1786 = vpop.f32.mrf.mxu0
        %v1787 = vadd.f32 0.0, %v1786
        %1788 = vmatmul.f32.gmra.mxu0 %v1564
        %v1789 = vpop.f32.mrf.mxu0
        %v1790 = vadd.f32 0.0, %v1789
        %1791 = vmatmul.f32.gmra.mxu0 %v1567
        %v1792 = vpop.f32.mrf.mxu0
        %v1793 = vadd.f32 0.0, %v1792
        %1794 = vmatmul.f32.gmra.mxu0 %v1570
        %v1795 = vpop.f32.mrf.mxu0
        %v1796 = vadd.f32 0.0, %v1795
        %1797 = vmatmul.f32.gmra.mxu0 %v1573
        %v1798 = vpop.f32.mrf.mxu0
        %v1799 = vadd.f32 0.0, %v1798
        %1800 = vmatmul.f32.gmra.mxu0 %v1576
        %v1801 = vpop.f32.mrf.mxu0
        %v1802 = vadd.f32 0.0, %v1801
        %1803 = vmatmul.f32.gmra.mxu0 %v1579
        %v1804 = vpop.f32.mrf.mxu0
        %v1805 = vadd.f32 0.0, %v1804
        %1806 = vmatmul.f32.gmra.mxu0 %v1582
        %v1807 = vpop.f32.mrf.mxu0
        %v1808 = vadd.f32 0.0, %v1807
        %1809 = vmatmul.f32.gmra.mxu0 %v1585
        %v1810 = vpop.f32.mrf.mxu0
        %v1811 = vadd.f32 0.0, %v1810
        %1812 = vmatmul.f32.gmra.mxu0 %v1588
        %v1813 = vpop.f32.mrf.mxu0
        %v1814 = vadd.f32 0.0, %v1813
        %1815 = vmatmul.f32.gmra.mxu0 %v1591
        %v1816 = vpop.f32.mrf.mxu0
        %v1817 = vadd.f32 0.0, %v1816
        %1818 = vmatmul.f32.gmra.mxu0 %v1594
        %v1819 = vpop.f32.mrf.mxu0
        %v1820 = vadd.f32 0.0, %v1819
        %1821 = vmatmul.f32.gmra.mxu0 %v1597
        %v1822 = vpop.f32.mrf.mxu0
        %v1823 = vadd.f32 0.0, %v1822
        %1824 = vmatmul.f32.gmra.mxu0 %v1600
        %v1825 = vpop.f32.mrf.mxu0
        %v1826 = vadd.f32 0.0, %v1825
        %1827 = vmatmul.f32.gmra.mxu0 %v1603
        %v1828 = vpop.f32.mrf.mxu0
        %v1829 = vadd.f32 0.0, %v1828
        %1830 = vmatmul.f32.gmra.mxu0 %v1606
        %v1831 = vpop.f32.mrf.mxu0
        %v1832 = vadd.f32 0.0, %v1831
        %1833 = vmatmul.f32.gmra.mxu0 %v1609
        %v1834 = vpop.f32.mrf.mxu0
        %v1835 = vadd.f32 0.0, %v1834
        %1836 = vmatmul.f32.gmra.mxu0 %v1612
        %v1837 = vpop.f32.mrf.mxu0
        %v1838 = vadd.f32 0.0, %v1837
        %1839 = vmatmul.f32.gmra.mxu0 %v1615
        %v1840 = vpop.f32.mrf.mxu0
        %v1841 = vadd.f32 0.0, %v1840
        %1842 = vmatmul.f32.gmra.mxu0 %v1618
        %v1843 = vpop.f32.mrf.mxu0
        %v1844 = vadd.f32 0.0, %v1843
        %1845 = vmatmul.f32.gmra.mxu0 %v1621
        %v1846 = vpop.f32.mrf.mxu0
        %v1847 = vadd.f32 0.0, %v1846
        %1848 = vmatmul.f32.gmra.mxu0 %v1624
        %v1849 = vpop.f32.mrf.mxu0
        %v1850 = vadd.f32 0.0, %v1849
        %1851 = vmatmul.f32.gmra.mxu0 %v1627
        %v1852 = vpop.f32.mrf.mxu0
        %v1853 = vadd.f32 0.0, %v1852
        %1854 = vmatmul.f32.gmra.mxu0 %v1630
        %v1855 = vpop.f32.mrf.mxu0
        %v1856 = vadd.f32 0.0, %v1855
        %1857 = vmatmul.f32.gmra.mxu0 %v1633
        %v1858 = vpop.f32.mrf.mxu0
        %v1859 = vadd.f32 0.0, %v1858
        %1860 = vmatmul.f32.gmra.mxu0 %v1636
        %v1861 = vpop.f32.mrf.mxu0
        %v1862 = vadd.f32 0.0, %v1861
        %1863 = vmatmul.f32.gmra.mxu0 %v1639
        %v1864 = vpop.f32.mrf.mxu0
        %v1865 = vadd.f32 0.0, %v1864
        %1866 = vdwg.mxu0
        %1867 = vst [vmem:[#allocation2] sm:$0xff] %v1659
        %1868 = vst [vmem:[#allocation2 + $0x8] sm:$0xff] %v1772
        %1869 = vst [vmem:[#allocation2 + $0x10] sm:$0xff] %v1662
        %1870 = vst [vmem:[#allocation2 + $0x18] sm:$0xff] %v1775
        %1871 = vst [vmem:[#allocation2 + $0x20] sm:$0xff] %v1665
        %1872 = vst [vmem:[#allocation2 + $0x28] sm:$0xff] %v1778
        %1873 = vst [vmem:[#allocation2 + $0x30] sm:$0xff] %v1668
        %1874 = vst [vmem:[#allocation2 + $0x38] sm:$0xff] %v1781
        %1875 = vst [vmem:[#allocation2 + $0x40] sm:$0xff] %v1671
        %1876 = vst [vmem:[#allocation2 + $0x48] sm:$0xff] %v1784
        %1877 = vst [vmem:[#allocation2 + $0x50] sm:$0xff] %v1674
        %1878 = vst [vmem:[#allocation2 + $0x58] sm:$0xff] %v1787
        %1879 = vst [vmem:[#allocation2 + $0x60] sm:$0xff] %v1677
        %1880 = vst [vmem:[#allocation2 + $0x68] sm:$0xff] %v1790
        %1881 = vst [vmem:[#allocation2 + $0x70] sm:$0xff] %v1680
        %1882 = vst [vmem:[#allocation2 + $0x78] sm:$0xff] %v1793
        %1883 = vst [vmem:[#allocation2 + $0x80] sm:$0xff] %v1683
        %1884 = vst [vmem:[#allocation2 + $0x88] sm:$0xff] %v1796
        %1885 = vst [vmem:[#allocation2 + $0x90] sm:$0xff] %v1686
        %1886 = vst [vmem:[#allocation2 + $0x98] sm:$0xff] %v1799
        %1887 = vst [vmem:[#allocation2 + $0xa0] sm:$0xff] %v1689
        %1888 = vst [vmem:[#allocation2 + $0xa8] sm:$0xff] %v1802
        %1889 = vst [vmem:[#allocation2 + $0xb0] sm:$0xff] %v1692
        %1890 = vst [vmem:[#allocation2 + $0xb8] sm:$0xff] %v1805
        %1891 = vst [vmem:[#allocation2 + $0xc0] sm:$0xff] %v1695
        %1892 = vst [vmem:[#allocation2 + $0xc8] sm:$0xff] %v1808
        %1893 = vst [vmem:[#allocation2 + $0xd0] sm:$0xff] %v1698
        %1894 = vst [vmem:[#allocation2 + $0xd8] sm:$0xff] %v1811
        %1895 = vst [vmem:[#allocation2 + $0xe0] sm:$0xff] %v1701
        %1896 = vst [vmem:[#allocation2 + $0xe8] sm:$0xff] %v1814
        %1897 = vst [vmem:[#allocation2 + $0xf0] sm:$0xff] %v1704
        %1898 = vst [vmem:[#allocation2 + $0xf8] sm:$0xff] %v1817
        %1899 = vst [vmem:[#allocation2 + $0x100] sm:$0xff] %v1707
        %1900 = vst [vmem:[#allocation2 + $0x108] sm:$0xff] %v1820
        %1901 = vst [vmem:[#allocation2 + $0x110] sm:$0xff] %v1710
        %1902 = vst [vmem:[#allocation2 + $0x118] sm:$0xff] %v1823
        %1903 = vst [vmem:[#allocation2 + $0x120] sm:$0xff] %v1713
        %1904 = vst [vmem:[#allocation2 + $0x128] sm:$0xff] %v1826
        %1905 = vst [vmem:[#allocation2 + $0x130] sm:$0xff] %v1716
        %1906 = vst [vmem:[#allocation2 + $0x138] sm:$0xff] %v1829
        %1907 = vst [vmem:[#allocation2 + $0x140] sm:$0xff] %v1719
        %1908 = vst [vmem:[#allocation2 + $0x148] sm:$0xff] %v1832
        %1909 = vst [vmem:[#allocation2 + $0x150] sm:$0xff] %v1722
        %1910 = vst [vmem:[#allocation2 + $0x158] sm:$0xff] %v1835
        %1911 = vst [vmem:[#allocation2 + $0x160] sm:$0xff] %v1725
        %1912 = vst [vmem:[#allocation2 + $0x168] sm:$0xff] %v1838
        %1913 = vst [vmem:[#allocation2 + $0x170] sm:$0xff] %v1728
        %1914 = vst [vmem:[#allocation2 + $0x178] sm:$0xff] %v1841
        %1915 = vst [vmem:[#allocation2 + $0x180] sm:$0xff] %v1731
        %1916 = vst [vmem:[#allocation2 + $0x188] sm:$0xff] %v1844
        %1917 = vst [vmem:[#allocation2 + $0x190] sm:$0xff] %v1734
        %1918 = vst [vmem:[#allocation2 + $0x198] sm:$0xff] %v1847
        %1919 = vst [vmem:[#allocation2 + $0x1a0] sm:$0xff] %v1737
        %1920 = vst [vmem:[#allocation2 + $0x1a8] sm:$0xff] %v1850
        %1921 = vst [vmem:[#allocation2 + $0x1b0] sm:$0xff] %v1740
        %1922 = vst [vmem:[#allocation2 + $0x1b8] sm:$0xff] %v1853
        %1923 = vst [vmem:[#allocation2 + $0x1c0] sm:$0xff] %v1743
        %1924 = vst [vmem:[#allocation2 + $0x1c8] sm:$0xff] %v1856
        %1925 = vst [vmem:[#allocation2 + $0x1d0] sm:$0xff] %v1746
        %1926 = vst [vmem:[#allocation2 + $0x1d8] sm:$0xff] %v1859
        %1927 = vst [vmem:[#allocation2 + $0x1e0] sm:$0xff] %v1749
        %1928 = vst [vmem:[#allocation2 + $0x1e8] sm:$0xff] %v1862
        %1929 = vst [vmem:[#allocation2 + $0x1f0] sm:$0xff] %v1752
        %1930 = vst [vmem:[#allocation2 + $0x1f8] sm:$0xff] %v1865
        %1931 = vst [vmem:[%s11] sm:$0xf] 0.0
      $region60: #{estimate_adj_forward.1} parent=55 // pred_fallthru
        _
      %v1932 = vld [vmem:[%s403] sm:$0x3]
      %v1933 = vld [vmem:[%s408] sm:$0x3]
      %v1934 = vlaneseq
      %v1935 = vshrl.u32 %v1934, 7
      %v1936 = vadd.s32 %v1935, 8
      %v1937 = vadd.s32 %v1935, 16
      %v1938 = vadd.s32 %v1935, 24
      %v1939 = vadd.s32 %v1935, 32
      %v1940 = vadd.s32 %v1935, 40
      %v1941 = vadd.s32 %v1935, 48
      %v1942 = vadd.s32 %v1935, 56
      %v1943 = vadd.s32 %v1935, 64
      %v1944 = vadd.s32 %v1935, 72
      %v1945 = vadd.s32 %v1935, 80
      %v1946 = vadd.s32 %v1935, 88
      %v1947 = vadd.s32 %v1935, 96
      %v1948 = vadd.s32 %v1935, 104
      %v1949 = vadd.s32 %v1935, 112
      %v1950 = vadd.s32 %v1935, 120
      %v1951 = vadd.s32 %v1935, 128
      %v1952 = vadd.s32 %v1935, 136
      %v1953 = vadd.s32 %v1935, 144
      %v1954 = vadd.s32 %v1935, 152
      %v1955 = vadd.s32 %v1935, 160
      %v1956 = vadd.s32 %v1935, 168
      %v1957 = vadd.s32 %v1935, 176
      %v1958 = vadd.s32 %v1935, 184
      %v1959 = vadd.s32 %v1935, 192
      %v1960 = vadd.s32 %v1935, 200
      %v1961 = vadd.s32 %v1935, 208
      %v1962 = vadd.s32 %v1935, 216
      %v1963 = vadd.s32 %v1935, 224
      %v1964 = vadd.s32 %v1935, 232
      %v1965 = vadd.s32 %v1935, 240
      %v1966 = vadd.s32 %v1935, 248
      %v1967 = vperm.slane %v1933, 0
      %v1968 = vperm.slane %v1933, 1
      %vm1969 = vcmp.eq.s32.totalorder %v1935, %v1967
      %vm1970 = vcmp.eq.s32.totalorder %v1935, %v1968
      %vm1971 = vcmp.eq.s32.totalorder %v1936, %v1967
      %vm1972 = vcmp.eq.s32.totalorder %v1936, %v1968
      %vm1973 = vcmp.eq.s32.totalorder %v1937, %v1967
      %vm1974 = vcmp.eq.s32.totalorder %v1937, %v1968
      %vm1975 = vcmp.eq.s32.totalorder %v1938, %v1967
      %vm1976 = vcmp.eq.s32.totalorder %v1938, %v1968
      %vm1977 = vcmp.eq.s32.totalorder %v1939, %v1967
      %vm1978 = vcmp.eq.s32.totalorder %v1939, %v1968
      %vm1979 = vcmp.eq.s32.totalorder %v1940, %v1967
      %vm1980 = vcmp.eq.s32.totalorder %v1940, %v1968
      %vm1981 = vcmp.eq.s32.totalorder %v1941, %v1967
      %vm1982 = vcmp.eq.s32.totalorder %v1941, %v1968
      %vm1983 = vcmp.eq.s32.totalorder %v1942, %v1967
      %vm1984 = vcmp.eq.s32.totalorder %v1942, %v1968
      %vm1985 = vcmp.eq.s32.totalorder %v1943, %v1967
      %vm1986 = vcmp.eq.s32.totalorder %v1943, %v1968
      %vm1987 = vcmp.eq.s32.totalorder %v1944, %v1967
      %vm1988 = vcmp.eq.s32.totalorder %v1944, %v1968
      %vm1989 = vcmp.eq.s32.totalorder %v1945, %v1967
      %vm1990 = vcmp.eq.s32.totalorder %v1945, %v1968
      %vm1991 = vcmp.eq.s32.totalorder %v1946, %v1967
      %vm1992 = vcmp.eq.s32.totalorder %v1946, %v1968
      %vm1993 = vcmp.eq.s32.totalorder %v1947, %v1967
      %vm1994 = vcmp.eq.s32.totalorder %v1947, %v1968
      %vm1995 = vcmp.eq.s32.totalorder %v1948, %v1967
      %vm1996 = vcmp.eq.s32.totalorder %v1948, %v1968
      %vm1997 = vcmp.eq.s32.totalorder %v1949, %v1967
      %vm1998 = vcmp.eq.s32.totalorder %v1949, %v1968
      %vm1999 = vcmp.eq.s32.totalorder %v1950, %v1967
      %vm2000 = vcmp.eq.s32.totalorder %v1950, %v1968
      %vm2001 = vcmp.eq.s32.totalorder %v1951, %v1967
      %vm2002 = vcmp.eq.s32.totalorder %v1951, %v1968
      %vm2003 = vcmp.eq.s32.totalorder %v1952, %v1967
      %vm2004 = vcmp.eq.s32.totalorder %v1952, %v1968
      %vm2005 = vcmp.eq.s32.totalorder %v1953, %v1967
      %vm2006 = vcmp.eq.s32.totalorder %v1953, %v1968
      %vm2007 = vcmp.eq.s32.totalorder %v1954, %v1967
      %vm2008 = vcmp.eq.s32.totalorder %v1954, %v1968
      %vm2009 = vcmp.eq.s32.totalorder %v1955, %v1967
      %vm2010 = vcmp.eq.s32.totalorder %v1955, %v1968
      %vm2011 = vcmp.eq.s32.totalorder %v1956, %v1967
      %vm2012 = vcmp.eq.s32.totalorder %v1956, %v1968
      %vm2013 = vcmp.eq.s32.totalorder %v1957, %v1967
      %vm2014 = vcmp.eq.s32.totalorder %v1957, %v1968
      %vm2015 = vcmp.eq.s32.totalorder %v1958, %v1967
      %vm2016 = vcmp.eq.s32.totalorder %v1958, %v1968
      %vm2017 = vcmp.eq.s32.totalorder %v1959, %v1967
      %vm2018 = vcmp.eq.s32.totalorder %v1959, %v1968
      %vm2019 = vcmp.eq.s32.totalorder %v1960, %v1967
      %vm2020 = vcmp.eq.s32.totalorder %v1960, %v1968
      %vm2021 = vcmp.eq.s32.totalorder %v1961, %v1967
      %vm2022 = vcmp.eq.s32.totalorder %v1961, %v1968
      %vm2023 = vcmp.eq.s32.totalorder %v1962, %v1967
      %vm2024 = vcmp.eq.s32.totalorder %v1962, %v1968
      %vm2025 = vcmp.eq.s32.totalorder %v1963, %v1967
      %vm2026 = vcmp.eq.s32.totalorder %v1963, %v1968
      %vm2027 = vcmp.eq.s32.totalorder %v1964, %v1967
      %vm2028 = vcmp.eq.s32.totalorder %v1964, %v1968
      %vm2029 = vcmp.eq.s32.totalorder %v1965, %v1967
      %vm2030 = vcmp.eq.s32.totalorder %v1965, %v1968
      %vm2031 = vcmp.eq.s32.totalorder %v1966, %v1967
      %vm2032 = vcmp.eq.s32.totalorder %v1966, %v1968
      %v2033 = vsel %vm1969, 1, 0
      %v2034 = vsel %vm1970, 1, 0
      %v2035 = vsel %vm1971, 1, 0
      %v2036 = vsel %vm1972, 1, 0
      %v2037 = vsel %vm1973, 1, 0
      %v2038 = vsel %vm1974, 1, 0
      %v2039 = vsel %vm1975, 1, 0
      %v2040 = vsel %vm1976, 1, 0
      %v2041 = vsel %vm1977, 1, 0
      %v2042 = vsel %vm1978, 1, 0
      %v2043 = vsel %vm1979, 1, 0
      %v2044 = vsel %vm1980, 1, 0
      %v2045 = vsel %vm1981, 1, 0
      %v2046 = vsel %vm1982, 1, 0
      %v2047 = vsel %vm1983, 1, 0
      %v2048 = vsel %vm1984, 1, 0
      %v2049 = vsel %vm1985, 1, 0
      %v2050 = vsel %vm1986, 1, 0
      %v2051 = vsel %vm1987, 1, 0
      %v2052 = vsel %vm1988, 1, 0
      %v2053 = vsel %vm1989, 1, 0
      %v2054 = vsel %vm1990, 1, 0
      %v2055 = vsel %vm1991, 1, 0
      %v2056 = vsel %vm1992, 1, 0
      %v2057 = vsel %vm1993, 1, 0
      %v2058 = vsel %vm1994, 1, 0
      %v2059 = vsel %vm1995, 1, 0
      %v2060 = vsel %vm1996, 1, 0
      %v2061 = vsel %vm1997, 1, 0
      %v2062 = vsel %vm1998, 1, 0
      %v2063 = vsel %vm1999, 1, 0
      %v2064 = vsel %vm2000, 1, 0
      %v2065 = vsel %vm2001, 1, 0
      %v2066 = vsel %vm2002, 1, 0
      %v2067 = vsel %vm2003, 1, 0
      %v2068 = vsel %vm2004, 1, 0
      %v2069 = vsel %vm2005, 1, 0
      %v2070 = vsel %vm2006, 1, 0
      %v2071 = vsel %vm2007, 1, 0
      %v2072 = vsel %vm2008, 1, 0
      %v2073 = vsel %vm2009, 1, 0
      %v2074 = vsel %vm2010, 1, 0
      %v2075 = vsel %vm2011, 1, 0
      %v2076 = vsel %vm2012, 1, 0
      %v2077 = vsel %vm2013, 1, 0
      %v2078 = vsel %vm2014, 1, 0
      %v2079 = vsel %vm2015, 1, 0
      %v2080 = vsel %vm2016, 1, 0
      %v2081 = vsel %vm2017, 1, 0
      %v2082 = vsel %vm2018, 1, 0
      %v2083 = vsel %vm2019, 1, 0
      %v2084 = vsel %vm2020, 1, 0
      %v2085 = vsel %vm2021, 1, 0
      %v2086 = vsel %vm2022, 1, 0
      %v2087 = vsel %vm2023, 1, 0
      %v2088 = vsel %vm2024, 1, 0
      %v2089 = vsel %vm2025, 1, 0
      %v2090 = vsel %vm2026, 1, 0
      %v2091 = vsel %vm2027, 1, 0
      %v2092 = vsel %vm2028, 1, 0
      %v2093 = vsel %vm2029, 1, 0
      %v2094 = vsel %vm2030, 1, 0
      %v2095 = vsel %vm2031, 1, 0
      %v2096 = vsel %vm2032, 1, 0
      %v2097 = vcvt.s32.f32 %v2033
      %v2098 = vcvt.s32.f32 %v2034
      %v2099 = vcvt.s32.f32 %v2035
      %v2100 = vcvt.s32.f32 %v2036
      %v2101 = vcvt.s32.f32 %v2037
      %v2102 = vcvt.s32.f32 %v2038
      %v2103 = vcvt.s32.f32 %v2039
      %v2104 = vcvt.s32.f32 %v2040
      %v2105 = vcvt.s32.f32 %v2041
      %v2106 = vcvt.s32.f32 %v2042
      %v2107 = vcvt.s32.f32 %v2043
      %v2108 = vcvt.s32.f32 %v2044
      %v2109 = vcvt.s32.f32 %v2045
      %v2110 = vcvt.s32.f32 %v2046
      %v2111 = vcvt.s32.f32 %v2047
      %v2112 = vcvt.s32.f32 %v2048
      %v2113 = vcvt.s32.f32 %v2049
      %v2114 = vcvt.s32.f32 %v2050
      %v2115 = vcvt.s32.f32 %v2051
      %v2116 = vcvt.s32.f32 %v2052
      %v2117 = vcvt.s32.f32 %v2053
      %v2118 = vcvt.s32.f32 %v2054
      %v2119 = vcvt.s32.f32 %v2055
      %v2120 = vcvt.s32.f32 %v2056
      %v2121 = vcvt.s32.f32 %v2057
      %v2122 = vcvt.s32.f32 %v2058
      %v2123 = vcvt.s32.f32 %v2059
      %v2124 = vcvt.s32.f32 %v2060
      %v2125 = vcvt.s32.f32 %v2061
      %v2126 = vcvt.s32.f32 %v2062
      %v2127 = vcvt.s32.f32 %v2063
      %v2128 = vcvt.s32.f32 %v2064
      %v2129 = vcvt.s32.f32 %v2065
      %v2130 = vcvt.s32.f32 %v2066
      %v2131 = vcvt.s32.f32 %v2067
      %v2132 = vcvt.s32.f32 %v2068
      %v2133 = vcvt.s32.f32 %v2069
      %v2134 = vcvt.s32.f32 %v2070
      %v2135 = vcvt.s32.f32 %v2071
      %v2136 = vcvt.s32.f32 %v2072
      %v2137 = vcvt.s32.f32 %v2073
      %v2138 = vcvt.s32.f32 %v2074
      %v2139 = vcvt.s32.f32 %v2075
      %v2140 = vcvt.s32.f32 %v2076
      %v2141 = vcvt.s32.f32 %v2077
      %v2142 = vcvt.s32.f32 %v2078
      %v2143 = vcvt.s32.f32 %v2079
      %v2144 = vcvt.s32.f32 %v2080
      %v2145 = vcvt.s32.f32 %v2081
      %v2146 = vcvt.s32.f32 %v2082
      %v2147 = vcvt.s32.f32 %v2083
      %v2148 = vcvt.s32.f32 %v2084
      %v2149 = vcvt.s32.f32 %v2085
      %v2150 = vcvt.s32.f32 %v2086
      %v2151 = vcvt.s32.f32 %v2087
      %v2152 = vcvt.s32.f32 %v2088
      %v2153 = vcvt.s32.f32 %v2089
      %v2154 = vcvt.s32.f32 %v2090
      %v2155 = vcvt.s32.f32 %v2091
      %v2156 = vcvt.s32.f32 %v2092
      %v2157 = vcvt.s32.f32 %v2093
      %v2158 = vcvt.s32.f32 %v2094
      %v2159 = vcvt.s32.f32 %v2095
      %v2160 = vcvt.s32.f32 %v2096
      %v2161 = vld [vmem:[#allocation2] sm:$0xff]
      %v2162 = vld [vmem:[#allocation2 + $0x8] sm:$0xff]
      %v2163 = vld [vmem:[#allocation2 + $0x10] sm:$0xff]
      %v2164 = vld [vmem:[#allocation2 + $0x18] sm:$0xff]
      %v2165 = vld [vmem:[#allocation2 + $0x20] sm:$0xff]
      %v2166 = vld [vmem:[#allocation2 + $0x28] sm:$0xff]
      %v2167 = vld [vmem:[#allocation2 + $0x30] sm:$0xff]
      %v2168 = vld [vmem:[#allocation2 + $0x38] sm:$0xff]
      %v2169 = vld [vmem:[#allocation2 + $0x40] sm:$0xff]
      %v2170 = vld [vmem:[#allocation2 + $0x48] sm:$0xff]
      %v2171 = vld [vmem:[#allocation2 + $0x50] sm:$0xff]
      %v2172 = vld [vmem:[#allocation2 + $0x58] sm:$0xff]
      %v2173 = vld [vmem:[#allocation2 + $0x60] sm:$0xff]
      %v2174 = vld [vmem:[#allocation2 + $0x68] sm:$0xff]
      %v2175 = vld [vmem:[#allocation2 + $0x70] sm:$0xff]
      %v2176 = vld [vmem:[#allocation2 + $0x78] sm:$0xff]
      %v2177 = vld [vmem:[#allocation2 + $0x80] sm:$0xff]
      %v2178 = vld [vmem:[#allocation2 + $0x88] sm:$0xff]
      %v2179 = vld [vmem:[#allocation2 + $0x90] sm:$0xff]
      %v2180 = vld [vmem:[#allocation2 + $0x98] sm:$0xff]
      %v2181 = vld [vmem:[#allocation2 + $0xa0] sm:$0xff]
      %v2182 = vld [vmem:[#allocation2 + $0xa8] sm:$0xff]
      %v2183 = vld [vmem:[#allocation2 + $0xb0] sm:$0xff]
      %v2184 = vld [vmem:[#allocation2 + $0xb8] sm:$0xff]
      %v2185 = vld [vmem:[#allocation2 + $0xc0] sm:$0xff]
      %v2186 = vld [vmem:[#allocation2 + $0xc8] sm:$0xff]
      %v2187 = vld [vmem:[#allocation2 + $0xd0] sm:$0xff]
      %v2188 = vld [vmem:[#allocation2 + $0xd8] sm:$0xff]
      %v2189 = vld [vmem:[#allocation2 + $0xe0] sm:$0xff]
      %v2190 = vld [vmem:[#allocation2 + $0xe8] sm:$0xff]
      %v2191 = vld [vmem:[#allocation2 + $0xf0] sm:$0xff]
      %v2192 = vld [vmem:[#allocation2 + $0xf8] sm:$0xff]
      %v2193 = vld [vmem:[#allocation2 + $0x100] sm:$0xff]
      %v2194 = vld [vmem:[#allocation2 + $0x108] sm:$0xff]
      %v2195 = vld [vmem:[#allocation2 + $0x110] sm:$0xff]
      %v2196 = vld [vmem:[#allocation2 + $0x118] sm:$0xff]
      %v2197 = vld [vmem:[#allocation2 + $0x120] sm:$0xff]
      %v2198 = vld [vmem:[#allocation2 + $0x128] sm:$0xff]
      %v2199 = vld [vmem:[#allocation2 + $0x130] sm:$0xff]
      %v2200 = vld [vmem:[#allocation2 + $0x138] sm:$0xff]
      %v2201 = vld [vmem:[#allocation2 + $0x140] sm:$0xff]
      %v2202 = vld [vmem:[#allocation2 + $0x148] sm:$0xff]
      %v2203 = vld [vmem:[#allocation2 + $0x150] sm:$0xff]
      %v2204 = vld [vmem:[#allocation2 + $0x158] sm:$0xff]
      %v2205 = vld [vmem:[#allocation2 + $0x160] sm:$0xff]
      %v2206 = vld [vmem:[#allocation2 + $0x168] sm:$0xff]
      %v2207 = vld [vmem:[#allocation2 + $0x170] sm:$0xff]
      %v2208 = vld [vmem:[#allocation2 + $0x178] sm:$0xff]
      %v2209 = vld [vmem:[#allocation2 + $0x180] sm:$0xff]
      %v2210 = vld [vmem:[#allocation2 + $0x188] sm:$0xff]
      %v2211 = vld [vmem:[#allocation2 + $0x190] sm:$0xff]
      %v2212 = vld [vmem:[#allocation2 + $0x198] sm:$0xff]
      %v2213 = vld [vmem:[#allocation2 + $0x1a0] sm:$0xff]
      %v2214 = vld [vmem:[#allocation2 + $0x1a8] sm:$0xff]
      %v2215 = vld [vmem:[#allocation2 + $0x1b0] sm:$0xff]
      %v2216 = vld [vmem:[#allocation2 + $0x1b8] sm:$0xff]
      %v2217 = vld [vmem:[#allocation2 + $0x1c0] sm:$0xff]
      %v2218 = vld [vmem:[#allocation2 + $0x1c8] sm:$0xff]
      %v2219 = vld [vmem:[#allocation2 + $0x1d0] sm:$0xff]
      %v2220 = vld [vmem:[#allocation2 + $0x1d8] sm:$0xff]
      %v2221 = vld [vmem:[#allocation2 + $0x1e0] sm:$0xff]
      %v2222 = vld [vmem:[#allocation2 + $0x1e8] sm:$0xff]
      %v2223 = vld [vmem:[#allocation2 + $0x1f0] sm:$0xff]
      %v2224 = vld [vmem:[#allocation2 + $0x1f8] sm:$0xff]
      %2225 = vmatpush.msra.mxu0 %v2127
      %2226 = vmatpush.msra.mxu0 %v2125
      %2227 = vmatpush.msra.mxu0 %v2123
      %2228 = vmatpush.msra.mxu0 %v2121
      %2229 = vmatpush.msra.mxu0 %v2119
      %2230 = vmatpush.msra.mxu0 %v2117
      %2231 = vmatpush.msra.mxu0 %v2115
      %2232 = vmatpush.msra.mxu0 %v2113
      %2233 = vmatpush.msra.mxu0 %v2111
      %2234 = vmatpush.msra.mxu0 %v2109
      %2235 = vmatpush.msra.mxu0 %v2107
      %2236 = vmatpush.msra.mxu0 %v2105
      %2237 = vmatpush.msra.mxu0 %v2103
      %2238 = vmatpush.msra.mxu0 %v2101
      %2239 = vmatpush.msra.mxu0 %v2099
      %2240 = vmatpush.msra.mxu0 %v2097
      %2241 = vmatmul.f32.gmra.mxu0 %v2161
      %v2242 = vpop.f32.mrf.mxu0
      %v2243 = vadd.f32 0.0, %v2242
      %2244 = vmatmul.f32.gmra.mxu0 %v2163
      %v2245 = vpop.f32.mrf.mxu0
      %v2246 = vadd.f32 0.0, %v2245
      %2247 = vmatmul.f32.gmra.mxu0 %v2165
      %v2248 = vpop.f32.mrf.mxu0
      %v2249 = vadd.f32 0.0, %v2248
      %2250 = vmatmul.f32.gmra.mxu0 %v2167
      %v2251 = vpop.f32.mrf.mxu0
      %v2252 = vadd.f32 0.0, %v2251
      %2253 = vmatmul.f32.gmra.mxu0 %v2169
      %v2254 = vpop.f32.mrf.mxu0
      %v2255 = vadd.f32 0.0, %v2254
      %2256 = vmatmul.f32.gmra.mxu0 %v2171
      %v2257 = vpop.f32.mrf.mxu0
      %v2258 = vadd.f32 0.0, %v2257
      %2259 = vmatmul.f32.gmra.mxu0 %v2173
      %v2260 = vpop.f32.mrf.mxu0
      %v2261 = vadd.f32 0.0, %v2260
      %2262 = vmatmul.f32.gmra.mxu0 %v2175
      %v2263 = vpop.f32.mrf.mxu0
      %v2264 = vadd.f32 0.0, %v2263
      %2265 = vmatmul.f32.gmra.mxu0 %v2177
      %v2266 = vpop.f32.mrf.mxu0
      %v2267 = vadd.f32 0.0, %v2266
      %2268 = vmatmul.f32.gmra.mxu0 %v2179
      %v2269 = vpop.f32.mrf.mxu0
      %v2270 = vadd.f32 0.0, %v2269
      %2271 = vmatmul.f32.gmra.mxu0 %v2181
      %v2272 = vpop.f32.mrf.mxu0
      %v2273 = vadd.f32 0.0, %v2272
      %2274 = vmatmul.f32.gmra.mxu0 %v2183
      %v2275 = vpop.f32.mrf.mxu0
      %v2276 = vadd.f32 0.0, %v2275
      %2277 = vmatmul.f32.gmra.mxu0 %v2185
      %v2278 = vpop.f32.mrf.mxu0
      %v2279 = vadd.f32 0.0, %v2278
      %2280 = vmatmul.f32.gmra.mxu0 %v2187
      %v2281 = vpop.f32.mrf.mxu0
      %v2282 = vadd.f32 0.0, %v2281
      %2283 = vmatmul.f32.gmra.mxu0 %v2189
      %v2284 = vpop.f32.mrf.mxu0
      %v2285 = vadd.f32 0.0, %v2284
      %2286 = vmatmul.f32.gmra.mxu0 %v2191
      %v2287 = vpop.f32.mrf.mxu0
      %v2288 = vadd.f32 0.0, %v2287
      %2289 = vmatmul.f32.gmra.mxu0 %v2193
      %v2290 = vpop.f32.mrf.mxu0
      %v2291 = vadd.f32 0.0, %v2290
      %2292 = vmatmul.f32.gmra.mxu0 %v2195
      %v2293 = vpop.f32.mrf.mxu0
      %v2294 = vadd.f32 0.0, %v2293
      %2295 = vmatmul.f32.gmra.mxu0 %v2197
      %v2296 = vpop.f32.mrf.mxu0
      %v2297 = vadd.f32 0.0, %v2296
      %2298 = vmatmul.f32.gmra.mxu0 %v2199
      %v2299 = vpop.f32.mrf.mxu0
      %v2300 = vadd.f32 0.0, %v2299
      %2301 = vmatmul.f32.gmra.mxu0 %v2201
      %v2302 = vpop.f32.mrf.mxu0
      %v2303 = vadd.f32 0.0, %v2302
      %2304 = vmatmul.f32.gmra.mxu0 %v2203
      %v2305 = vpop.f32.mrf.mxu0
      %v2306 = vadd.f32 0.0, %v2305
      %2307 = vmatmul.f32.gmra.mxu0 %v2205
      %v2308 = vpop.f32.mrf.mxu0
      %v2309 = vadd.f32 0.0, %v2308
      %2310 = vmatmul.f32.gmra.mxu0 %v2207
      %v2311 = vpop.f32.mrf.mxu0
      %v2312 = vadd.f32 0.0, %v2311
      %2313 = vmatmul.f32.gmra.mxu0 %v2209
      %v2314 = vpop.f32.mrf.mxu0
      %v2315 = vadd.f32 0.0, %v2314
      %2316 = vmatmul.f32.gmra.mxu0 %v2211
      %v2317 = vpop.f32.mrf.mxu0
      %v2318 = vadd.f32 0.0, %v2317
      %2319 = vmatmul.f32.gmra.mxu0 %v2213
      %v2320 = vpop.f32.mrf.mxu0
      %v2321 = vadd.f32 0.0, %v2320
      %2322 = vmatmul.f32.gmra.mxu0 %v2215
      %v2323 = vpop.f32.mrf.mxu0
      %v2324 = vadd.f32 0.0, %v2323
      %2325 = vmatmul.f32.gmra.mxu0 %v2217
      %v2326 = vpop.f32.mrf.mxu0
      %v2327 = vadd.f32 0.0, %v2326
      %2328 = vmatmul.f32.gmra.mxu0 %v2219
      %v2329 = vpop.f32.mrf.mxu0
      %v2330 = vadd.f32 0.0, %v2329
      %2331 = vmatmul.f32.gmra.mxu0 %v2221
      %v2332 = vpop.f32.mrf.mxu0
      %v2333 = vadd.f32 0.0, %v2332
      %2334 = vmatmul.f32.gmra.mxu0 %v2223
      %v2335 = vpop.f32.mrf.mxu0
      %v2336 = vadd.f32 0.0, %v2335
      %2337 = vdwg.mxu0
      %2338 = vmatpush.msra.mxu0 %v2159
      %2339 = vmatpush.msra.mxu0 %v2157
      %2340 = vmatpush.msra.mxu0 %v2155
      %2341 = vmatpush.msra.mxu0 %v2153
      %2342 = vmatpush.msra.mxu0 %v2151
      %2343 = vmatpush.msra.mxu0 %v2149
      %2344 = vmatpush.msra.mxu0 %v2147
      %2345 = vmatpush.msra.mxu0 %v2145
      %2346 = vmatpush.msra.mxu0 %v2143
      %2347 = vmatpush.msra.mxu0 %v2141
      %2348 = vmatpush.msra.mxu0 %v2139
      %2349 = vmatpush.msra.mxu0 %v2137
      %2350 = vmatpush.msra.mxu0 %v2135
      %2351 = vmatpush.msra.mxu0 %v2133
      %2352 = vmatpush.msra.mxu0 %v2131
      %2353 = vmatpush.msra.mxu0 %v2129
      %2354 = vmatmul.f32.gmra.mxu0 %v2162
      %v2355 = vpop.f32.mrf.mxu0
      %v2356 = vadd.f32 %v2243, %v2355
      %2357 = vmatmul.f32.gmra.mxu0 %v2164
      %v2358 = vpop.f32.mrf.mxu0
      %v2359 = vadd.f32 %v2246, %v2358
      %2360 = vmatmul.f32.gmra.mxu0 %v2166
      %v2361 = vpop.f32.mrf.mxu0
      %v2362 = vadd.f32 %v2249, %v2361
      %2363 = vmatmul.f32.gmra.mxu0 %v2168
      %v2364 = vpop.f32.mrf.mxu0
      %v2365 = vadd.f32 %v2252, %v2364
      %2366 = vmatmul.f32.gmra.mxu0 %v2170
      %v2367 = vpop.f32.mrf.mxu0
      %v2368 = vadd.f32 %v2255, %v2367
      %2369 = vmatmul.f32.gmra.mxu0 %v2172
      %v2370 = vpop.f32.mrf.mxu0
      %v2371 = vadd.f32 %v2258, %v2370
      %2372 = vmatmul.f32.gmra.mxu0 %v2174
      %v2373 = vpop.f32.mrf.mxu0
      %v2374 = vadd.f32 %v2261, %v2373
      %2375 = vmatmul.f32.gmra.mxu0 %v2176
      %v2376 = vpop.f32.mrf.mxu0
      %v2377 = vadd.f32 %v2264, %v2376
      %2378 = vmatmul.f32.gmra.mxu0 %v2178
      %v2379 = vpop.f32.mrf.mxu0
      %v2380 = vadd.f32 %v2267, %v2379
      %2381 = vmatmul.f32.gmra.mxu0 %v2180
      %v2382 = vpop.f32.mrf.mxu0
      %v2383 = vadd.f32 %v2270, %v2382
      %2384 = vmatmul.f32.gmra.mxu0 %v2182
      %v2385 = vpop.f32.mrf.mxu0
      %v2386 = vadd.f32 %v2273, %v2385
      %2387 = vmatmul.f32.gmra.mxu0 %v2184
      %v2388 = vpop.f32.mrf.mxu0
      %v2389 = vadd.f32 %v2276, %v2388
      %2390 = vmatmul.f32.gmra.mxu0 %v2186
      %v2391 = vpop.f32.mrf.mxu0
      %v2392 = vadd.f32 %v2279, %v2391
      %2393 = vmatmul.f32.gmra.mxu0 %v2188
      %v2394 = vpop.f32.mrf.mxu0
      %v2395 = vadd.f32 %v2282, %v2394
      %2396 = vmatmul.f32.gmra.mxu0 %v2190
      %v2397 = vpop.f32.mrf.mxu0
      %v2398 = vadd.f32 %v2285, %v2397
      %2399 = vmatmul.f32.gmra.mxu0 %v2192
      %v2400 = vpop.f32.mrf.mxu0
      %v2401 = vadd.f32 %v2288, %v2400
      %2402 = vmatmul.f32.gmra.mxu0 %v2194
      %v2403 = vpop.f32.mrf.mxu0
      %v2404 = vadd.f32 %v2291, %v2403
      %2405 = vmatmul.f32.gmra.mxu0 %v2196
      %v2406 = vpop.f32.mrf.mxu0
      %v2407 = vadd.f32 %v2294, %v2406
      %2408 = vmatmul.f32.gmra.mxu0 %v2198
      %v2409 = vpop.f32.mrf.mxu0
      %v2410 = vadd.f32 %v2297, %v2409
      %2411 = vmatmul.f32.gmra.mxu0 %v2200
      %v2412 = vpop.f32.mrf.mxu0
      %v2413 = vadd.f32 %v2300, %v2412
      %2414 = vmatmul.f32.gmra.mxu0 %v2202
      %v2415 = vpop.f32.mrf.mxu0
      %v2416 = vadd.f32 %v2303, %v2415
      %2417 = vmatmul.f32.gmra.mxu0 %v2204
      %v2418 = vpop.f32.mrf.mxu0
      %v2419 = vadd.f32 %v2306, %v2418
      %2420 = vmatmul.f32.gmra.mxu0 %v2206
      %v2421 = vpop.f32.mrf.mxu0
      %v2422 = vadd.f32 %v2309, %v2421
      %2423 = vmatmul.f32.gmra.mxu0 %v2208
      %v2424 = vpop.f32.mrf.mxu0
      %v2425 = vadd.f32 %v2312, %v2424
      %2426 = vmatmul.f32.gmra.mxu0 %v2210
      %v2427 = vpop.f32.mrf.mxu0
      %v2428 = vadd.f32 %v2315, %v2427
      %2429 = vmatmul.f32.gmra.mxu0 %v2212
      %v2430 = vpop.f32.mrf.mxu0
      %v2431 = vadd.f32 %v2318, %v2430
      %2432 = vmatmul.f32.gmra.mxu0 %v2214
      %v2433 = vpop.f32.mrf.mxu0
      %v2434 = vadd.f32 %v2321, %v2433
      %2435 = vmatmul.f32.gmra.mxu0 %v2216
      %v2436 = vpop.f32.mrf.mxu0
      %v2437 = vadd.f32 %v2324, %v2436
      %2438 = vmatmul.f32.gmra.mxu0 %v2218
      %v2439 = vpop.f32.mrf.mxu0
      %v2440 = vadd.f32 %v2327, %v2439
      %2441 = vmatmul.f32.gmra.mxu0 %v2220
      %v2442 = vpop.f32.mrf.mxu0
      %v2443 = vadd.f32 %v2330, %v2442
      %2444 = vmatmul.f32.gmra.mxu0 %v2222
      %v2445 = vpop.f32.mrf.mxu0
      %v2446 = vadd.f32 %v2333, %v2445
      %2447 = vmatmul.f32.gmra.mxu0 %v2224
      %v2448 = vpop.f32.mrf.mxu0
      %v2449 = vadd.f32 %v2336, %v2448
      %2450 = vdwg.mxu0
      %2451 = vmatpush.msra.mxu0 %v2128
      %2452 = vmatpush.msra.mxu0 %v2126
      %2453 = vmatpush.msra.mxu0 %v2124
      %2454 = vmatpush.msra.mxu0 %v2122
      %2455 = vmatpush.msra.mxu0 %v2120
      %2456 = vmatpush.msra.mxu0 %v2118
      %2457 = vmatpush.msra.mxu0 %v2116
      %2458 = vmatpush.msra.mxu0 %v2114
      %2459 = vmatpush.msra.mxu0 %v2112
      %2460 = vmatpush.msra.mxu0 %v2110
      %2461 = vmatpush.msra.mxu0 %v2108
      %2462 = vmatpush.msra.mxu0 %v2106
      %2463 = vmatpush.msra.mxu0 %v2104
      %2464 = vmatpush.msra.mxu0 %v2102
      %2465 = vmatpush.msra.mxu0 %v2100
      %2466 = vmatpush.msra.mxu0 %v2098
      %2467 = vmatmul.f32.gmra.mxu0 %v2161
      %v2468 = vpop.f32.mrf.mxu0
      %v2469 = vadd.f32 0.0, %v2468
      %2470 = vmatmul.f32.gmra.mxu0 %v2163
      %v2471 = vpop.f32.mrf.mxu0
      %v2472 = vadd.f32 0.0, %v2471
      %2473 = vmatmul.f32.gmra.mxu0 %v2165
      %v2474 = vpop.f32.mrf.mxu0
      %v2475 = vadd.f32 0.0, %v2474
      %2476 = vmatmul.f32.gmra.mxu0 %v2167
      %v2477 = vpop.f32.mrf.mxu0
      %v2478 = vadd.f32 0.0, %v2477
      %2479 = vmatmul.f32.gmra.mxu0 %v2169
      %v2480 = vpop.f32.mrf.mxu0
      %v2481 = vadd.f32 0.0, %v2480
      %2482 = vmatmul.f32.gmra.mxu0 %v2171
      %v2483 = vpop.f32.mrf.mxu0
      %v2484 = vadd.f32 0.0, %v2483
      %2485 = vmatmul.f32.gmra.mxu0 %v2173
      %v2486 = vpop.f32.mrf.mxu0
      %v2487 = vadd.f32 0.0, %v2486
      %2488 = vmatmul.f32.gmra.mxu0 %v2175
      %v2489 = vpop.f32.mrf.mxu0
      %v2490 = vadd.f32 0.0, %v2489
      %2491 = vmatmul.f32.gmra.mxu0 %v2177
      %v2492 = vpop.f32.mrf.mxu0
      %v2493 = vadd.f32 0.0, %v2492
      %2494 = vmatmul.f32.gmra.mxu0 %v2179
      %v2495 = vpop.f32.mrf.mxu0
      %v2496 = vadd.f32 0.0, %v2495
      %2497 = vmatmul.f32.gmra.mxu0 %v2181
      %v2498 = vpop.f32.mrf.mxu0
      %v2499 = vadd.f32 0.0, %v2498
      %2500 = vmatmul.f32.gmra.mxu0 %v2183
      %v2501 = vpop.f32.mrf.mxu0
      %v2502 = vadd.f32 0.0, %v2501
      %2503 = vmatmul.f32.gmra.mxu0 %v2185
      %v2504 = vpop.f32.mrf.mxu0
      %v2505 = vadd.f32 0.0, %v2504
      %2506 = vmatmul.f32.gmra.mxu0 %v2187
      %v2507 = vpop.f32.mrf.mxu0
      %v2508 = vadd.f32 0.0, %v2507
      %2509 = vmatmul.f32.gmra.mxu0 %v2189
      %v2510 = vpop.f32.mrf.mxu0
      %v2511 = vadd.f32 0.0, %v2510
      %2512 = vmatmul.f32.gmra.mxu0 %v2191
      %v2513 = vpop.f32.mrf.mxu0
      %v2514 = vadd.f32 0.0, %v2513
      %2515 = vmatmul.f32.gmra.mxu0 %v2193
      %v2516 = vpop.f32.mrf.mxu0
      %v2517 = vadd.f32 0.0, %v2516
      %2518 = vmatmul.f32.gmra.mxu0 %v2195
      %v2519 = vpop.f32.mrf.mxu0
      %v2520 = vadd.f32 0.0, %v2519
      %2521 = vmatmul.f32.gmra.mxu0 %v2197
      %v2522 = vpop.f32.mrf.mxu0
      %v2523 = vadd.f32 0.0, %v2522
      %2524 = vmatmul.f32.gmra.mxu0 %v2199
      %v2525 = vpop.f32.mrf.mxu0
      %v2526 = vadd.f32 0.0, %v2525
      %2527 = vmatmul.f32.gmra.mxu0 %v2201
      %v2528 = vpop.f32.mrf.mxu0
      %v2529 = vadd.f32 0.0, %v2528
      %2530 = vmatmul.f32.gmra.mxu0 %v2203
      %v2531 = vpop.f32.mrf.mxu0
      %v2532 = vadd.f32 0.0, %v2531
      %2533 = vmatmul.f32.gmra.mxu0 %v2205
      %v2534 = vpop.f32.mrf.mxu0
      %v2535 = vadd.f32 0.0, %v2534
      %2536 = vmatmul.f32.gmra.mxu0 %v2207
      %v2537 = vpop.f32.mrf.mxu0
      %v2538 = vadd.f32 0.0, %v2537
      %2539 = vmatmul.f32.gmra.mxu0 %v2209
      %v2540 = vpop.f32.mrf.mxu0
      %v2541 = vadd.f32 0.0, %v2540
      %2542 = vmatmul.f32.gmra.mxu0 %v2211
      %v2543 = vpop.f32.mrf.mxu0
      %v2544 = vadd.f32 0.0, %v2543
      %2545 = vmatmul.f32.gmra.mxu0 %v2213
      %v2546 = vpop.f32.mrf.mxu0
      %v2547 = vadd.f32 0.0, %v2546
      %2548 = vmatmul.f32.gmra.mxu0 %v2215
      %v2549 = vpop.f32.mrf.mxu0
      %v2550 = vadd.f32 0.0, %v2549
      %2551 = vmatmul.f32.gmra.mxu0 %v2217
      %v2552 = vpop.f32.mrf.mxu0
      %v2553 = vadd.f32 0.0, %v2552
      %2554 = vmatmul.f32.gmra.mxu0 %v2219
      %v2555 = vpop.f32.mrf.mxu0
      %v2556 = vadd.f32 0.0, %v2555
      %2557 = vmatmul.f32.gmra.mxu0 %v2221
      %v2558 = vpop.f32.mrf.mxu0
      %v2559 = vadd.f32 0.0, %v2558
      %2560 = vmatmul.f32.gmra.mxu0 %v2223
      %v2561 = vpop.f32.mrf.mxu0
      %v2562 = vadd.f32 0.0, %v2561
      %2563 = vdwg.mxu0
      %2564 = vmatpush.msra.mxu0 %v2160
      %2565 = vmatpush.msra.mxu0 %v2158
      %2566 = vmatpush.msra.mxu0 %v2156
      %2567 = vmatpush.msra.mxu0 %v2154
      %2568 = vmatpush.msra.mxu0 %v2152
      %2569 = vmatpush.msra.mxu0 %v2150
      %2570 = vmatpush.msra.mxu0 %v2148
      %2571 = vmatpush.msra.mxu0 %v2146
      %2572 = vmatpush.msra.mxu0 %v2144
      %2573 = vmatpush.msra.mxu0 %v2142
      %2574 = vmatpush.msra.mxu0 %v2140
      %2575 = vmatpush.msra.mxu0 %v2138
      %2576 = vmatpush.msra.mxu0 %v2136
      %2577 = vmatpush.msra.mxu0 %v2134
      %2578 = vmatpush.msra.mxu0 %v2132
      %2579 = vmatpush.msra.mxu0 %v2130
      %2580 = vmatmul.f32.gmra.mxu0 %v2162
      %v2581 = vpop.f32.mrf.mxu0
      %v2582 = vadd.f32 %v2469, %v2581
      %2583 = vmatmul.f32.gmra.mxu0 %v2164
      %v2584 = vpop.f32.mrf.mxu0
      %v2585 = vadd.f32 %v2472, %v2584
      %2586 = vmatmul.f32.gmra.mxu0 %v2166
      %v2587 = vpop.f32.mrf.mxu0
      %v2588 = vadd.f32 %v2475, %v2587
      %2589 = vmatmul.f32.gmra.mxu0 %v2168
      %v2590 = vpop.f32.mrf.mxu0
      %v2591 = vadd.f32 %v2478, %v2590
      %2592 = vmatmul.f32.gmra.mxu0 %v2170
      %v2593 = vpop.f32.mrf.mxu0
      %v2594 = vadd.f32 %v2481, %v2593
      %2595 = vmatmul.f32.gmra.mxu0 %v2172
      %v2596 = vpop.f32.mrf.mxu0
      %v2597 = vadd.f32 %v2484, %v2596
      %2598 = vmatmul.f32.gmra.mxu0 %v2174
      %v2599 = vpop.f32.mrf.mxu0
      %v2600 = vadd.f32 %v2487, %v2599
      %2601 = vmatmul.f32.gmra.mxu0 %v2176
      %v2602 = vpop.f32.mrf.mxu0
      %v2603 = vadd.f32 %v2490, %v2602
      %2604 = vmatmul.f32.gmra.mxu0 %v2178
      %v2605 = vpop.f32.mrf.mxu0
      %v2606 = vadd.f32 %v2493, %v2605
      %2607 = vmatmul.f32.gmra.mxu0 %v2180
      %v2608 = vpop.f32.mrf.mxu0
      %v2609 = vadd.f32 %v2496, %v2608
      %2610 = vmatmul.f32.gmra.mxu0 %v2182
      %v2611 = vpop.f32.mrf.mxu0
      %v2612 = vadd.f32 %v2499, %v2611
      %2613 = vmatmul.f32.gmra.mxu0 %v2184
      %v2614 = vpop.f32.mrf.mxu0
      %v2615 = vadd.f32 %v2502, %v2614
      %2616 = vmatmul.f32.gmra.mxu0 %v2186
      %v2617 = vpop.f32.mrf.mxu0
      %v2618 = vadd.f32 %v2505, %v2617
      %2619 = vmatmul.f32.gmra.mxu0 %v2188
      %v2620 = vpop.f32.mrf.mxu0
      %v2621 = vadd.f32 %v2508, %v2620
      %2622 = vmatmul.f32.gmra.mxu0 %v2190
      %v2623 = vpop.f32.mrf.mxu0
      %v2624 = vadd.f32 %v2511, %v2623
      %2625 = vmatmul.f32.gmra.mxu0 %v2192
      %v2626 = vpop.f32.mrf.mxu0
      %v2627 = vadd.f32 %v2514, %v2626
      %2628 = vmatmul.f32.gmra.mxu0 %v2194
      %v2629 = vpop.f32.mrf.mxu0
      %v2630 = vadd.f32 %v2517, %v2629
      %2631 = vmatmul.f32.gmra.mxu0 %v2196
      %v2632 = vpop.f32.mrf.mxu0
      %v2633 = vadd.f32 %v2520, %v2632
      %2634 = vmatmul.f32.gmra.mxu0 %v2198
      %v2635 = vpop.f32.mrf.mxu0
      %v2636 = vadd.f32 %v2523, %v2635
      %2637 = vmatmul.f32.gmra.mxu0 %v2200
      %v2638 = vpop.f32.mrf.mxu0
      %v2639 = vadd.f32 %v2526, %v2638
      %2640 = vmatmul.f32.gmra.mxu0 %v2202
      %v2641 = vpop.f32.mrf.mxu0
      %v2642 = vadd.f32 %v2529, %v2641
      %2643 = vmatmul.f32.gmra.mxu0 %v2204
      %v2644 = vpop.f32.mrf.mxu0
      %v2645 = vadd.f32 %v2532, %v2644
      %2646 = vmatmul.f32.gmra.mxu0 %v2206
      %v2647 = vpop.f32.mrf.mxu0
      %v2648 = vadd.f32 %v2535, %v2647
      %2649 = vmatmul.f32.gmra.mxu0 %v2208
      %v2650 = vpop.f32.mrf.mxu0
      %v2651 = vadd.f32 %v2538, %v2650
      %2652 = vmatmul.f32.gmra.mxu0 %v2210
      %v2653 = vpop.f32.mrf.mxu0
      %v2654 = vadd.f32 %v2541, %v2653
      %2655 = vmatmul.f32.gmra.mxu0 %v2212
      %v2656 = vpop.f32.mrf.mxu0
      %v2657 = vadd.f32 %v2544, %v2656
      %2658 = vmatmul.f32.gmra.mxu0 %v2214
      %v2659 = vpop.f32.mrf.mxu0
      %v2660 = vadd.f32 %v2547, %v2659
      %2661 = vmatmul.f32.gmra.mxu0 %v2216
      %v2662 = vpop.f32.mrf.mxu0
      %v2663 = vadd.f32 %v2550, %v2662
      %2664 = vmatmul.f32.gmra.mxu0 %v2218
      %v2665 = vpop.f32.mrf.mxu0
      %v2666 = vadd.f32 %v2553, %v2665
      %2667 = vmatmul.f32.gmra.mxu0 %v2220
      %v2668 = vpop.f32.mrf.mxu0
      %v2669 = vadd.f32 %v2556, %v2668
      %2670 = vmatmul.f32.gmra.mxu0 %v2222
      %v2671 = vpop.f32.mrf.mxu0
      %v2672 = vadd.f32 %v2559, %v2671
      %2673 = vmatmul.f32.gmra.mxu0 %v2224
      %v2674 = vpop.f32.mrf.mxu0
      %v2675 = vadd.f32 %v2562, %v2674
      %2676 = vdwg.mxu0
      %v2677 = vperm.slane %v1932, 0
      %v2678 = vperm.slane %v1932, 1
      %vm2679 = vcmp.eq.s32.totalorder %v1935, %v2677
      %vm2680 = vcmp.eq.s32.totalorder %v1935, %v2678
      %vm2681 = vcmp.eq.s32.totalorder %v1936, %v2677
      %vm2682 = vcmp.eq.s32.totalorder %v1936, %v2678
      %vm2683 = vcmp.eq.s32.totalorder %v1937, %v2677
      %vm2684 = vcmp.eq.s32.totalorder %v1937, %v2678
      %vm2685 = vcmp.eq.s32.totalorder %v1938, %v2677
      %vm2686 = vcmp.eq.s32.totalorder %v1938, %v2678
      %vm2687 = vcmp.eq.s32.totalorder %v1939, %v2677
      %vm2688 = vcmp.eq.s32.totalorder %v1939, %v2678
      %vm2689 = vcmp.eq.s32.totalorder %v1940, %v2677
      %vm2690 = vcmp.eq.s32.totalorder %v1940, %v2678
      %vm2691 = vcmp.eq.s32.totalorder %v1941, %v2677
      %vm2692 = vcmp.eq.s32.totalorder %v1941, %v2678
      %vm2693 = vcmp.eq.s32.totalorder %v1942, %v2677
      %vm2694 = vcmp.eq.s32.totalorder %v1942, %v2678
      %vm2695 = vcmp.eq.s32.totalorder %v1943, %v2677
      %vm2696 = vcmp.eq.s32.totalorder %v1943, %v2678
      %vm2697 = vcmp.eq.s32.totalorder %v1944, %v2677
      %vm2698 = vcmp.eq.s32.totalorder %v1944, %v2678
      %vm2699 = vcmp.eq.s32.totalorder %v1945, %v2677
      %vm2700 = vcmp.eq.s32.totalorder %v1945, %v2678
      %vm2701 = vcmp.eq.s32.totalorder %v1946, %v2677
      %vm2702 = vcmp.eq.s32.totalorder %v1946, %v2678
      %vm2703 = vcmp.eq.s32.totalorder %v1947, %v2677
      %vm2704 = vcmp.eq.s32.totalorder %v1947, %v2678
      %vm2705 = vcmp.eq.s32.totalorder %v1948, %v2677
      %vm2706 = vcmp.eq.s32.totalorder %v1948, %v2678
      %vm2707 = vcmp.eq.s32.totalorder %v1949, %v2677
      %vm2708 = vcmp.eq.s32.totalorder %v1949, %v2678
      %vm2709 = vcmp.eq.s32.totalorder %v1950, %v2677
      %vm2710 = vcmp.eq.s32.totalorder %v1950, %v2678
      %vm2711 = vcmp.eq.s32.totalorder %v1951, %v2677
      %vm2712 = vcmp.eq.s32.totalorder %v1951, %v2678
      %vm2713 = vcmp.eq.s32.totalorder %v1952, %v2677
      %vm2714 = vcmp.eq.s32.totalorder %v1952, %v2678
      %vm2715 = vcmp.eq.s32.totalorder %v1953, %v2677
      %vm2716 = vcmp.eq.s32.totalorder %v1953, %v2678
      %vm2717 = vcmp.eq.s32.totalorder %v1954, %v2677
      %vm2718 = vcmp.eq.s32.totalorder %v1954, %v2678
      %vm2719 = vcmp.eq.s32.totalorder %v1955, %v2677
      %vm2720 = vcmp.eq.s32.totalorder %v1955, %v2678
      %vm2721 = vcmp.eq.s32.totalorder %v1956, %v2677
      %vm2722 = vcmp.eq.s32.totalorder %v1956, %v2678
      %vm2723 = vcmp.eq.s32.totalorder %v1957, %v2677
      %vm2724 = vcmp.eq.s32.totalorder %v1957, %v2678
      %vm2725 = vcmp.eq.s32.totalorder %v1958, %v2677
      %vm2726 = vcmp.eq.s32.totalorder %v1958, %v2678
      %vm2727 = vcmp.eq.s32.totalorder %v1959, %v2677
      %vm2728 = vcmp.eq.s32.totalorder %v1959, %v2678
      %vm2729 = vcmp.eq.s32.totalorder %v1960, %v2677
      %vm2730 = vcmp.eq.s32.totalorder %v1960, %v2678
      %vm2731 = vcmp.eq.s32.totalorder %v1961, %v2677
      %vm2732 = vcmp.eq.s32.totalorder %v1961, %v2678
      %vm2733 = vcmp.eq.s32.totalorder %v1962, %v2677
      %vm2734 = vcmp.eq.s32.totalorder %v1962, %v2678
      %vm2735 = vcmp.eq.s32.totalorder %v1963, %v2677
      %vm2736 = vcmp.eq.s32.totalorder %v1963, %v2678
      %vm2737 = vcmp.eq.s32.totalorder %v1964, %v2677
      %vm2738 = vcmp.eq.s32.totalorder %v1964, %v2678
      %vm2739 = vcmp.eq.s32.totalorder %v1965, %v2677
      %vm2740 = vcmp.eq.s32.totalorder %v1965, %v2678
      %vm2741 = vcmp.eq.s32.totalorder %v1966, %v2677
      %vm2742 = vcmp.eq.s32.totalorder %v1966, %v2678
      %v2743 = vsel %vm2679, %v2356, 0.0
      %v2744 = vsel %vm2680, %v2582, 0.0
      %v2745 = vsel %vm2681, %v2359, 0.0
      %v2746 = vsel %vm2682, %v2585, 0.0
      %v2747 = vsel %vm2683, %v2362, 0.0
      %v2748 = vsel %vm2684, %v2588, 0.0
      %v2749 = vsel %vm2685, %v2365, 0.0
      %v2750 = vsel %vm2686, %v2591, 0.0
      %v2751 = vsel %vm2687, %v2368, 0.0
      %v2752 = vsel %vm2688, %v2594, 0.0
      %v2753 = vsel %vm2689, %v2371, 0.0
      %v2754 = vsel %vm2690, %v2597, 0.0
      %v2755 = vsel %vm2691, %v2374, 0.0
      %v2756 = vsel %vm2692, %v2600, 0.0
      %v2757 = vsel %vm2693, %v2377, 0.0
      %v2758 = vsel %vm2694, %v2603, 0.0
      %v2759 = vsel %vm2695, %v2380, 0.0
      %v2760 = vsel %vm2696, %v2606, 0.0
      %v2761 = vsel %vm2697, %v2383, 0.0
      %v2762 = vsel %vm2698, %v2609, 0.0
      %v2763 = vsel %vm2699, %v2386, 0.0
      %v2764 = vsel %vm2700, %v2612, 0.0
      %v2765 = vsel %vm2701, %v2389, 0.0
      %v2766 = vsel %vm2702, %v2615, 0.0
      %v2767 = vsel %vm2703, %v2392, 0.0
      %v2768 = vsel %vm2704, %v2618, 0.0
      %v2769 = vsel %vm2705, %v2395, 0.0
      %v2770 = vsel %vm2706, %v2621, 0.0
      %v2771 = vsel %vm2707, %v2398, 0.0
      %v2772 = vsel %vm2708, %v2624, 0.0
      %v2773 = vsel %vm2709, %v2401, 0.0
      %v2774 = vsel %vm2710, %v2627, 0.0
      %v2775 = vsel %vm2711, %v2404, 0.0
      %v2776 = vsel %vm2712, %v2630, 0.0
      %v2777 = vsel %vm2713, %v2407, 0.0
      %v2778 = vsel %vm2714, %v2633, 0.0
      %v2779 = vsel %vm2715, %v2410, 0.0
      %v2780 = vsel %vm2716, %v2636, 0.0
      %v2781 = vsel %vm2717, %v2413, 0.0
      %v2782 = vsel %vm2718, %v2639, 0.0
      %v2783 = vsel %vm2719, %v2416, 0.0
      %v2784 = vsel %vm2720, %v2642, 0.0
      %v2785 = vsel %vm2721, %v2419, 0.0
      %v2786 = vsel %vm2722, %v2645, 0.0
      %v2787 = vsel %vm2723, %v2422, 0.0
      %v2788 = vsel %vm2724, %v2648, 0.0
      %v2789 = vsel %vm2725, %v2425, 0.0
      %v2790 = vsel %vm2726, %v2651, 0.0
      %v2791 = vsel %vm2727, %v2428, 0.0
      %v2792 = vsel %vm2728, %v2654, 0.0
      %v2793 = vsel %vm2729, %v2431, 0.0
      %v2794 = vsel %vm2730, %v2657, 0.0
      %v2795 = vsel %vm2731, %v2434, 0.0
      %v2796 = vsel %vm2732, %v2660, 0.0
      %v2797 = vsel %vm2733, %v2437, 0.0
      %v2798 = vsel %vm2734, %v2663, 0.0
      %v2799 = vsel %vm2735, %v2440, 0.0
      %v2800 = vsel %vm2736, %v2666, 0.0
      %v2801 = vsel %vm2737, %v2443, 0.0
      %v2802 = vsel %vm2738, %v2669, 0.0
      %v2803 = vsel %vm2739, %v2446, 0.0
      %v2804 = vsel %vm2740, %v2672, 0.0
      %v2805 = vsel %vm2741, %v2449, 0.0
      %v2806 = vsel %vm2742, %v2675, 0.0
      %v2807 = vadd.f32 %v2743, %v2745
      %v2808 = vadd.f32 %v2807, %v2747
      %v2809 = vadd.f32 %v2808, %v2749
      %v2810 = vadd.f32 %v2809, %v2751
      %v2811 = vadd.f32 %v2810, %v2753
      %v2812 = vadd.f32 %v2811, %v2755
      %v2813 = vadd.f32 %v2812, %v2757
      %v2814 = vadd.f32 %v2813, %v2759
      %v2815 = vadd.f32 %v2814, %v2761
      %v2816 = vadd.f32 %v2815, %v2763
      %v2817 = vadd.f32 %v2816, %v2765
      %v2818 = vadd.f32 %v2817, %v2767
      %v2819 = vadd.f32 %v2818, %v2769
      %v2820 = vadd.f32 %v2819, %v2771
      %v2821 = vadd.f32 %v2820, %v2773
      %v2822 = vadd.f32 %v2821, %v2775
      %v2823 = vadd.f32 %v2822, %v2777
      %v2824 = vadd.f32 %v2823, %v2779
      %v2825 = vadd.f32 %v2824, %v2781
      %v2826 = vadd.f32 %v2825, %v2783
      %v2827 = vadd.f32 %v2826, %v2785
      %v2828 = vadd.f32 %v2827, %v2787
      %v2829 = vadd.f32 %v2828, %v2789
      %v2830 = vadd.f32 %v2829, %v2791
      %v2831 = vadd.f32 %v2830, %v2793
      %v2832 = vadd.f32 %v2831, %v2795
      %v2833 = vadd.f32 %v2832, %v2797
      %v2834 = vadd.f32 %v2833, %v2799
      %v2835 = vadd.f32 %v2834, %v2801
      %v2836 = vadd.f32 %v2835, %v2803
      %v2837 = vadd.f32 %v2836, %v2805
      %v2838 = vrot.slane %v2837, 4
      %v2839 = vadd.f32 %v2837, %v2838
      %v2840 = vrot.slane %v2839, 2
      %v2841 = vadd.f32 %v2839, %v2840
      %v2842 = vrot.slane %v2841, 1
      %v2843 = vadd.f32 %v2841, %v2842
      %v2844 = vadd.f32 %v2744, %v2746
      %v2845 = vadd.f32 %v2844, %v2748
      %v2846 = vadd.f32 %v2845, %v2750
      %v2847 = vadd.f32 %v2846, %v2752
      %v2848 = vadd.f32 %v2847, %v2754
      %v2849 = vadd.f32 %v2848, %v2756
      %v2850 = vadd.f32 %v2849, %v2758
      %v2851 = vadd.f32 %v2850, %v2760
      %v2852 = vadd.f32 %v2851, %v2762
      %v2853 = vadd.f32 %v2852, %v2764
      %v2854 = vadd.f32 %v2853, %v2766
      %v2855 = vadd.f32 %v2854, %v2768
      %v2856 = vadd.f32 %v2855, %v2770
      %v2857 = vadd.f32 %v2856, %v2772
      %v2858 = vadd.f32 %v2857, %v2774
      %v2859 = vadd.f32 %v2858, %v2776
      %v2860 = vadd.f32 %v2859, %v2778
      %v2861 = vadd.f32 %v2860, %v2780
      %v2862 = vadd.f32 %v2861, %v2782
      %v2863 = vadd.f32 %v2862, %v2784
      %v2864 = vadd.f32 %v2863, %v2786
      %v2865 = vadd.f32 %v2864, %v2788
      %v2866 = vadd.f32 %v2865, %v2790
      %v2867 = vadd.f32 %v2866, %v2792
      %v2868 = vadd.f32 %v2867, %v2794
      %v2869 = vadd.f32 %v2868, %v2796
      %v2870 = vadd.f32 %v2869, %v2798
      %v2871 = vadd.f32 %v2870, %v2800
      %v2872 = vadd.f32 %v2871, %v2802
      %v2873 = vadd.f32 %v2872, %v2804
      %v2874 = vadd.f32 %v2873, %v2806
      %v2875 = vrot.slane %v2874, 4
      %v2876 = vadd.f32 %v2874, %v2875
      %v2877 = vrot.slane %v2876, 2
      %v2878 = vadd.f32 %v2876, %v2877
      %v2879 = vrot.slane %v2878, 1
      %v2880 = vadd.f32 %v2878, %v2879
      %v2881 = vmax.f32 %v2843, 0.0
      %v2882 = vmax.f32 %v2880, 0.0
      %vm2883 = vcmp.lt.f32.partialorder %v2881, 0.1
      %vm2884 = vcmp.lt.f32.partialorder %v2882, 0.1
      %v2885 = vsel %vm2883, 0.0, %v2881
      %v2886 = vsel %vm2884, 0.0, %v2882
      %v2889 = vrot.slane %v2886, 7
      %vm2890 = vcmask 1040384
      %v2891 = vsel %vm2890, %v2885, %v2889
      %v2893 = vlaneseq
      %vm2894 = vcmp.ge.s32.totalorder %v2893, 0
      %vm2895 = vcmp.lt.s32.totalorder %v2893, 256
      %vm2896 = vmand %vm2894, %vm2895
      %2897 = vst.msk [vmem:[%s419] sm:$0x3] %vm2896, %v2891
      %v2898 = vld [vmem:[%s11] ss:$2 sm:$0x3]
      %v2899 = vld [vmem:[%s414] ss:$2 sm:$0x3]
      %v2900 = vmul.f32 %v2843, %v2843
      %v2901 = vmul.f32 %v2880, %v2880
      %v2904 = vrot.slane %v2901, 7
      %v2905 = vsel %vm2890, %v2900, %v2904
      %v2907 = vmul.f32 %v2899, %v2905
      %v2908 = vadd.f32 %v2898, %v2907
      %2909 = vst.msk [vmem:[%s11] ss:$2 sm:$0x3] %vm2896, %v2908
      %s2910 = scalar_lea.vmem %s11, 1
      %v2911 = vld [vmem:[%s2910] ss:$2 sm:$0x3]
      %s2912 = scalar_lea.vmem %s414, 1
      %v2913 = vld [vmem:[%s2912] ss:$2 sm:$0x3]
      %v2914 = vsub.f32 %v2843, 1.0
      %v2915 = vsub.f32 %v2880, 1.0
      %v2916 = vmul.f32 %v2914, %v2914
      %v2917 = vmul.f32 %v2915, %v2915
      %v2920 = vrot.slane %v2917, 7
      %v2921 = vsel %vm2890, %v2916, %v2920
      %v2923 = vmul.f32 %v2913, %v2921
      %v2924 = vadd.f32 %v2911, %v2923
      %2925 = vst.msk [vmem:[%s2910] ss:$2 sm:$0x3] %vm2896, %v2924
      %s2926 = smul.u32 2, %s23
      %p2927 = scmp.lt.s32.totalorder %s2926, 27
      %s2928 = scalar_select %p2927, %s2926, 27
      %s2929 = scalar_lea.vmem %s10, %s2928
      // Predicated region
      $region61: #{estimate_adj_forward.1} parent=55 // pred_check
        %p2930 = pneg %p240
      $region62: #{estimate_adj_forward.1} parent=55 // pred_check_branch
        %2932 = sbr.rel (%p2930) target = $region64
      $region63: #{estimate_adj_forward.1} parent=55 // pred_region
        _
      $region64: #{estimate_adj_forward.1} parent=55 // pred_fallthru
        _
      // Predicated region
      $region65: #{estimate_adj_forward.1} parent=55 // pred_check
        %p2933 = pneg %p266
      $region66: #{estimate_adj_forward.1} parent=55 // pred_check_branch
        %2935 = sbr.rel (%p2933) target = $region68
      $region67: #{estimate_adj_forward.1} parent=55 // pred_region
        %s2936 = smul.u32 2, %s23
      $region68: #{estimate_adj_forward.1} parent=55 // pred_fallthru
        _
      // Predicated region
      $region69: #{estimate_adj_forward.1} parent=55 // pred_check
        %p2937 = pneg %p287
      $region70: #{estimate_adj_forward.1} parent=55 // pred_check_branch
        %2939 = sbr.rel (%p2937) target = $region72
      $region71: #{estimate_adj_forward.1} parent=55 // pred_region
        _
      $region72: #{estimate_adj_forward.1} parent=55 // pred_fallthru
        _
      // Predicated region
      $region73: #{estimate_adj_forward.1} parent=55 // pred_check
        %p2940 = pneg %p240
      $region74: #{estimate_adj_forward.1} parent=55 // pred_check_branch
        %2942 = sbr.rel (%p2940) target = $region76
      $region75: #{estimate_adj_forward.1} parent=55 // pred_region
        _
      $region76: #{estimate_adj_forward.1} parent=55 // pred_fallthru
        _
      // Predicated region
      $region77: #{estimate_adj_forward.1} parent=55 // pred_check
        %p2943 = pneg %p287
      $region78: #{estimate_adj_forward.1} parent=55 // pred_check_branch
        %2945 = sbr.rel (%p2943) target = $region80
      $region79: #{estimate_adj_forward.1} parent=55 // pred_region
        _
      $region80: #{estimate_adj_forward.1} parent=55 // pred_fallthru
        _
    $region56: #{estimate_adj_forward.1} parent=5 // pred_fallthru
      _
    %p2946 = scmp.le.s32.totalorder 2, %s18
    // Predicated region
    $region81: #{estimate_adj_forward.1} parent=5 // pred_check
      %p2947 = pneg %p2946
    $region82: #{estimate_adj_forward.1} parent=5 // pred_check_branch
      %2949 = sbr.rel (%p2947) target = $region84
    $region83: #{estimate_adj_forward.1} parent=5 // pred_region
      %s2950 = ssub.s32 %s18, 2
      // Predicated region
      $region85: #{estimate_adj_forward.1} parent=83 // pred_check
        %p2951 = pneg %p272
      $region86: #{estimate_adj_forward.1} parent=83 // pred_check_branch
        %2953 = sbr.rel (%p2951) target = $region88
      $region87: #{estimate_adj_forward.1} parent=83 // pred_region
        %s2954 = smul.u32 2, %s24
        %p2955 = scmp.lt.s32.totalorder %s2954, 27
        %s2956 = scalar_select %p2955, %s2954, 27
        %s2957 = scalar_lea.vmem %s10, %s2956
      $region88: #{estimate_adj_forward.1} parent=83 // pred_fallthru
        _
    $region84: #{estimate_adj_forward.1} parent=5 // pred_fallthru
      _
  $region6: #{estimate_adj_forward.1} parent=0 // loop_footer
    %s22 = sadd.s32 1, %s18
  $region7: #{estimate_adj_forward.1} parent=0 // loop_footer_branch
    %17 = sbr.rel target = $region3
  $region8: #{estimate_adj_forward.1} parent=0 // loop_exit
    _

</llo_original>
